<compile_context>
chip_gen: v6e
topology: v6e:2x2x1
jax: 0.10.0
libtpu: 0.0.40
codegen_flags: <defaults>
</compile_context>

<pallas_src>
import jax
import jax.numpy as jnp
from jax.experimental import pallas as pl
from jax.experimental.pallas import tpu as pltpu

INPUT = 1
HIDDEN = 50
HIDDEN_PAD = 64          # 50 -> 64 (lane/sublane friendly)
NUM_LAYERS = 2           # hard-wired: two stacked LSTM layers


def lstm_kernel(x_ref, wx1_ref, wh1_ref, b1_ref,
                wx2_ref, wh2_ref, b2_ref,
                wlin_ref, blin_ref, out_ref):
    T, B, I = x_ref.shape
    Hp = wh1_ref.shape[0]           # padded hidden size (64)

    wx1 = wx1_ref[...]              # (I, 4*Hp)
    b1 = b1_ref[...]                # (1, 4*Hp)

    # --- layer-1 input projection hoisted out of the recurrence -------------
    # input_size == 1 => pure broadcast multiply on the VPU (no K=1 matmul in
    # the serial chain); layer-1 bias folded in here once per timestep slab.
    if I == 1:
        x_proj = [x_ref[t] * wx1 + b1 for t in range(T)]          # each (B, 4*Hp)
    else:
        x_proj = [jnp.dot(x_ref[t], wx1,
                          preferred_element_type=jnp.float32) + b1
                  for t in range(T)]

    def gates_to_hc(g, c_prev):
        # fused gate vector (B, 4*Hp), PyTorch gate order i, f, g, o
        i = jax.nn.sigmoid(g[:, 0:Hp])
        f = jax.nn.sigmoid(g[:, Hp:2 * Hp])
        gg = jnp.tanh(g[:, 2 * Hp:3 * Hp])
        o = jax.nn.sigmoid(g[:, 3 * Hp:4 * Hp])
        c = f * c_prev + i * gg
        h = o * jnp.tanh(c)
        return h, c

    zeros = jnp.zeros((B, Hp), jnp.float32)
    h1, c1, h2, c2 = zeros, zeros, zeros, zeros

    # --- fully unrolled recurrence (T static & small) ------------------------
    for t in range(T):
        g1 = x_proj[t] + jnp.dot(h1, wh1_ref[...],
                                 preferred_element_type=jnp.float32)
        h1, c1 = gates_to_hc(g1, c1)
        g2 = (jnp.dot(h1, wx2_ref[...], preferred_element_type=jnp.float32)
              + jnp.dot(h2, wh2_ref[...], preferred_element_type=jnp.float32)
              + b2_ref[...])
        h2, c2 = gates_to_hc(g2, c2)

    # --- linear head on last timestep of the top layer -----------------------
    # (B, Hp) * (1, Hp) multiply + lane reduce instead of an N=1 matmul.
    out_ref[...] = (jnp.sum(h2 * wlin_ref[...], axis=1, keepdims=True)
                    + blin_ref[0, 0])


def init_raw_params(key, input_size=INPUT, hidden_size=HIDDEN):
    """PyTorch-style nn.LSTM / nn.Linear shapes, uniform(-1/sqrt(H), 1/sqrt(H))."""
    H = hidden_size
    bound = 1.0 / float(H) ** 0.5
    keys = jax.random.split(key, 10)

    def u(k, shape):
        return jax.random.uniform(k, shape, jnp.float32, -bound, bound)

    return dict(
        w_ih0=u(keys[0], (4 * H, input_size)),
        w_hh0=u(keys[1], (4 * H, H)),
        b_ih0=u(keys[2], (4 * H,)),
        b_hh0=u(keys[3], (4 * H,)),
        w_ih1=u(keys[4], (4 * H, H)),
        w_hh1=u(keys[5], (4 * H, H)),
        b_ih1=u(keys[6], (4 * H,)),
        b_hh1=u(keys[7], (4 * H,)),
        w_lin=u(keys[8], (1, H)),
        b_lin=u(keys[9], (1,)),
    )


def pack_params(raw, hidden_size=HIDDEN, hidden_pad=HIDDEN_PAD):
    """Fuse gates (i,f,g,o) into one lane-major block and zero-pad H -> Hp."""
    H, Hp = hidden_size, hidden_pad

    def fuse(w, in_dim, in_pad):
        # (4H, in) -> (in_pad, 4*Hp), gate-major columns [i | f | g | o]
        w4 = w.reshape(4, H, in_dim)
        w4 = jnp.transpose(w4, (2, 0, 1))                          # (in, 4, H)
        w4 = jnp.pad(w4, ((0, in_pad - in_dim), (0, 0), (0, Hp - H)))
        return w4.reshape(in_pad, 4 * Hp)

    def fuse_bias(b_ih, b_hh):
        b = (b_ih + b_hh).reshape(4, H)
        b = jnp.pad(b, ((0, 0), (0, Hp - H)))
        return b.reshape(1, 4 * Hp)

    in_size = raw["w_ih0"].shape[1]
    return dict(
        wx1=fuse(raw["w_ih0"], in_size, in_size),                  # (I, 4Hp)
        wh1=fuse(raw["w_hh0"], H, Hp),                             # (Hp, 4Hp)
        b1=fuse_bias(raw["b_ih0"], raw["b_hh0"]),                  # (1, 4Hp)
        wx2=fuse(raw["w_ih1"], H, Hp),                             # (Hp, 4Hp)
        wh2=fuse(raw["w_hh1"], H, Hp),                             # (Hp, 4Hp)
        b2=fuse_bias(raw["b_ih1"], raw["b_hh1"]),                  # (1, 4Hp)
        wlin=jnp.pad(raw["w_lin"], ((0, 0), (0, Hp - H))),         # (1, Hp)
        blin=raw["b_lin"].reshape(1, 1),                           # (1, 1) scalar
    )


def lstm_forward(x, packed):
    """x: (batch, seq, input) float32 -> (batch, 1) float32."""
    xs = jnp.transpose(x, (1, 0, 2)).astype(jnp.float32)           # (T, B, I)
    B = x.shape[0]
    vmem = pl.BlockSpec(memory_space=pltpu.MemorySpace.VMEM)
    smem = pl.BlockSpec(memory_space=pltpu.MemorySpace.SMEM)
    return pl.pallas_call(
        lstm_kernel,
        out_shape=jax.ShapeDtypeStruct((B, 1), jnp.float32),
        in_specs=[vmem,                       # x (seq-major)
                  vmem, vmem, vmem,           # layer 1: wx, wh, b
                  vmem, vmem, vmem,           # layer 2: wx, wh, b
                  vmem, smem],                # head: wlin, blin (scalar in SMEM)
        out_specs=vmem,
    )(xs, packed["wx1"], packed["wh1"], packed["b1"],
      packed["wx2"], packed["wh2"], packed["b2"],
      packed["wlin"], packed["blin"])


def lstm_reference(x, raw, hidden_size=HIDDEN):
    """Pure-JAX mirror of torch.nn.LSTM(batch_first=True) + Linear, unfused/unpadded."""
    B, T, _ = x.shape
    H = hidden_size

    def cell(x_t, h, c, w_ih, w_hh, b_ih, b_hh):
        g = x_t @ w_ih.T + h @ w_hh.T + b_ih + b_hh                # (B, 4H)
        i = jax.nn.sigmoid(g[:, 0:H])
        f = jax.nn.sigmoid(g[:, H:2 * H])
        gg = jnp.tanh(g[:, 2 * H:3 * H])
        o = jax.nn.sigmoid(g[:, 3 * H:4 * H])
        c = f * c + i * gg
        h = o * jnp.tanh(c)
        return h, c

    h1 = c1 = h2 = c2 = jnp.zeros((B, H), jnp.float32)
    for t in range(T):
        h1, c1 = cell(x[:, t, :], h1, c1,
                      raw["w_ih0"], raw["w_hh0"], raw["b_ih0"], raw["b_hh0"])
        h2, c2 = cell(h1, h2, c2,
                      raw["w_ih1"], raw["w_hh1"], raw["b_ih1"], raw["b_hh1"])
    return h2 @ raw["w_lin"].T + raw["b_lin"]


if __name__ == "__main__":
    key = jax.random.PRNGKey(0)
    pkey, xkey = jax.random.split(key)

    raw = init_raw_params(pkey)
    packed = pack_params(raw)

    B, T, I = 2, 8, INPUT
    x = jax.random.normal(xkey, (B, T, I), dtype=jnp.float32)

    out = jax.block_until_ready(lstm_forward(x, packed))
    ref = lstm_reference(x, raw)

    assert out.shape == (B, 1)
    assert jnp.allclose(out, ref, rtol=1e-4, atol=1e-5), (out, ref)

    print("KERNEL_OK")
</pallas_src>

<mosaic_0001>
module attributes {stable_mosaic.version = 11 : i64} {
  func.func @lstm_kernel(%arg0: memref<8x2x1xf32, #tpu.memory_space<vmem>>, %arg1: memref<1x256xf32, #tpu.memory_space<vmem>>, %arg2: memref<64x256xf32, #tpu.memory_space<vmem>>, %arg3: memref<1x256xf32, #tpu.memory_space<vmem>>, %arg4: memref<64x256xf32, #tpu.memory_space<vmem>>, %arg5: memref<64x256xf32, #tpu.memory_space<vmem>>, %arg6: memref<1x256xf32, #tpu.memory_space<vmem>>, %arg7: memref<1x64xf32, #tpu.memory_space<vmem>>, %arg8: memref<1x1xf32, #tpu.memory_space<smem>>, %arg9: memref<2x1xf32, #tpu.memory_space<vmem>>) attributes {dimension_semantics = [], scalar_prefetch = 0 : i64, scratch_operands = 0 : i64, tpu.core_type = #tpu.core_type<tc>} {
    %c0 = arith.constant 0 : index
    %c0_0 = arith.constant 0 : index
    %0 = vector.load %arg1[%c0, %c0_0] : memref<1x256xf32, #tpu.memory_space<vmem>>, vector<1x256xf32>
    %c0_1 = arith.constant 0 : index
    %c0_2 = arith.constant 0 : index
    %1 = vector.load %arg3[%c0_1, %c0_2] : memref<1x256xf32, #tpu.memory_space<vmem>>, vector<1x256xf32>
    %c0_3 = arith.constant 0 : index
    %c0_4 = arith.constant 0 : index
    %c0_5 = arith.constant 0 : index
    %2 = vector.load %arg0[%c0_3, %c0_4, %c0_5] : memref<8x2x1xf32, #tpu.memory_space<vmem>>, vector<1x2x1xf32>
    %3 = vector.shape_cast %2 : vector<1x2x1xf32> to vector<2x1xf32>
    %4 = vector.broadcast %3 : vector<2x1xf32> to vector<2x256xf32>
    %5 = vector.broadcast %0 : vector<1x256xf32> to vector<2x256xf32>
    %6 = arith.mulf %4, %5 : vector<2x256xf32>
    %7 = vector.broadcast %1 : vector<1x256xf32> to vector<2x256xf32>
    %8 = arith.addf %6, %7 : vector<2x256xf32>
    %c1 = arith.constant 1 : index
    %c0_6 = arith.constant 0 : index
    %c0_7 = arith.constant 0 : index
    %9 = vector.load %arg0[%c1, %c0_6, %c0_7] : memref<8x2x1xf32, #tpu.memory_space<vmem>>, vector<1x2x1xf32>
    %10 = vector.shape_cast %9 : vector<1x2x1xf32> to vector<2x1xf32>
    %11 = vector.broadcast %10 : vector<2x1xf32> to vector<2x256xf32>
    %12 = vector.broadcast %0 : vector<1x256xf32> to vector<2x256xf32>
    %13 = arith.mulf %11, %12 : vector<2x256xf32>
    %14 = vector.broadcast %1 : vector<1x256xf32> to vector<2x256xf32>
    %15 = arith.addf %13, %14 : vector<2x256xf32>
    %c2 = arith.constant 2 : index
    %c0_8 = arith.constant 0 : index
    %c0_9 = arith.constant 0 : index
    %16 = vector.load %arg0[%c2, %c0_8, %c0_9] : memref<8x2x1xf32, #tpu.memory_space<vmem>>, vector<1x2x1xf32>
    %17 = vector.shape_cast %16 : vector<1x2x1xf32> to vector<2x1xf32>
    %18 = vector.broadcast %17 : vector<2x1xf32> to vector<2x256xf32>
    %19 = vector.broadcast %0 : vector<1x256xf32> to vector<2x256xf32>
    %20 = arith.mulf %18, %19 : vector<2x256xf32>
    %21 = vector.broadcast %1 : vector<1x256xf32> to vector<2x256xf32>
    %22 = arith.addf %20, %21 : vector<2x256xf32>
    %c3 = arith.constant 3 : index
    %c0_10 = arith.constant 0 : index
    %c0_11 = arith.constant 0 : index
    %23 = vector.load %arg0[%c3, %c0_10, %c0_11] : memref<8x2x1xf32, #tpu.memory_space<vmem>>, vector<1x2x1xf32>
    %24 = vector.shape_cast %23 : vector<1x2x1xf32> to vector<2x1xf32>
    %25 = vector.broadcast %24 : vector<2x1xf32> to vector<2x256xf32>
    %26 = vector.broadcast %0 : vector<1x256xf32> to vector<2x256xf32>
    %27 = arith.mulf %25, %26 : vector<2x256xf32>
    %28 = vector.broadcast %1 : vector<1x256xf32> to vector<2x256xf32>
    %29 = arith.addf %27, %28 : vector<2x256xf32>
    %c4 = arith.constant 4 : index
    %c0_12 = arith.constant 0 : index
    %c0_13 = arith.constant 0 : index
    %30 = vector.load %arg0[%c4, %c0_12, %c0_13] : memref<8x2x1xf32, #tpu.memory_space<vmem>>, vector<1x2x1xf32>
    %31 = vector.shape_cast %30 : vector<1x2x1xf32> to vector<2x1xf32>
    %32 = vector.broadcast %31 : vector<2x1xf32> to vector<2x256xf32>
    %33 = vector.broadcast %0 : vector<1x256xf32> to vector<2x256xf32>
    %34 = arith.mulf %32, %33 : vector<2x256xf32>
    %35 = vector.broadcast %1 : vector<1x256xf32> to vector<2x256xf32>
    %36 = arith.addf %34, %35 : vector<2x256xf32>
    %c5 = arith.constant 5 : index
    %c0_14 = arith.constant 0 : index
    %c0_15 = arith.constant 0 : index
    %37 = vector.load %arg0[%c5, %c0_14, %c0_15] : memref<8x2x1xf32, #tpu.memory_space<vmem>>, vector<1x2x1xf32>
    %38 = vector.shape_cast %37 : vector<1x2x1xf32> to vector<2x1xf32>
    %39 = vector.broadcast %38 : vector<2x1xf32> to vector<2x256xf32>
    %40 = vector.broadcast %0 : vector<1x256xf32> to vector<2x256xf32>
    %41 = arith.mulf %39, %40 : vector<2x256xf32>
    %42 = vector.broadcast %1 : vector<1x256xf32> to vector<2x256xf32>
    %43 = arith.addf %41, %42 : vector<2x256xf32>
    %c6 = arith.constant 6 : index
    %c0_16 = arith.constant 0 : index
    %c0_17 = arith.constant 0 : index
    %44 = vector.load %arg0[%c6, %c0_16, %c0_17] : memref<8x2x1xf32, #tpu.memory_space<vmem>>, vector<1x2x1xf32>
    %45 = vector.shape_cast %44 : vector<1x2x1xf32> to vector<2x1xf32>
    %46 = vector.broadcast %45 : vector<2x1xf32> to vector<2x256xf32>
    %47 = vector.broadcast %0 : vector<1x256xf32> to vector<2x256xf32>
    %48 = arith.mulf %46, %47 : vector<2x256xf32>
    %49 = vector.broadcast %1 : vector<1x256xf32> to vector<2x256xf32>
    %50 = arith.addf %48, %49 : vector<2x256xf32>
    %c7 = arith.constant 7 : index
    %c0_18 = arith.constant 0 : index
    %c0_19 = arith.constant 0 : index
    %51 = vector.load %arg0[%c7, %c0_18, %c0_19] : memref<8x2x1xf32, #tpu.memory_space<vmem>>, vector<1x2x1xf32>
    %52 = vector.shape_cast %51 : vector<1x2x1xf32> to vector<2x1xf32>
    %53 = vector.broadcast %52 : vector<2x1xf32> to vector<2x256xf32>
    %54 = vector.broadcast %0 : vector<1x256xf32> to vector<2x256xf32>
    %55 = arith.mulf %53, %54 : vector<2x256xf32>
    %56 = vector.broadcast %1 : vector<1x256xf32> to vector<2x256xf32>
    %57 = arith.addf %55, %56 : vector<2x256xf32>
    %cst = arith.constant 0.000000e+00 : f32
    %58 = vector.broadcast %cst : f32 to vector<2x64xf32>
    %c0_20 = arith.constant 0 : index
    %c0_21 = arith.constant 0 : index
    %59 = vector.load %arg2[%c0_20, %c0_21] : memref<64x256xf32, #tpu.memory_space<vmem>>, vector<64x256xf32>
    %cst_22 = arith.constant dense<0.000000e+00> : vector<2x256xf32>
    %60 = tpu.matmul %58, %59, %cst_22 {dimension_numbers = #tpu.dot_dimension_numbers<[1], [0], [0], [1], [0, 0, 1, 1], [], []>} : vector<2x64xf32>, vector<64x256xf32>, vector<2x256xf32> -> vector<2x256xf32>
    %61 = arith.addf %8, %60 : vector<2x256xf32>
    %62 = vector.extract_strided_slice %61 {offsets = [0, 0], sizes = [2, 64], strides = [1, 1]} : vector<2x256xf32> to vector<2x64xf32>
    %63 = arith.negf %62 : vector<2x64xf32>
    %64 = math.exp %63 : vector<2x64xf32>
    %cst_23 = arith.constant 1.000000e+00 : f32
    %65 = vector.broadcast %cst_23 : f32 to vector<2x64xf32>
    %66 = arith.addf %65, %64 : vector<2x64xf32>
    %67 = arith.divf %65, %66 : vector<2x64xf32>
    %68 = vector.extract_strided_slice %61 {offsets = [0, 64], sizes = [2, 64], strides = [1, 1]} : vector<2x256xf32> to vector<2x64xf32>
    %69 = arith.negf %68 : vector<2x64xf32>
    %70 = math.exp %69 : vector<2x64xf32>
    %cst_24 = arith.constant 1.000000e+00 : f32
    %71 = vector.broadcast %cst_24 : f32 to vector<2x64xf32>
    %72 = arith.addf %71, %70 : vector<2x64xf32>
    %73 = arith.divf %71, %72 : vector<2x64xf32>
    %74 = vector.extract_strided_slice %61 {offsets = [0, 128], sizes = [2, 64], strides = [1, 1]} : vector<2x256xf32> to vector<2x64xf32>
    %75 = math.tanh %74 : vector<2x64xf32>
    %76 = vector.extract_strided_slice %61 {offsets = [0, 192], sizes = [2, 64], strides = [1, 1]} : vector<2x256xf32> to vector<2x64xf32>
    %77 = arith.negf %76 : vector<2x64xf32>
    %78 = math.exp %77 : vector<2x64xf32>
    %cst_25 = arith.constant 1.000000e+00 : f32
    %79 = vector.broadcast %cst_25 : f32 to vector<2x64xf32>
    %80 = arith.addf %79, %78 : vector<2x64xf32>
    %81 = arith.divf %79, %80 : vector<2x64xf32>
    %82 = arith.mulf %73, %58 : vector<2x64xf32>
    %83 = arith.mulf %67, %75 : vector<2x64xf32>
    %84 = arith.addf %82, %83 : vector<2x64xf32>
    %85 = math.tanh %84 : vector<2x64xf32>
    %86 = arith.mulf %81, %85 : vector<2x64xf32>
    %c0_26 = arith.constant 0 : index
    %c0_27 = arith.constant 0 : index
    %87 = vector.load %arg4[%c0_26, %c0_27] : memref<64x256xf32, #tpu.memory_space<vmem>>, vector<64x256xf32>
    %cst_28 = arith.constant dense<0.000000e+00> : vector<2x256xf32>
    %88 = tpu.matmul %86, %87, %cst_28 {dimension_numbers = #tpu.dot_dimension_numbers<[1], [0], [0], [1], [0, 0, 1, 1], [], []>} : vector<2x64xf32>, vector<64x256xf32>, vector<2x256xf32> -> vector<2x256xf32>
    %c0_29 = arith.constant 0 : index
    %c0_30 = arith.constant 0 : index
    %89 = vector.load %arg5[%c0_29, %c0_30] : memref<64x256xf32, #tpu.memory_space<vmem>>, vector<64x256xf32>
    %cst_31 = arith.constant dense<0.000000e+00> : vector<2x256xf32>
    %90 = tpu.matmul %58, %89, %cst_31 {dimension_numbers = #tpu.dot_dimension_numbers<[1], [0], [0], [1], [0, 0, 1, 1], [], []>} : vector<2x64xf32>, vector<64x256xf32>, vector<2x256xf32> -> vector<2x256xf32>
    %91 = arith.addf %88, %90 : vector<2x256xf32>
    %c0_32 = arith.constant 0 : index
    %c0_33 = arith.constant 0 : index
    %92 = vector.load %arg6[%c0_32, %c0_33] : memref<1x256xf32, #tpu.memory_space<vmem>>, vector<1x256xf32>
    %93 = vector.broadcast %92 : vector<1x256xf32> to vector<2x256xf32>
    %94 = arith.addf %91, %93 : vector<2x256xf32>
    %95 = vector.extract_strided_slice %94 {offsets = [0, 0], sizes = [2, 64], strides = [1, 1]} : vector<2x256xf32> to vector<2x64xf32>
    %96 = arith.negf %95 : vector<2x64xf32>
    %97 = math.exp %96 : vector<2x64xf32>
    %cst_34 = arith.constant 1.000000e+00 : f32
    %98 = vector.broadcast %cst_34 : f32 to vector<2x64xf32>
    %99 = arith.addf %98, %97 : vector<2x64xf32>
    %100 = arith.divf %98, %99 : vector<2x64xf32>
    %101 = vector.extract_strided_slice %94 {offsets = [0, 64], sizes = [2, 64], strides = [1, 1]} : vector<2x256xf32> to vector<2x64xf32>
    %102 = arith.negf %101 : vector<2x64xf32>
    %103 = math.exp %102 : vector<2x64xf32>
    %cst_35 = arith.constant 1.000000e+00 : f32
    %104 = vector.broadcast %cst_35 : f32 to vector<2x64xf32>
    %105 = arith.addf %104, %103 : vector<2x64xf32>
    %106 = arith.divf %104, %105 : vector<2x64xf32>
    %107 = vector.extract_strided_slice %94 {offsets = [0, 128], sizes = [2, 64], strides = [1, 1]} : vector<2x256xf32> to vector<2x64xf32>
    %108 = math.tanh %107 : vector<2x64xf32>
    %109 = vector.extract_strided_slice %94 {offsets = [0, 192], sizes = [2, 64], strides = [1, 1]} : vector<2x256xf32> to vector<2x64xf32>
    %110 = arith.negf %109 : vector<2x64xf32>
    %111 = math.exp %110 : vector<2x64xf32>
    %cst_36 = arith.constant 1.000000e+00 : f32
    %112 = vector.broadcast %cst_36 : f32 to vector<2x64xf32>
    %113 = arith.addf %112, %111 : vector<2x64xf32>
    %114 = arith.divf %112, %113 : vector<2x64xf32>
    %115 = arith.mulf %106, %58 : vector<2x64xf32>
    %116 = arith.mulf %100, %108 : vector<2x64xf32>
    %117 = arith.addf %115, %116 : vector<2x64xf32>
    %118 = math.tanh %117 : vector<2x64xf32>
    %119 = arith.mulf %114, %118 : vector<2x64xf32>
    %c0_37 = arith.constant 0 : index
    %c0_38 = arith.constant 0 : index
    %120 = vector.load %arg2[%c0_37, %c0_38] : memref<64x256xf32, #tpu.memory_space<vmem>>, vector<64x256xf32>
    %cst_39 = arith.constant dense<0.000000e+00> : vector<2x256xf32>
    %121 = tpu.matmul %86, %120, %cst_39 {dimension_numbers = #tpu.dot_dimension_numbers<[1], [0], [0], [1], [0, 0, 1, 1], [], []>} : vector<2x64xf32>, vector<64x256xf32>, vector<2x256xf32> -> vector<2x256xf32>
    %122 = arith.addf %15, %121 : vector<2x256xf32>
    %123 = vector.extract_strided_slice %122 {offsets = [0, 0], sizes = [2, 64], strides = [1, 1]} : vector<2x256xf32> to vector<2x64xf32>
    %124 = arith.negf %123 : vector<2x64xf32>
    %125 = math.exp %124 : vector<2x64xf32>
    %cst_40 = arith.constant 1.000000e+00 : f32
    %126 = vector.broadcast %cst_40 : f32 to vector<2x64xf32>
    %127 = arith.addf %126, %125 : vector<2x64xf32>
    %128 = arith.divf %126, %127 : vector<2x64xf32>
    %129 = vector.extract_strided_slice %122 {offsets = [0, 64], sizes = [2, 64], strides = [1, 1]} : vector<2x256xf32> to vector<2x64xf32>
    %130 = arith.negf %129 : vector<2x64xf32>
    %131 = math.exp %130 : vector<2x64xf32>
    %cst_41 = arith.constant 1.000000e+00 : f32
    %132 = vector.broadcast %cst_41 : f32 to vector<2x64xf32>
    %133 = arith.addf %132, %131 : vector<2x64xf32>
    %134 = arith.divf %132, %133 : vector<2x64xf32>
    %135 = vector.extract_strided_slice %122 {offsets = [0, 128], sizes = [2, 64], strides = [1, 1]} : vector<2x256xf32> to vector<2x64xf32>
    %136 = math.tanh %135 : vector<2x64xf32>
    %137 = vector.extract_strided_slice %122 {offsets = [0, 192], sizes = [2, 64], strides = [1, 1]} : vector<2x256xf32> to vector<2x64xf32>
    %138 = arith.negf %137 : vector<2x64xf32>
    %139 = math.exp %138 : vector<2x64xf32>
    %cst_42 = arith.constant 1.000000e+00 : f32
    %140 = vector.broadcast %cst_42 : f32 to vector<2x64xf32>
    %141 = arith.addf %140, %139 : vector<2x64xf32>
    %142 = arith.divf %140, %141 : vector<2x64xf32>
    %143 = arith.mulf %134, %84 : vector<2x64xf32>
    %144 = arith.mulf %128, %136 : vector<2x64xf32>
    %145 = arith.addf %143, %144 : vector<2x64xf32>
    %146 = math.tanh %145 : vector<2x64xf32>
    %147 = arith.mulf %142, %146 : vector<2x64xf32>
    %c0_43 = arith.constant 0 : index
    %c0_44 = arith.constant 0 : index
    %148 = vector.load %arg4[%c0_43, %c0_44] : memref<64x256xf32, #tpu.memory_space<vmem>>, vector<64x256xf32>
    %cst_45 = arith.constant dense<0.000000e+00> : vector<2x256xf32>
    %149 = tpu.matmul %147, %148, %cst_45 {dimension_numbers = #tpu.dot_dimension_numbers<[1], [0], [0], [1], [0, 0, 1, 1], [], []>} : vector<2x64xf32>, vector<64x256xf32>, vector<2x256xf32> -> vector<2x256xf32>
    %c0_46 = arith.constant 0 : index
    %c0_47 = arith.constant 0 : index
    %150 = vector.load %arg5[%c0_46, %c0_47] : memref<64x256xf32, #tpu.memory_space<vmem>>, vector<64x256xf32>
    %cst_48 = arith.constant dense<0.000000e+00> : vector<2x256xf32>
    %151 = tpu.matmul %119, %150, %cst_48 {dimension_numbers = #tpu.dot_dimension_numbers<[1], [0], [0], [1], [0, 0, 1, 1], [], []>} : vector<2x64xf32>, vector<64x256xf32>, vector<2x256xf32> -> vector<2x256xf32>
    %152 = arith.addf %149, %151 : vector<2x256xf32>
    %c0_49 = arith.constant 0 : index
    %c0_50 = arith.constant 0 : index
    %153 = vector.load %arg6[%c0_49, %c0_50] : memref<1x256xf32, #tpu.memory_space<vmem>>, vector<1x256xf32>
    %154 = vector.broadcast %153 : vector<1x256xf32> to vector<2x256xf32>
    %155 = arith.addf %152, %154 : vector<2x256xf32>
    %156 = vector.extract_strided_slice %155 {offsets = [0, 0], sizes = [2, 64], strides = [1, 1]} : vector<2x256xf32> to vector<2x64xf32>
    %157 = arith.negf %156 : vector<2x64xf32>
    %158 = math.exp %157 : vector<2x64xf32>
    %cst_51 = arith.constant 1.000000e+00 : f32
    %159 = vector.broadcast %cst_51 : f32 to vector<2x64xf32>
    %160 = arith.addf %159, %158 : vector<2x64xf32>
    %161 = arith.divf %159, %160 : vector<2x64xf32>
    %162 = vector.extract_strided_slice %155 {offsets = [0, 64], sizes = [2, 64], strides = [1, 1]} : vector<2x256xf32> to vector<2x64xf32>
    %163 = arith.negf %162 : vector<2x64xf32>
    %164 = math.exp %163 : vector<2x64xf32>
    %cst_52 = arith.constant 1.000000e+00 : f32
    %165 = vector.broadcast %cst_52 : f32 to vector<2x64xf32>
    %166 = arith.addf %165, %164 : vector<2x64xf32>
    %167 = arith.divf %165, %166 : vector<2x64xf32>
    %168 = vector.extract_strided_slice %155 {offsets = [0, 128], sizes = [2, 64], strides = [1, 1]} : vector<2x256xf32> to vector<2x64xf32>
    %169 = math.tanh %168 : vector<2x64xf32>
    %170 = vector.extract_strided_slice %155 {offsets = [0, 192], sizes = [2, 64], strides = [1, 1]} : vector<2x256xf32> to vector<2x64xf32>
    %171 = arith.negf %170 : vector<2x64xf32>
    %172 = math.exp %171 : vector<2x64xf32>
    %cst_53 = arith.constant 1.000000e+00 : f32
    %173 = vector.broadcast %cst_53 : f32 to vector<2x64xf32>
    %174 = arith.addf %173, %172 : vector<2x64xf32>
    %175 = arith.divf %173, %174 : vector<2x64xf32>
    %176 = arith.mulf %167, %117 : vector<2x64xf32>
    %177 = arith.mulf %161, %169 : vector<2x64xf32>
    %178 = arith.addf %176, %177 : vector<2x64xf32>
    %179 = math.tanh %178 : vector<2x64xf32>
    %180 = arith.mulf %175, %179 : vector<2x64xf32>
    %c0_54 = arith.constant 0 : index
    %c0_55 = arith.constant 0 : index
    %181 = vector.load %arg2[%c0_54, %c0_55] : memref<64x256xf32, #tpu.memory_space<vmem>>, vector<64x256xf32>
    %cst_56 = arith.constant dense<0.000000e+00> : vector<2x256xf32>
    %182 = tpu.matmul %147, %181, %cst_56 {dimension_numbers = #tpu.dot_dimension_numbers<[1], [0], [0], [1], [0, 0, 1, 1], [], []>} : vector<2x64xf32>, vector<64x256xf32>, vector<2x256xf32> -> vector<2x256xf32>
    %183 = arith.addf %22, %182 : vector<2x256xf32>
    %184 = vector.extract_strided_slice %183 {offsets = [0, 0], sizes = [2, 64], strides = [1, 1]} : vector<2x256xf32> to vector<2x64xf32>
    %185 = arith.negf %184 : vector<2x64xf32>
    %186 = math.exp %185 : vector<2x64xf32>
    %cst_57 = arith.constant 1.000000e+00 : f32
    %187 = vector.broadcast %cst_57 : f32 to vector<2x64xf32>
    %188 = arith.addf %187, %186 : vector<2x64xf32>
    %189 = arith.divf %187, %188 : vector<2x64xf32>
    %190 = vector.extract_strided_slice %183 {offsets = [0, 64], sizes = [2, 64], strides = [1, 1]} : vector<2x256xf32> to vector<2x64xf32>
    %191 = arith.negf %190 : vector<2x64xf32>
    %192 = math.exp %191 : vector<2x64xf32>
    %cst_58 = arith.constant 1.000000e+00 : f32
    %193 = vector.broadcast %cst_58 : f32 to vector<2x64xf32>
    %194 = arith.addf %193, %192 : vector<2x64xf32>
    %195 = arith.divf %193, %194 : vector<2x64xf32>
    %196 = vector.extract_strided_slice %183 {offsets = [0, 128], sizes = [2, 64], strides = [1, 1]} : vector<2x256xf32> to vector<2x64xf32>
    %197 = math.tanh %196 : vector<2x64xf32>
    %198 = vector.extract_strided_slice %183 {offsets = [0, 192], sizes = [2, 64], strides = [1, 1]} : vector<2x256xf32> to vector<2x64xf32>
    %199 = arith.negf %198 : vector<2x64xf32>
    %200 = math.exp %199 : vector<2x64xf32>
    %cst_59 = arith.constant 1.000000e+00 : f32
    %201 = vector.broadcast %cst_59 : f32 to vector<2x64xf32>
    %202 = arith.addf %201, %200 : vector<2x64xf32>
    %203 = arith.divf %201, %202 : vector<2x64xf32>
    %204 = arith.mulf %195, %145 : vector<2x64xf32>
    %205 = arith.mulf %189, %197 : vector<2x64xf32>
    %206 = arith.addf %204, %205 : vector<2x64xf32>
    %207 = math.tanh %206 : vector<2x64xf32>
    %208 = arith.mulf %203, %207 : vector<2x64xf32>
    %c0_60 = arith.constant 0 : index
    %c0_61 = arith.constant 0 : index
    %209 = vector.load %arg4[%c0_60, %c0_61] : memref<64x256xf32, #tpu.memory_space<vmem>>, vector<64x256xf32>
    %cst_62 = arith.constant dense<0.000000e+00> : vector<2x256xf32>
    %210 = tpu.matmul %208, %209, %cst_62 {dimension_numbers = #tpu.dot_dimension_numbers<[1], [0], [0], [1], [0, 0, 1, 1], [], []>} : vector<2x64xf32>, vector<64x256xf32>, vector<2x256xf32> -> vector<2x256xf32>
    %c0_63 = arith.constant 0 : index
    %c0_64 = arith.constant 0 : index
    %211 = vector.load %arg5[%c0_63, %c0_64] : memref<64x256xf32, #tpu.memory_space<vmem>>, vector<64x256xf32>
    %cst_65 = arith.constant dense<0.000000e+00> : vector<2x256xf32>
    %212 = tpu.matmul %180, %211, %cst_65 {dimension_numbers = #tpu.dot_dimension_numbers<[1], [0], [0], [1], [0, 0, 1, 1], [], []>} : vector<2x64xf32>, vector<64x256xf32>, vector<2x256xf32> -> vector<2x256xf32>
    %213 = arith.addf %210, %212 : vector<2x256xf32>
    %c0_66 = arith.constant 0 : index
    %c0_67 = arith.constant 0 : index
    %214 = vector.load %arg6[%c0_66, %c0_67] : memref<1x256xf32, #tpu.memory_space<vmem>>, vector<1x256xf32>
    %215 = vector.broadcast %214 : vector<1x256xf32> to vector<2x256xf32>
    %216 = arith.addf %213, %215 : vector<2x256xf32>
    %217 = vector.extract_strided_slice %216 {offsets = [0, 0], sizes = [2, 64], strides = [1, 1]} : vector<2x256xf32> to vector<2x64xf32>
    %218 = arith.negf %217 : vector<2x64xf32>
    %219 = math.exp %218 : vector<2x64xf32>
    %cst_68 = arith.constant 1.000000e+00 : f32
    %220 = vector.broadcast %cst_68 : f32 to vector<2x64xf32>
    %221 = arith.addf %220, %219 : vector<2x64xf32>
    %222 = arith.divf %220, %221 : vector<2x64xf32>
    %223 = vector.extract_strided_slice %216 {offsets = [0, 64], sizes = [2, 64], strides = [1, 1]} : vector<2x256xf32> to vector<2x64xf32>
    %224 = arith.negf %223 : vector<2x64xf32>
    %225 = math.exp %224 : vector<2x64xf32>
    %cst_69 = arith.constant 1.000000e+00 : f32
    %226 = vector.broadcast %cst_69 : f32 to vector<2x64xf32>
    %227 = arith.addf %226, %225 : vector<2x64xf32>
    %228 = arith.divf %226, %227 : vector<2x64xf32>
    %229 = vector.extract_strided_slice %216 {offsets = [0, 128], sizes = [2, 64], strides = [1, 1]} : vector<2x256xf32> to vector<2x64xf32>
    %230 = math.tanh %229 : vector<2x64xf32>
    %231 = vector.extract_strided_slice %216 {offsets = [0, 192], sizes = [2, 64], strides = [1, 1]} : vector<2x256xf32> to vector<2x64xf32>
    %232 = arith.negf %231 : vector<2x64xf32>
    %233 = math.exp %232 : vector<2x64xf32>
    %cst_70 = arith.constant 1.000000e+00 : f32
    %234 = vector.broadcast %cst_70 : f32 to vector<2x64xf32>
    %235 = arith.addf %234, %233 : vector<2x64xf32>
    %236 = arith.divf %234, %235 : vector<2x64xf32>
    %237 = arith.mulf %228, %178 : vector<2x64xf32>
    %238 = arith.mulf %222, %230 : vector<2x64xf32>
    %239 = arith.addf %237, %238 : vector<2x64xf32>
    %240 = math.tanh %239 : vector<2x64xf32>
    %241 = arith.mulf %236, %240 : vector<2x64xf32>
    %c0_71 = arith.constant 0 : index
    %c0_72 = arith.constant 0 : index
    %242 = vector.load %arg2[%c0_71, %c0_72] : memref<64x256xf32, #tpu.memory_space<vmem>>, vector<64x256xf32>
    %cst_73 = arith.constant dense<0.000000e+00> : vector<2x256xf32>
    %243 = tpu.matmul %208, %242, %cst_73 {dimension_numbers = #tpu.dot_dimension_numbers<[1], [0], [0], [1], [0, 0, 1, 1], [], []>} : vector<2x64xf32>, vector<64x256xf32>, vector<2x256xf32> -> vector<2x256xf32>
    %244 = arith.addf %29, %243 : vector<2x256xf32>
    %245 = vector.extract_strided_slice %244 {offsets = [0, 0], sizes = [2, 64], strides = [1, 1]} : vector<2x256xf32> to vector<2x64xf32>
    %246 = arith.negf %245 : vector<2x64xf32>
    %247 = math.exp %246 : vector<2x64xf32>
    %cst_74 = arith.constant 1.000000e+00 : f32
    %248 = vector.broadcast %cst_74 : f32 to vector<2x64xf32>
    %249 = arith.addf %248, %247 : vector<2x64xf32>
    %250 = arith.divf %248, %249 : vector<2x64xf32>
    %251 = vector.extract_strided_slice %244 {offsets = [0, 64], sizes = [2, 64], strides = [1, 1]} : vector<2x256xf32> to vector<2x64xf32>
    %252 = arith.negf %251 : vector<2x64xf32>
    %253 = math.exp %252 : vector<2x64xf32>
    %cst_75 = arith.constant 1.000000e+00 : f32
    %254 = vector.broadcast %cst_75 : f32 to vector<2x64xf32>
    %255 = arith.addf %254, %253 : vector<2x64xf32>
    %256 = arith.divf %254, %255 : vector<2x64xf32>
    %257 = vector.extract_strided_slice %244 {offsets = [0, 128], sizes = [2, 64], strides = [1, 1]} : vector<2x256xf32> to vector<2x64xf32>
    %258 = math.tanh %257 : vector<2x64xf32>
    %259 = vector.extract_strided_slice %244 {offsets = [0, 192], sizes = [2, 64], strides = [1, 1]} : vector<2x256xf32> to vector<2x64xf32>
    %260 = arith.negf %259 : vector<2x64xf32>
    %261 = math.exp %260 : vector<2x64xf32>
    %cst_76 = arith.constant 1.000000e+00 : f32
    %262 = vector.broadcast %cst_76 : f32 to vector<2x64xf32>
    %263 = arith.addf %262, %261 : vector<2x64xf32>
    %264 = arith.divf %262, %263 : vector<2x64xf32>
    %265 = arith.mulf %256, %206 : vector<2x64xf32>
    %266 = arith.mulf %250, %258 : vector<2x64xf32>
    %267 = arith.addf %265, %266 : vector<2x64xf32>
    %268 = math.tanh %267 : vector<2x64xf32>
    %269 = arith.mulf %264, %268 : vector<2x64xf32>
    %c0_77 = arith.constant 0 : index
    %c0_78 = arith.constant 0 : index
    %270 = vector.load %arg4[%c0_77, %c0_78] : memref<64x256xf32, #tpu.memory_space<vmem>>, vector<64x256xf32>
    %cst_79 = arith.constant dense<0.000000e+00> : vector<2x256xf32>
    %271 = tpu.matmul %269, %270, %cst_79 {dimension_numbers = #tpu.dot_dimension_numbers<[1], [0], [0], [1], [0, 0, 1, 1], [], []>} : vector<2x64xf32>, vector<64x256xf32>, vector<2x256xf32> -> vector<2x256xf32>
    %c0_80 = arith.constant 0 : index
    %c0_81 = arith.constant 0 : index
    %272 = vector.load %arg5[%c0_80, %c0_81] : memref<64x256xf32, #tpu.memory_space<vmem>>, vector<64x256xf32>
    %cst_82 = arith.constant dense<0.000000e+00> : vector<2x256xf32>
    %273 = tpu.matmul %241, %272, %cst_82 {dimension_numbers = #tpu.dot_dimension_numbers<[1], [0], [0], [1], [0, 0, 1, 1], [], []>} : vector<2x64xf32>, vector<64x256xf32>, vector<2x256xf32> -> vector<2x256xf32>
    %274 = arith.addf %271, %273 : vector<2x256xf32>
    %c0_83 = arith.constant 0 : index
    %c0_84 = arith.constant 0 : index
    %275 = vector.load %arg6[%c0_83, %c0_84] : memref<1x256xf32, #tpu.memory_space<vmem>>, vector<1x256xf32>
    %276 = vector.broadcast %275 : vector<1x256xf32> to vector<2x256xf32>
    %277 = arith.addf %274, %276 : vector<2x256xf32>
    %278 = vector.extract_strided_slice %277 {offsets = [0, 0], sizes = [2, 64], strides = [1, 1]} : vector<2x256xf32> to vector<2x64xf32>
    %279 = arith.negf %278 : vector<2x64xf32>
    %280 = math.exp %279 : vector<2x64xf32>
    %cst_85 = arith.constant 1.000000e+00 : f32
    %281 = vector.broadcast %cst_85 : f32 to vector<2x64xf32>
    %282 = arith.addf %281, %280 : vector<2x64xf32>
    %283 = arith.divf %281, %282 : vector<2x64xf32>
    %284 = vector.extract_strided_slice %277 {offsets = [0, 64], sizes = [2, 64], strides = [1, 1]} : vector<2x256xf32> to vector<2x64xf32>
    %285 = arith.negf %284 : vector<2x64xf32>
    %286 = math.exp %285 : vector<2x64xf32>
    %cst_86 = arith.constant 1.000000e+00 : f32
    %287 = vector.broadcast %cst_86 : f32 to vector<2x64xf32>
    %288 = arith.addf %287, %286 : vector<2x64xf32>
    %289 = arith.divf %287, %288 : vector<2x64xf32>
    %290 = vector.extract_strided_slice %277 {offsets = [0, 128], sizes = [2, 64], strides = [1, 1]} : vector<2x256xf32> to vector<2x64xf32>
    %291 = math.tanh %290 : vector<2x64xf32>
    %292 = vector.extract_strided_slice %277 {offsets = [0, 192], sizes = [2, 64], strides = [1, 1]} : vector<2x256xf32> to vector<2x64xf32>
    %293 = arith.negf %292 : vector<2x64xf32>
    %294 = math.exp %293 : vector<2x64xf32>
    %cst_87 = arith.constant 1.000000e+00 : f32
    %295 = vector.broadcast %cst_87 : f32 to vector<2x64xf32>
    %296 = arith.addf %295, %294 : vector<2x64xf32>
    %297 = arith.divf %295, %296 : vector<2x64xf32>
    %298 = arith.mulf %289, %239 : vector<2x64xf32>
    %299 = arith.mulf %283, %291 : vector<2x64xf32>
    %300 = arith.addf %298, %299 : vector<2x64xf32>
    %301 = math.tanh %300 : vector<2x64xf32>
    %302 = arith.mulf %297, %301 : vector<2x64xf32>
    %c0_88 = arith.constant 0 : index
    %c0_89 = arith.constant 0 : index
    %303 = vector.load %arg2[%c0_88, %c0_89] : memref<64x256xf32, #tpu.memory_space<vmem>>, vector<64x256xf32>
    %cst_90 = arith.constant dense<0.000000e+00> : vector<2x256xf32>
    %304 = tpu.matmul %269, %303, %cst_90 {dimension_numbers = #tpu.dot_dimension_numbers<[1], [0], [0], [1], [0, 0, 1, 1], [], []>} : vector<2x64xf32>, vector<64x256xf32>, vector<2x256xf32> -> vector<2x256xf32>
    %305 = arith.addf %36, %304 : vector<2x256xf32>
    %306 = vector.extract_strided_slice %305 {offsets = [0, 0], sizes = [2, 64], strides = [1, 1]} : vector<2x256xf32> to vector<2x64xf32>
    %307 = arith.negf %306 : vector<2x64xf32>
    %308 = math.exp %307 : vector<2x64xf32>
    %cst_91 = arith.constant 1.000000e+00 : f32
    %309 = vector.broadcast %cst_91 : f32 to vector<2x64xf32>
    %310 = arith.addf %309, %308 : vector<2x64xf32>
    %311 = arith.divf %309, %310 : vector<2x64xf32>
    %312 = vector.extract_strided_slice %305 {offsets = [0, 64], sizes = [2, 64], strides = [1, 1]} : vector<2x256xf32> to vector<2x64xf32>
    %313 = arith.negf %312 : vector<2x64xf32>
    %314 = math.exp %313 : vector<2x64xf32>
    %cst_92 = arith.constant 1.000000e+00 : f32
    %315 = vector.broadcast %cst_92 : f32 to vector<2x64xf32>
    %316 = arith.addf %315, %314 : vector<2x64xf32>
    %317 = arith.divf %315, %316 : vector<2x64xf32>
    %318 = vector.extract_strided_slice %305 {offsets = [0, 128], sizes = [2, 64], strides = [1, 1]} : vector<2x256xf32> to vector<2x64xf32>
    %319 = math.tanh %318 : vector<2x64xf32>
    %320 = vector.extract_strided_slice %305 {offsets = [0, 192], sizes = [2, 64], strides = [1, 1]} : vector<2x256xf32> to vector<2x64xf32>
    %321 = arith.negf %320 : vector<2x64xf32>
    %322 = math.exp %321 : vector<2x64xf32>
    %cst_93 = arith.constant 1.000000e+00 : f32
    %323 = vector.broadcast %cst_93 : f32 to vector<2x64xf32>
    %324 = arith.addf %323, %322 : vector<2x64xf32>
    %325 = arith.divf %323, %324 : vector<2x64xf32>
    %326 = arith.mulf %317, %267 : vector<2x64xf32>
    %327 = arith.mulf %311, %319 : vector<2x64xf32>
    %328 = arith.addf %326, %327 : vector<2x64xf32>
    %329 = math.tanh %328 : vector<2x64xf32>
    %330 = arith.mulf %325, %329 : vector<2x64xf32>
    %c0_94 = arith.constant 0 : index
    %c0_95 = arith.constant 0 : index
    %331 = vector.load %arg4[%c0_94, %c0_95] : memref<64x256xf32, #tpu.memory_space<vmem>>, vector<64x256xf32>
    %cst_96 = arith.constant dense<0.000000e+00> : vector<2x256xf32>
    %332 = tpu.matmul %330, %331, %cst_96 {dimension_numbers = #tpu.dot_dimension_numbers<[1], [0], [0], [1], [0, 0, 1, 1], [], []>} : vector<2x64xf32>, vector<64x256xf32>, vector<2x256xf32> -> vector<2x256xf32>
    %c0_97 = arith.constant 0 : index
    %c0_98 = arith.constant 0 : index
    %333 = vector.load %arg5[%c0_97, %c0_98] : memref<64x256xf32, #tpu.memory_space<vmem>>, vector<64x256xf32>
    %cst_99 = arith.constant dense<0.000000e+00> : vector<2x256xf32>
    %334 = tpu.matmul %302, %333, %cst_99 {dimension_numbers = #tpu.dot_dimension_numbers<[1], [0], [0], [1], [0, 0, 1, 1], [], []>} : vector<2x64xf32>, vector<64x256xf32>, vector<2x256xf32> -> vector<2x256xf32>
    %335 = arith.addf %332, %334 : vector<2x256xf32>
    %c0_100 = arith.constant 0 : index
    %c0_101 = arith.constant 0 : index
    %336 = vector.load %arg6[%c0_100, %c0_101] : memref<1x256xf32, #tpu.memory_space<vmem>>, vector<1x256xf32>
    %337 = vector.broadcast %336 : vector<1x256xf32> to vector<2x256xf32>
    %338 = arith.addf %335, %337 : vector<2x256xf32>
    %339 = vector.extract_strided_slice %338 {offsets = [0, 0], sizes = [2, 64], strides = [1, 1]} : vector<2x256xf32> to vector<2x64xf32>
    %340 = arith.negf %339 : vector<2x64xf32>
    %341 = math.exp %340 : vector<2x64xf32>
    %cst_102 = arith.constant 1.000000e+00 : f32
    %342 = vector.broadcast %cst_102 : f32 to vector<2x64xf32>
    %343 = arith.addf %342, %341 : vector<2x64xf32>
    %344 = arith.divf %342, %343 : vector<2x64xf32>
    %345 = vector.extract_strided_slice %338 {offsets = [0, 64], sizes = [2, 64], strides = [1, 1]} : vector<2x256xf32> to vector<2x64xf32>
    %346 = arith.negf %345 : vector<2x64xf32>
    %347 = math.exp %346 : vector<2x64xf32>
    %cst_103 = arith.constant 1.000000e+00 : f32
    %348 = vector.broadcast %cst_103 : f32 to vector<2x64xf32>
    %349 = arith.addf %348, %347 : vector<2x64xf32>
    %350 = arith.divf %348, %349 : vector<2x64xf32>
    %351 = vector.extract_strided_slice %338 {offsets = [0, 128], sizes = [2, 64], strides = [1, 1]} : vector<2x256xf32> to vector<2x64xf32>
    %352 = math.tanh %351 : vector<2x64xf32>
    %353 = vector.extract_strided_slice %338 {offsets = [0, 192], sizes = [2, 64], strides = [1, 1]} : vector<2x256xf32> to vector<2x64xf32>
    %354 = arith.negf %353 : vector<2x64xf32>
    %355 = math.exp %354 : vector<2x64xf32>
    %cst_104 = arith.constant 1.000000e+00 : f32
    %356 = vector.broadcast %cst_104 : f32 to vector<2x64xf32>
    %357 = arith.addf %356, %355 : vector<2x64xf32>
    %358 = arith.divf %356, %357 : vector<2x64xf32>
    %359 = arith.mulf %350, %300 : vector<2x64xf32>
    %360 = arith.mulf %344, %352 : vector<2x64xf32>
    %361 = arith.addf %359, %360 : vector<2x64xf32>
    %362 = math.tanh %361 : vector<2x64xf32>
    %363 = arith.mulf %358, %362 : vector<2x64xf32>
    %c0_105 = arith.constant 0 : index
    %c0_106 = arith.constant 0 : index
    %364 = vector.load %arg2[%c0_105, %c0_106] : memref<64x256xf32, #tpu.memory_space<vmem>>, vector<64x256xf32>
    %cst_107 = arith.constant dense<0.000000e+00> : vector<2x256xf32>
    %365 = tpu.matmul %330, %364, %cst_107 {dimension_numbers = #tpu.dot_dimension_numbers<[1], [0], [0], [1], [0, 0, 1, 1], [], []>} : vector<2x64xf32>, vector<64x256xf32>, vector<2x256xf32> -> vector<2x256xf32>
    %366 = arith.addf %43, %365 : vector<2x256xf32>
    %367 = vector.extract_strided_slice %366 {offsets = [0, 0], sizes = [2, 64], strides = [1, 1]} : vector<2x256xf32> to vector<2x64xf32>
    %368 = arith.negf %367 : vector<2x64xf32>
    %369 = math.exp %368 : vector<2x64xf32>
    %cst_108 = arith.constant 1.000000e+00 : f32
    %370 = vector.broadcast %cst_108 : f32 to vector<2x64xf32>
    %371 = arith.addf %370, %369 : vector<2x64xf32>
    %372 = arith.divf %370, %371 : vector<2x64xf32>
    %373 = vector.extract_strided_slice %366 {offsets = [0, 64], sizes = [2, 64], strides = [1, 1]} : vector<2x256xf32> to vector<2x64xf32>
    %374 = arith.negf %373 : vector<2x64xf32>
    %375 = math.exp %374 : vector<2x64xf32>
    %cst_109 = arith.constant 1.000000e+00 : f32
    %376 = vector.broadcast %cst_109 : f32 to vector<2x64xf32>
    %377 = arith.addf %376, %375 : vector<2x64xf32>
    %378 = arith.divf %376, %377 : vector<2x64xf32>
    %379 = vector.extract_strided_slice %366 {offsets = [0, 128], sizes = [2, 64], strides = [1, 1]} : vector<2x256xf32> to vector<2x64xf32>
    %380 = math.tanh %379 : vector<2x64xf32>
    %381 = vector.extract_strided_slice %366 {offsets = [0, 192], sizes = [2, 64], strides = [1, 1]} : vector<2x256xf32> to vector<2x64xf32>
    %382 = arith.negf %381 : vector<2x64xf32>
    %383 = math.exp %382 : vector<2x64xf32>
    %cst_110 = arith.constant 1.000000e+00 : f32
    %384 = vector.broadcast %cst_110 : f32 to vector<2x64xf32>
    %385 = arith.addf %384, %383 : vector<2x64xf32>
    %386 = arith.divf %384, %385 : vector<2x64xf32>
    %387 = arith.mulf %378, %328 : vector<2x64xf32>
    %388 = arith.mulf %372, %380 : vector<2x64xf32>
    %389 = arith.addf %387, %388 : vector<2x64xf32>
    %390 = math.tanh %389 : vector<2x64xf32>
    %391 = arith.mulf %386, %390 : vector<2x64xf32>
    %c0_111 = arith.constant 0 : index
    %c0_112 = arith.constant 0 : index
    %392 = vector.load %arg4[%c0_111, %c0_112] : memref<64x256xf32, #tpu.memory_space<vmem>>, vector<64x256xf32>
    %cst_113 = arith.constant dense<0.000000e+00> : vector<2x256xf32>
    %393 = tpu.matmul %391, %392, %cst_113 {dimension_numbers = #tpu.dot_dimension_numbers<[1], [0], [0], [1], [0, 0, 1, 1], [], []>} : vector<2x64xf32>, vector<64x256xf32>, vector<2x256xf32> -> vector<2x256xf32>
    %c0_114 = arith.constant 0 : index
    %c0_115 = arith.constant 0 : index
    %394 = vector.load %arg5[%c0_114, %c0_115] : memref<64x256xf32, #tpu.memory_space<vmem>>, vector<64x256xf32>
    %cst_116 = arith.constant dense<0.000000e+00> : vector<2x256xf32>
    %395 = tpu.matmul %363, %394, %cst_116 {dimension_numbers = #tpu.dot_dimension_numbers<[1], [0], [0], [1], [0, 0, 1, 1], [], []>} : vector<2x64xf32>, vector<64x256xf32>, vector<2x256xf32> -> vector<2x256xf32>
    %396 = arith.addf %393, %395 : vector<2x256xf32>
    %c0_117 = arith.constant 0 : index
    %c0_118 = arith.constant 0 : index
    %397 = vector.load %arg6[%c0_117, %c0_118] : memref<1x256xf32, #tpu.memory_space<vmem>>, vector<1x256xf32>
    %398 = vector.broadcast %397 : vector<1x256xf32> to vector<2x256xf32>
    %399 = arith.addf %396, %398 : vector<2x256xf32>
    %400 = vector.extract_strided_slice %399 {offsets = [0, 0], sizes = [2, 64], strides = [1, 1]} : vector<2x256xf32> to vector<2x64xf32>
    %401 = arith.negf %400 : vector<2x64xf32>
    %402 = math.exp %401 : vector<2x64xf32>
    %cst_119 = arith.constant 1.000000e+00 : f32
    %403 = vector.broadcast %cst_119 : f32 to vector<2x64xf32>
    %404 = arith.addf %403, %402 : vector<2x64xf32>
    %405 = arith.divf %403, %404 : vector<2x64xf32>
    %406 = vector.extract_strided_slice %399 {offsets = [0, 64], sizes = [2, 64], strides = [1, 1]} : vector<2x256xf32> to vector<2x64xf32>
    %407 = arith.negf %406 : vector<2x64xf32>
    %408 = math.exp %407 : vector<2x64xf32>
    %cst_120 = arith.constant 1.000000e+00 : f32
    %409 = vector.broadcast %cst_120 : f32 to vector<2x64xf32>
    %410 = arith.addf %409, %408 : vector<2x64xf32>
    %411 = arith.divf %409, %410 : vector<2x64xf32>
    %412 = vector.extract_strided_slice %399 {offsets = [0, 128], sizes = [2, 64], strides = [1, 1]} : vector<2x256xf32> to vector<2x64xf32>
    %413 = math.tanh %412 : vector<2x64xf32>
    %414 = vector.extract_strided_slice %399 {offsets = [0, 192], sizes = [2, 64], strides = [1, 1]} : vector<2x256xf32> to vector<2x64xf32>
    %415 = arith.negf %414 : vector<2x64xf32>
    %416 = math.exp %415 : vector<2x64xf32>
    %cst_121 = arith.constant 1.000000e+00 : f32
    %417 = vector.broadcast %cst_121 : f32 to vector<2x64xf32>
    %418 = arith.addf %417, %416 : vector<2x64xf32>
    %419 = arith.divf %417, %418 : vector<2x64xf32>
    %420 = arith.mulf %411, %361 : vector<2x64xf32>
    %421 = arith.mulf %405, %413 : vector<2x64xf32>
    %422 = arith.addf %420, %421 : vector<2x64xf32>
    %423 = math.tanh %422 : vector<2x64xf32>
    %424 = arith.mulf %419, %423 : vector<2x64xf32>
    %c0_122 = arith.constant 0 : index
    %c0_123 = arith.constant 0 : index
    %425 = vector.load %arg2[%c0_122, %c0_123] : memref<64x256xf32, #tpu.memory_space<vmem>>, vector<64x256xf32>
    %cst_124 = arith.constant dense<0.000000e+00> : vector<2x256xf32>
    %426 = tpu.matmul %391, %425, %cst_124 {dimension_numbers = #tpu.dot_dimension_numbers<[1], [0], [0], [1], [0, 0, 1, 1], [], []>} : vector<2x64xf32>, vector<64x256xf32>, vector<2x256xf32> -> vector<2x256xf32>
    %427 = arith.addf %50, %426 : vector<2x256xf32>
    %428 = vector.extract_strided_slice %427 {offsets = [0, 0], sizes = [2, 64], strides = [1, 1]} : vector<2x256xf32> to vector<2x64xf32>
    %429 = arith.negf %428 : vector<2x64xf32>
    %430 = math.exp %429 : vector<2x64xf32>
    %cst_125 = arith.constant 1.000000e+00 : f32
    %431 = vector.broadcast %cst_125 : f32 to vector<2x64xf32>
    %432 = arith.addf %431, %430 : vector<2x64xf32>
    %433 = arith.divf %431, %432 : vector<2x64xf32>
    %434 = vector.extract_strided_slice %427 {offsets = [0, 64], sizes = [2, 64], strides = [1, 1]} : vector<2x256xf32> to vector<2x64xf32>
    %435 = arith.negf %434 : vector<2x64xf32>
    %436 = math.exp %435 : vector<2x64xf32>
    %cst_126 = arith.constant 1.000000e+00 : f32
    %437 = vector.broadcast %cst_126 : f32 to vector<2x64xf32>
    %438 = arith.addf %437, %436 : vector<2x64xf32>
    %439 = arith.divf %437, %438 : vector<2x64xf32>
    %440 = vector.extract_strided_slice %427 {offsets = [0, 128], sizes = [2, 64], strides = [1, 1]} : vector<2x256xf32> to vector<2x64xf32>
    %441 = math.tanh %440 : vector<2x64xf32>
    %442 = vector.extract_strided_slice %427 {offsets = [0, 192], sizes = [2, 64], strides = [1, 1]} : vector<2x256xf32> to vector<2x64xf32>
    %443 = arith.negf %442 : vector<2x64xf32>
    %444 = math.exp %443 : vector<2x64xf32>
    %cst_127 = arith.constant 1.000000e+00 : f32
    %445 = vector.broadcast %cst_127 : f32 to vector<2x64xf32>
    %446 = arith.addf %445, %444 : vector<2x64xf32>
    %447 = arith.divf %445, %446 : vector<2x64xf32>
    %448 = arith.mulf %439, %389 : vector<2x64xf32>
    %449 = arith.mulf %433, %441 : vector<2x64xf32>
    %450 = arith.addf %448, %449 : vector<2x64xf32>
    %451 = math.tanh %450 : vector<2x64xf32>
    %452 = arith.mulf %447, %451 : vector<2x64xf32>
    %c0_128 = arith.constant 0 : index
    %c0_129 = arith.constant 0 : index
    %453 = vector.load %arg4[%c0_128, %c0_129] : memref<64x256xf32, #tpu.memory_space<vmem>>, vector<64x256xf32>
    %cst_130 = arith.constant dense<0.000000e+00> : vector<2x256xf32>
    %454 = tpu.matmul %452, %453, %cst_130 {dimension_numbers = #tpu.dot_dimension_numbers<[1], [0], [0], [1], [0, 0, 1, 1], [], []>} : vector<2x64xf32>, vector<64x256xf32>, vector<2x256xf32> -> vector<2x256xf32>
    %c0_131 = arith.constant 0 : index
    %c0_132 = arith.constant 0 : index
    %455 = vector.load %arg5[%c0_131, %c0_132] : memref<64x256xf32, #tpu.memory_space<vmem>>, vector<64x256xf32>
    %cst_133 = arith.constant dense<0.000000e+00> : vector<2x256xf32>
    %456 = tpu.matmul %424, %455, %cst_133 {dimension_numbers = #tpu.dot_dimension_numbers<[1], [0], [0], [1], [0, 0, 1, 1], [], []>} : vector<2x64xf32>, vector<64x256xf32>, vector<2x256xf32> -> vector<2x256xf32>
    %457 = arith.addf %454, %456 : vector<2x256xf32>
    %c0_134 = arith.constant 0 : index
    %c0_135 = arith.constant 0 : index
    %458 = vector.load %arg6[%c0_134, %c0_135] : memref<1x256xf32, #tpu.memory_space<vmem>>, vector<1x256xf32>
    %459 = vector.broadcast %458 : vector<1x256xf32> to vector<2x256xf32>
    %460 = arith.addf %457, %459 : vector<2x256xf32>
    %461 = vector.extract_strided_slice %460 {offsets = [0, 0], sizes = [2, 64], strides = [1, 1]} : vector<2x256xf32> to vector<2x64xf32>
    %462 = arith.negf %461 : vector<2x64xf32>
    %463 = math.exp %462 : vector<2x64xf32>
    %cst_136 = arith.constant 1.000000e+00 : f32
    %464 = vector.broadcast %cst_136 : f32 to vector<2x64xf32>
    %465 = arith.addf %464, %463 : vector<2x64xf32>
    %466 = arith.divf %464, %465 : vector<2x64xf32>
    %467 = vector.extract_strided_slice %460 {offsets = [0, 64], sizes = [2, 64], strides = [1, 1]} : vector<2x256xf32> to vector<2x64xf32>
    %468 = arith.negf %467 : vector<2x64xf32>
    %469 = math.exp %468 : vector<2x64xf32>
    %cst_137 = arith.constant 1.000000e+00 : f32
    %470 = vector.broadcast %cst_137 : f32 to vector<2x64xf32>
    %471 = arith.addf %470, %469 : vector<2x64xf32>
    %472 = arith.divf %470, %471 : vector<2x64xf32>
    %473 = vector.extract_strided_slice %460 {offsets = [0, 128], sizes = [2, 64], strides = [1, 1]} : vector<2x256xf32> to vector<2x64xf32>
    %474 = math.tanh %473 : vector<2x64xf32>
    %475 = vector.extract_strided_slice %460 {offsets = [0, 192], sizes = [2, 64], strides = [1, 1]} : vector<2x256xf32> to vector<2x64xf32>
    %476 = arith.negf %475 : vector<2x64xf32>
    %477 = math.exp %476 : vector<2x64xf32>
    %cst_138 = arith.constant 1.000000e+00 : f32
    %478 = vector.broadcast %cst_138 : f32 to vector<2x64xf32>
    %479 = arith.addf %478, %477 : vector<2x64xf32>
    %480 = arith.divf %478, %479 : vector<2x64xf32>
    %481 = arith.mulf %472, %422 : vector<2x64xf32>
    %482 = arith.mulf %466, %474 : vector<2x64xf32>
    %483 = arith.addf %481, %482 : vector<2x64xf32>
    %484 = math.tanh %483 : vector<2x64xf32>
    %485 = arith.mulf %480, %484 : vector<2x64xf32>
    %c0_139 = arith.constant 0 : index
    %c0_140 = arith.constant 0 : index
    %486 = vector.load %arg2[%c0_139, %c0_140] : memref<64x256xf32, #tpu.memory_space<vmem>>, vector<64x256xf32>
    %cst_141 = arith.constant dense<0.000000e+00> : vector<2x256xf32>
    %487 = tpu.matmul %452, %486, %cst_141 {dimension_numbers = #tpu.dot_dimension_numbers<[1], [0], [0], [1], [0, 0, 1, 1], [], []>} : vector<2x64xf32>, vector<64x256xf32>, vector<2x256xf32> -> vector<2x256xf32>
    %488 = arith.addf %57, %487 : vector<2x256xf32>
    %489 = vector.extract_strided_slice %488 {offsets = [0, 0], sizes = [2, 64], strides = [1, 1]} : vector<2x256xf32> to vector<2x64xf32>
    %490 = arith.negf %489 : vector<2x64xf32>
    %491 = math.exp %490 : vector<2x64xf32>
    %cst_142 = arith.constant 1.000000e+00 : f32
    %492 = vector.broadcast %cst_142 : f32 to vector<2x64xf32>
    %493 = arith.addf %492, %491 : vector<2x64xf32>
    %494 = arith.divf %492, %493 : vector<2x64xf32>
    %495 = vector.extract_strided_slice %488 {offsets = [0, 64], sizes = [2, 64], strides = [1, 1]} : vector<2x256xf32> to vector<2x64xf32>
    %496 = arith.negf %495 : vector<2x64xf32>
    %497 = math.exp %496 : vector<2x64xf32>
    %cst_143 = arith.constant 1.000000e+00 : f32
    %498 = vector.broadcast %cst_143 : f32 to vector<2x64xf32>
    %499 = arith.addf %498, %497 : vector<2x64xf32>
    %500 = arith.divf %498, %499 : vector<2x64xf32>
    %501 = vector.extract_strided_slice %488 {offsets = [0, 128], sizes = [2, 64], strides = [1, 1]} : vector<2x256xf32> to vector<2x64xf32>
    %502 = math.tanh %501 : vector<2x64xf32>
    %503 = vector.extract_strided_slice %488 {offsets = [0, 192], sizes = [2, 64], strides = [1, 1]} : vector<2x256xf32> to vector<2x64xf32>
    %504 = arith.negf %503 : vector<2x64xf32>
    %505 = math.exp %504 : vector<2x64xf32>
    %cst_144 = arith.constant 1.000000e+00 : f32
    %506 = vector.broadcast %cst_144 : f32 to vector<2x64xf32>
    %507 = arith.addf %506, %505 : vector<2x64xf32>
    %508 = arith.divf %506, %507 : vector<2x64xf32>
    %509 = arith.mulf %500, %450 : vector<2x64xf32>
    %510 = arith.mulf %494, %502 : vector<2x64xf32>
    %511 = arith.addf %509, %510 : vector<2x64xf32>
    %512 = math.tanh %511 : vector<2x64xf32>
    %513 = arith.mulf %508, %512 : vector<2x64xf32>
    %c0_145 = arith.constant 0 : index
    %c0_146 = arith.constant 0 : index
    %514 = vector.load %arg4[%c0_145, %c0_146] : memref<64x256xf32, #tpu.memory_space<vmem>>, vector<64x256xf32>
    %cst_147 = arith.constant dense<0.000000e+00> : vector<2x256xf32>
    %515 = tpu.matmul %513, %514, %cst_147 {dimension_numbers = #tpu.dot_dimension_numbers<[1], [0], [0], [1], [0, 0, 1, 1], [], []>} : vector<2x64xf32>, vector<64x256xf32>, vector<2x256xf32> -> vector<2x256xf32>
    %c0_148 = arith.constant 0 : index
    %c0_149 = arith.constant 0 : index
    %516 = vector.load %arg5[%c0_148, %c0_149] : memref<64x256xf32, #tpu.memory_space<vmem>>, vector<64x256xf32>
    %cst_150 = arith.constant dense<0.000000e+00> : vector<2x256xf32>
    %517 = tpu.matmul %485, %516, %cst_150 {dimension_numbers = #tpu.dot_dimension_numbers<[1], [0], [0], [1], [0, 0, 1, 1], [], []>} : vector<2x64xf32>, vector<64x256xf32>, vector<2x256xf32> -> vector<2x256xf32>
    %518 = arith.addf %515, %517 : vector<2x256xf32>
    %c0_151 = arith.constant 0 : index
    %c0_152 = arith.constant 0 : index
    %519 = vector.load %arg6[%c0_151, %c0_152] : memref<1x256xf32, #tpu.memory_space<vmem>>, vector<1x256xf32>
    %520 = vector.broadcast %519 : vector<1x256xf32> to vector<2x256xf32>
    %521 = arith.addf %518, %520 : vector<2x256xf32>
    %522 = vector.extract_strided_slice %521 {offsets = [0, 0], sizes = [2, 64], strides = [1, 1]} : vector<2x256xf32> to vector<2x64xf32>
    %523 = arith.negf %522 : vector<2x64xf32>
    %524 = math.exp %523 : vector<2x64xf32>
    %cst_153 = arith.constant 1.000000e+00 : f32
    %525 = vector.broadcast %cst_153 : f32 to vector<2x64xf32>
    %526 = arith.addf %525, %524 : vector<2x64xf32>
    %527 = arith.divf %525, %526 : vector<2x64xf32>
    %528 = vector.extract_strided_slice %521 {offsets = [0, 64], sizes = [2, 64], strides = [1, 1]} : vector<2x256xf32> to vector<2x64xf32>
    %529 = arith.negf %528 : vector<2x64xf32>
    %530 = math.exp %529 : vector<2x64xf32>
    %cst_154 = arith.constant 1.000000e+00 : f32
    %531 = vector.broadcast %cst_154 : f32 to vector<2x64xf32>
    %532 = arith.addf %531, %530 : vector<2x64xf32>
    %533 = arith.divf %531, %532 : vector<2x64xf32>
    %534 = vector.extract_strided_slice %521 {offsets = [0, 128], sizes = [2, 64], strides = [1, 1]} : vector<2x256xf32> to vector<2x64xf32>
    %535 = math.tanh %534 : vector<2x64xf32>
    %536 = vector.extract_strided_slice %521 {offsets = [0, 192], sizes = [2, 64], strides = [1, 1]} : vector<2x256xf32> to vector<2x64xf32>
    %537 = arith.negf %536 : vector<2x64xf32>
    %538 = math.exp %537 : vector<2x64xf32>
    %cst_155 = arith.constant 1.000000e+00 : f32
    %539 = vector.broadcast %cst_155 : f32 to vector<2x64xf32>
    %540 = arith.addf %539, %538 : vector<2x64xf32>
    %541 = arith.divf %539, %540 : vector<2x64xf32>
    %542 = arith.mulf %533, %483 : vector<2x64xf32>
    %543 = arith.mulf %527, %535 : vector<2x64xf32>
    %544 = arith.addf %542, %543 : vector<2x64xf32>
    %545 = math.tanh %544 : vector<2x64xf32>
    %546 = arith.mulf %541, %545 : vector<2x64xf32>
    %c0_156 = arith.constant 0 : index
    %c0_157 = arith.constant 0 : index
    %547 = vector.load %arg7[%c0_156, %c0_157] : memref<1x64xf32, #tpu.memory_space<vmem>>, vector<1x64xf32>
    %548 = vector.broadcast %547 : vector<1x64xf32> to vector<2x64xf32>
    %549 = arith.mulf %546, %548 : vector<2x64xf32>
    %cst_158 = arith.constant dense<0.000000e+00> : vector<2xf32>
    %550 = vector.multi_reduction <add>, %549, %cst_158 [1] : vector<2x64xf32> to vector<2xf32>
    %551 = vector.shape_cast %550 : vector<2xf32> to vector<2x1xf32>
    %c0_159 = arith.constant 0 : index
    %c0_160 = arith.constant 0 : index
    %552 = memref.load %arg8[%c0_159, %c0_160] : memref<1x1xf32, #tpu.memory_space<smem>>
    %553 = vector.broadcast %552 : f32 to vector<2x1xf32>
    %554 = arith.addf %551, %553 : vector<2x1xf32>
    %c0_161 = arith.constant 0 : index
    %c0_162 = arith.constant 0 : index
    %555 = vector.load %arg9[%c0_161, %c0_162] : memref<2x1xf32, #tpu.memory_space<vmem>>, vector<2x1xf32>
    tpu.vector_store %arg9[%c0_161, %c0_162], %554 {strides = array<i32>} : memref<2x1xf32, #tpu.memory_space<vmem>>, vector<2x1xf32>,
    return
  }
}

</mosaic_0001>

<llo_original>
// kernel: tpu_custom_call.1
$region0: #{tpu_custom_call.1}
  #allocation0 [shape = 'u32[]', space=smem, size = 0x4, offset = 0x4, fixed_abs, tag = 'smem constant byte address 0x4 - core index']
  #allocation1 [shape = 'u32[144,128]{1,0:T(1,128)}', space=vmem, size = 0x12000, scoped, tag = 'internal scratch']
  #allocation2 [shape = 'f32[1,1]{1,0:T(1,128)S(6)}', space=smem, size = 0x200, scoped, tag = 'scoped memory for tpu_custom_call.1']
  %s0 = inlined_call_operand.vmem [shape: f32[8,2,1], index: 0, kind: input, shape index: {}]
  %s1 = inlined_call_operand.vmem [shape: f32[1,256], index: 1, kind: input, shape index: {}]
  %s2 = inlined_call_operand.hbm [shape: f32[64,256], index: 2, kind: input, shape index: {}]
  %s3 = inlined_call_operand.vmem [shape: f32[1,256], index: 3, kind: input, shape index: {}]
  %s4 = inlined_call_operand.hbm [shape: f32[64,256], index: 4, kind: input, shape index: {}]
  %s5 = inlined_call_operand.hbm [shape: f32[64,256], index: 5, kind: input, shape index: {}]
  %s6 = inlined_call_operand.vmem [shape: f32[1,256], index: 6, kind: input, shape index: {}]
  %s7 = inlined_call_operand.vmem [shape: f32[1,64], index: 7, kind: input, shape index: {}]
  %s8 = inlined_call_operand.<no memory space> [shape: f32[1,1], index: 8, kind: input, shape index: {}]
  %s9 = inlined_call_operand.vmem [shape: f32[2,1], index: 9, kind: output, shape index: {}]
  %s10 = sld [smem:[#allocation0]]
  $region58: #{tpu_custom_call.1} parent=0
    _
  %s12 = ssub.s32 1, %s10
  %s13 = scalar_select 0, %s12, %s10
  %14 = sst [smem:[#allocation2]] %s8
  $region1: #{tpu_custom_call.1} parent=0
    #allocation3 [shape = 'u8[65536]{0}', space=vmem, size = 0x10000, scoped, tag = 'input window, operand 2, single buffered']
    #allocation4 [shape = 's32[1]{0}', space=sflag, size = 0x4, scoped, tag = 'scoped memory for tpu_custom_call.1']
    #allocation5 [shape = 'u8[65536]{0}', space=vmem, size = 0x10000, scoped, tag = 'input window, operand 4, single buffered']
    #allocation6 [shape = 's32[1]{0}', space=sflag, size = 0x4, scoped, tag = 'scoped memory for tpu_custom_call.1']
    #allocation7 [shape = 'u8[65536]{0}', space=vmem, size = 0x10000, scoped, tag = 'input window, operand 5, single buffered']
    %15 = vsyncpa [#allocation4], 0
    %16 = vsyncpa [#allocation6], 0
    // Predicated region
    $region2: #{tpu_custom_call.1} parent=1 // pred_check
      _
    $region3: #{tpu_custom_call.1} parent=1 // pred_check_branch
      %18 = sbr.rel (0) target = $region5
    $region4: #{tpu_custom_call.1} parent=1 // pred_region
      _
    $region5: #{tpu_custom_call.1} parent=1 // pred_fallthru
      _
    // Predicated region
    $region6: #{tpu_custom_call.1} parent=1 // pred_check
      _
    $region7: #{tpu_custom_call.1} parent=1 // pred_check_branch
      %20 = sbr.rel (0) target = $region9
    $region8: #{tpu_custom_call.1} parent=1 // pred_region
      _
    $region9: #{tpu_custom_call.1} parent=1 // pred_fallthru
      _
    // Predicated region
    $region10: #{tpu_custom_call.1} parent=1 // pred_check
      _
    $region11: #{tpu_custom_call.1} parent=1 // pred_check_branch
      %22 = sbr.rel (0) target = $region13
    $region12: #{tpu_custom_call.1} parent=1 // pred_region
      %s24 = ssub.s32 2048, 2048
      %25 = vsyncadd [#allocation4], %s24
      %s26 = sshll.u32 [#allocation3], 4
      %s27 = int_to_ptr.vmem [resolvable:$true] %s26
      %32 = dma.hbm_to_vmem [thread:$0]  %s2, 2048, %s27, [#allocation4], 256, 256, 16
    $region13: #{tpu_custom_call.1} parent=1 // pred_fallthru
      _
    // Predicated region
    $region14: #{tpu_custom_call.1} parent=1 // pred_check
      _
    $region15: #{tpu_custom_call.1} parent=1 // pred_check_branch
      %34 = sbr.rel (0) target = $region17
    $region16: #{tpu_custom_call.1} parent=1 // pred_region
      _
    $region17: #{tpu_custom_call.1} parent=1 // pred_fallthru
      _
    // Predicated region
    $region18: #{tpu_custom_call.1} parent=1 // pred_check
      _
    $region19: #{tpu_custom_call.1} parent=1 // pred_check_branch
      %36 = sbr.rel (0) target = $region21
    $region20: #{tpu_custom_call.1} parent=1 // pred_region
      %s38 = ssub.s32 2048, 2048
      %39 = vsyncadd [#allocation6], %s38
      %s40 = sshll.u32 [#allocation5], 4
      %s41 = int_to_ptr.vmem [resolvable:$true] %s40
      %46 = dma.hbm_to_vmem [thread:$0]  %s4, 2048, %s41, [#allocation6], 256, 256, 16
    $region21: #{tpu_custom_call.1} parent=1 // pred_fallthru
      _
    // Predicated region
    $region22: #{tpu_custom_call.1} parent=1 // pred_check
      _
    $region23: #{tpu_custom_call.1} parent=1 // pred_check_branch
      %48 = sbr.rel (0) target = $region25
    $region24: #{tpu_custom_call.1} parent=1 // pred_region
      %s50 = ssub.s32 2048, 2048
      %51 = vsyncadd [#allocation6], %s50
      %s52 = sshll.u32 [#allocation7], 4
      %s53 = int_to_ptr.vmem [resolvable:$true] %s52
      %58 = dma.hbm_to_vmem [thread:$0]  %s5, 2048, %s53, [#allocation6], 256, 256, 16
    $region25: #{tpu_custom_call.1} parent=1 // pred_fallthru
      _
    // Predicated region
    $region26: #{tpu_custom_call.1} parent=1 // pred_check
      _
    $region27: #{tpu_custom_call.1} parent=1 // pred_check_branch
      %60 = sbr.rel (0) target = $region29
    $region28: #{tpu_custom_call.1} parent=1 // pred_region
      _
    $region29: #{tpu_custom_call.1} parent=1 // pred_fallthru
      _
    // Predicated region
    $region30: #{tpu_custom_call.1} parent=1 // pred_check
      _
    $region31: #{tpu_custom_call.1} parent=1 // pred_check_branch
      %62 = sbr.rel (0) target = $region33
    $region32: #{tpu_custom_call.1} parent=1 // pred_region
      _
    $region33: #{tpu_custom_call.1} parent=1 // pred_fallthru
      _
    // Predicated region
    $region34: #{tpu_custom_call.1} parent=1 // pred_check
      _
    $region35: #{tpu_custom_call.1} parent=1 // pred_check_branch
      %64 = sbr.rel (0) target = $region37
    $region36: #{tpu_custom_call.1} parent=1 // pred_region
      _
    $region37: #{tpu_custom_call.1} parent=1 // pred_fallthru
      _
    // Predicated region
    $region38: #{tpu_custom_call.1} parent=1 // pred_check
      _
    $region39: #{tpu_custom_call.1} parent=1 // pred_check_branch
      %66 = sbr.rel (0) target = $region41
    $region40: #{tpu_custom_call.1} parent=1 // pred_region
      %67 = dma.done [#allocation4], 2048
    $region41: #{tpu_custom_call.1} parent=1 // pred_fallthru
      _
    // Predicated region
    $region42: #{tpu_custom_call.1} parent=1 // pred_check
      _
    $region43: #{tpu_custom_call.1} parent=1 // pred_check_branch
      %69 = sbr.rel (0) target = $region45
    $region44: #{tpu_custom_call.1} parent=1 // pred_region
      %70 = dma.done [#allocation6], 2048
    $region45: #{tpu_custom_call.1} parent=1 // pred_fallthru
      _
    // Predicated region
    $region46: #{tpu_custom_call.1} parent=1 // pred_check
      _
    $region47: #{tpu_custom_call.1} parent=1 // pred_check_branch
      %72 = sbr.rel (0) target = $region49
    $region48: #{tpu_custom_call.1} parent=1 // pred_region
      %73 = dma.done [#allocation6], 2048
    $region49: #{tpu_custom_call.1} parent=1 // pred_fallthru
      _
    %v74 = vld [vmem:[%s1] sm:$0x3]
    %v75 = vld [vmem:[%s3] sm:$0x3]
    %v76 = vld [vmem:[%s0] sm:$0x3]
    %78 = vset.pattern.permute.xlu0 0
    %79 = vperm.xlu0 %78, %v76
    %v80 = vpop.permute.xlu0 %79
    %v83 = vlaneseq
    %v84 = vshrl.u32 %v83, 7
    %v85 = vsub.s32 0, %v84
    %v86 = vrot.slane %v74, %v85
    %v87 = vlaneseq
    %v88 = vshrl.u32 %v87, 7
    %v89 = vsub.s32 1, %v88
    %v90 = vrot.slane %v74, %v89
    %v93 = vmul.f32 %v80, %v86
    %v94 = vmul.f32 %v80, %v90
    %v96 = vlaneseq
    %v97 = vshrl.u32 %v96, 7
    %v98 = vsub.s32 0, %v97
    %v99 = vrot.slane %v75, %v98
    %v100 = vlaneseq
    %v101 = vshrl.u32 %v100, 7
    %v102 = vsub.s32 1, %v101
    %v103 = vrot.slane %v75, %v102
    %v106 = vadd.f32 %v93, %v99
    %v107 = vadd.f32 %v94, %v103
    %s108 = scalar_lea.vmem %s0, 2
    %v109 = vld [vmem:[%s108] sm:$0x3]
    %111 = vset.pattern.permute.xlu0 0
    %112 = vperm.xlu0 %111, %v109
    %v113 = vpop.permute.xlu0 %112
    %v115 = vmul.f32 %v113, %v86
    %v116 = vmul.f32 %v113, %v90
    %v117 = vadd.f32 %v115, %v99
    %v118 = vadd.f32 %v116, %v103
    %s119 = scalar_lea.vmem %s0, 4
    %v120 = vld [vmem:[%s119] sm:$0x3]
    %122 = vset.pattern.permute.xlu0 0
    %123 = vperm.xlu0 %122, %v120
    %v124 = vpop.permute.xlu0 %123
    %v126 = vmul.f32 %v124, %v86
    %v127 = vmul.f32 %v124, %v90
    %v128 = vadd.f32 %v126, %v99
    %v129 = vadd.f32 %v127, %v103
    %s130 = scalar_lea.vmem %s0, 6
    %v131 = vld [vmem:[%s130] sm:$0x3]
    %133 = vset.pattern.permute.xlu0 0
    %134 = vperm.xlu0 %133, %v131
    %v135 = vpop.permute.xlu0 %134
    %v137 = vmul.f32 %v135, %v86
    %v138 = vmul.f32 %v135, %v90
    %v139 = vadd.f32 %v137, %v99
    %v140 = vadd.f32 %v138, %v103
    %s141 = scalar_lea.vmem %s0, 8
    %v142 = vld [vmem:[%s141] sm:$0x3]
    %144 = vset.pattern.permute.xlu0 0
    %145 = vperm.xlu0 %144, %v142
    %v146 = vpop.permute.xlu0 %145
    %v148 = vmul.f32 %v146, %v86
    %v149 = vmul.f32 %v146, %v90
    %v150 = vadd.f32 %v148, %v99
    %v151 = vadd.f32 %v149, %v103
    %s152 = scalar_lea.vmem %s0, 10
    %v153 = vld [vmem:[%s152] sm:$0x3]
    %155 = vset.pattern.permute.xlu0 0
    %156 = vperm.xlu0 %155, %v153
    %v157 = vpop.permute.xlu0 %156
    %v159 = vmul.f32 %v157, %v86
    %v160 = vmul.f32 %v157, %v90
    %v161 = vadd.f32 %v159, %v99
    %v162 = vadd.f32 %v160, %v103
    %s163 = scalar_lea.vmem %s0, 12
    %v164 = vld [vmem:[%s163] sm:$0x3]
    %166 = vset.pattern.permute.xlu0 0
    %167 = vperm.xlu0 %166, %v164
    %v168 = vpop.permute.xlu0 %167
    %v170 = vmul.f32 %v168, %v86
    %v171 = vmul.f32 %v168, %v90
    %v172 = vadd.f32 %v170, %v99
    %v173 = vadd.f32 %v171, %v103
    %s174 = scalar_lea.vmem %s0, 14
    %v175 = vld [vmem:[%s174] sm:$0x3]
    %177 = vset.pattern.permute.xlu0 0
    %178 = vperm.xlu0 %177, %v175
    %v179 = vpop.permute.xlu0 %178
    %v181 = vmul.f32 %v179, %v86
    %v182 = vmul.f32 %v179, %v90
    %v183 = vadd.f32 %v181, %v99
    %v184 = vadd.f32 %v182, %v103
    %v185 = vld [vmem:[#allocation3] sm:$0xff]
    %v186 = vld [vmem:[#allocation3 + $0x8] sm:$0xff]
    %v187 = vld [vmem:[#allocation3 + $0x10] sm:$0xff]
    %v188 = vld [vmem:[#allocation3 + $0x18] sm:$0xff]
    %v189 = vld [vmem:[#allocation3 + $0x20] sm:$0xff]
    %v190 = vld [vmem:[#allocation3 + $0x28] sm:$0xff]
    %v191 = vld [vmem:[#allocation3 + $0x30] sm:$0xff]
    %v192 = vld [vmem:[#allocation3 + $0x38] sm:$0xff]
    %v193 = vld [vmem:[#allocation3 + $0x40] sm:$0xff]
    %v194 = vld [vmem:[#allocation3 + $0x48] sm:$0xff]
    %v195 = vld [vmem:[#allocation3 + $0x50] sm:$0xff]
    %v196 = vld [vmem:[#allocation3 + $0x58] sm:$0xff]
    %v197 = vld [vmem:[#allocation3 + $0x60] sm:$0xff]
    %v198 = vld [vmem:[#allocation3 + $0x68] sm:$0xff]
    %v199 = vld [vmem:[#allocation3 + $0x70] sm:$0xff]
    %v200 = vld [vmem:[#allocation3 + $0x78] sm:$0xff]
    %vm201 = vcmask 523264
    %v203 = vsel %vm201, 0.0, 0
    %205 = vmatprep.subr.mxu0 0.0
    %206 = vmatpush1.msra.mxu0 0.0
    %207 = vmatprep.subr.mxu0 0.0
    %208 = vmatpush1.msra.mxu0 0.0
    %209 = vmatprep.subr.mxu0 0.0
    %210 = vmatpush1.msra.mxu0 0.0
    %211 = vmatprep.subr.mxu0 0.0
    %212 = vmatpush1.msra.mxu0 0.0
    %213 = vmatprep.subr.mxu0 0.0
    %214 = vmatpush1.msra.mxu0 0.0
    %215 = vmatprep.subr.mxu0 0.0
    %216 = vmatpush1.msra.mxu0 0.0
    %217 = vmatprep.subr.mxu0 0.0
    %218 = vmatpush1.msra.mxu0 0.0
    %219 = vmatprep.subr.mxu0 0.0
    %220 = vmatpush1.msra.mxu0 0.0
    %221 = vmatprep.subr.mxu0 %v200
    %222 = vmatpush1.msra.mxu0 %v199
    %223 = vmatprep.subr.mxu0 %v198
    %224 = vmatpush1.msra.mxu0 %v197
    %225 = vmatprep.subr.mxu0 %v196
    %226 = vmatpush1.msra.mxu0 %v195
    %227 = vmatprep.subr.mxu0 %v194
    %228 = vmatpush1.msra.mxu0 %v193
    %229 = vmatprep.subr.mxu0 %v192
    %230 = vmatpush1.msra.mxu0 %v191
    %231 = vmatprep.subr.mxu0 %v190
    %232 = vmatpush1.msra.mxu0 %v189
    %233 = vmatprep.subr.mxu0 %v188
    %234 = vmatpush1.msra.mxu0 %v187
    %235 = vmatprep.subr.mxu0 %v186
    %236 = vmatpush1.msra.mxu0 %v185
    %237 = vmatprep.subr.mxu0 0.0
    %238 = vmatpush2.msra.mxu0 0.0
    %239 = vmatprep.subr.mxu0 0.0
    %240 = vmatpush2.msra.mxu0 0.0
    %241 = vmatprep.subr.mxu0 0.0
    %242 = vmatpush2.msra.mxu0 0.0
    %243 = vmatprep.subr.mxu0 0.0
    %244 = vmatpush2.msra.mxu0 0.0
    %245 = vmatprep.subr.mxu0 0.0
    %246 = vmatpush2.msra.mxu0 0.0
    %247 = vmatprep.subr.mxu0 0.0
    %248 = vmatpush2.msra.mxu0 0.0
    %249 = vmatprep.subr.mxu0 0.0
    %250 = vmatpush2.msra.mxu0 0.0
    %251 = vmatprep.subr.mxu0 0.0
    %252 = vmatpush2.msra.mxu0 0.0
    %253 = vmatprep.subr.mxu0 0.0
    %254 = vmatpush2.msra.mxu0 0.0
    %255 = vmatprep.subr.mxu0 0.0
    %256 = vmatpush2.msra.mxu0 0.0
    %257 = vmatprep.subr.mxu0 0.0
    %258 = vmatpush2.msra.mxu0 0.0
    %259 = vmatprep.subr.mxu0 0.0
    %260 = vmatpush2.msra.mxu0 0.0
    %261 = vmatprep.subr.mxu0 0.0
    %262 = vmatpush2.msra.mxu0 0.0
    %263 = vmatprep.subr.mxu0 0.0
    %264 = vmatpush2.msra.mxu0 0.0
    %265 = vmatprep.subr.mxu0 0.0
    %266 = vmatpush2.msra.mxu0 0.0
    %267 = vmatprep.subr.mxu0 0.0
    %268 = vmatpush2.msra.mxu0 0.0
    %269 = vmatprep.mubr.f32.mxu0 0.0
    %270 = vmatmul.mubr.f32.gmra.mxu0 %v203
    %v271 = vpop.f32.mrf.mxu0
    %v272 = vadd.f32 0.0, %v271
    %v273 = vpop.f32.mrf.mxu0
    %v274 = vadd.f32 0.0, %v273
    %275 = vdwg.mxu0
    %v276 = vadd.f32 %v106, %v272
    %v277 = vadd.f32 %v107, %v274
    %v278 = vxor.u32 %v276, 2147483648
    %v279 = vmul.f32 %v278, 1.442695
    %v280 = vpow.pop %v279
    %v281 = vadd.f32 %v280, 1.0
    %v282 = vrcp.pop %v281
    %v283 = vmul.f32 1.0, %v282
    %v284 = vtanh.pop %v277
    %v285 = vxor.u32 %v277, 2147483648
    %v286 = vmul.f32 %v285, 1.442695
    %v287 = vpow.pop %v286
    %v288 = vadd.f32 %v287, 1.0
    %v289 = vrcp.pop %v288
    %v290 = vmul.f32 1.0, %v289
    %v291 = vmul.f32 %v283, 0.0
    %v292 = vmul.f32 %v283, %v284
    %294 = vrot.lane.b32.xlu0 %v292, 64
    %v295 = vpop.permute.xlu0 %294
    %v297 = vadd.f32 %v291, %v295
    %v298 = vtanh.pop %v297
    %v299 = vmul.f32 %v290, %v298
    %v300 = vld [vmem:[#allocation5] sm:$0xff]
    %v301 = vld [vmem:[#allocation5 + $0x8] sm:$0xff]
    %v302 = vld [vmem:[#allocation5 + $0x10] sm:$0xff]
    %v303 = vld [vmem:[#allocation5 + $0x18] sm:$0xff]
    %v304 = vld [vmem:[#allocation5 + $0x20] sm:$0xff]
    %v305 = vld [vmem:[#allocation5 + $0x28] sm:$0xff]
    %v306 = vld [vmem:[#allocation5 + $0x30] sm:$0xff]
    %v307 = vld [vmem:[#allocation5 + $0x38] sm:$0xff]
    %v308 = vld [vmem:[#allocation5 + $0x40] sm:$0xff]
    %v309 = vld [vmem:[#allocation5 + $0x48] sm:$0xff]
    %v310 = vld [vmem:[#allocation5 + $0x50] sm:$0xff]
    %v311 = vld [vmem:[#allocation5 + $0x58] sm:$0xff]
    %v312 = vld [vmem:[#allocation5 + $0x60] sm:$0xff]
    %v313 = vld [vmem:[#allocation5 + $0x68] sm:$0xff]
    %v314 = vld [vmem:[#allocation5 + $0x70] sm:$0xff]
    %v315 = vld [vmem:[#allocation5 + $0x78] sm:$0xff]
    %v316 = vld [vmem:[#allocation7] sm:$0xff]
    %v317 = vld [vmem:[#allocation7 + $0x8] sm:$0xff]
    %v318 = vld [vmem:[#allocation7 + $0x10] sm:$0xff]
    %v319 = vld [vmem:[#allocation7 + $0x18] sm:$0xff]
    %v320 = vld [vmem:[#allocation7 + $0x20] sm:$0xff]
    %v321 = vld [vmem:[#allocation7 + $0x28] sm:$0xff]
    %v322 = vld [vmem:[#allocation7 + $0x30] sm:$0xff]
    %v323 = vld [vmem:[#allocation7 + $0x38] sm:$0xff]
    %v324 = vld [vmem:[#allocation7 + $0x40] sm:$0xff]
    %v325 = vld [vmem:[#allocation7 + $0x48] sm:$0xff]
    %v326 = vld [vmem:[#allocation7 + $0x50] sm:$0xff]
    %v327 = vld [vmem:[#allocation7 + $0x58] sm:$0xff]
    %v328 = vld [vmem:[#allocation7 + $0x60] sm:$0xff]
    %v329 = vld [vmem:[#allocation7 + $0x68] sm:$0xff]
    %v330 = vld [vmem:[#allocation7 + $0x70] sm:$0xff]
    %v331 = vld [vmem:[#allocation7 + $0x78] sm:$0xff]
    %332 = vmatprep.subr.mxu0 0.0
    %333 = vmatpush1.msra.mxu0 0.0
    %334 = vmatprep.subr.mxu0 0.0
    %335 = vmatpush1.msra.mxu0 0.0
    %336 = vmatprep.subr.mxu0 0.0
    %337 = vmatpush1.msra.mxu0 0.0
    %338 = vmatprep.subr.mxu0 0.0
    %339 = vmatpush1.msra.mxu0 0.0
    %340 = vmatprep.subr.mxu0 0.0
    %341 = vmatpush1.msra.mxu0 0.0
    %342 = vmatprep.subr.mxu0 0.0
    %343 = vmatpush1.msra.mxu0 0.0
    %344 = vmatprep.subr.mxu0 0.0
    %345 = vmatpush1.msra.mxu0 0.0
    %346 = vmatprep.subr.mxu0 0.0
    %347 = vmatpush1.msra.mxu0 0.0
    %348 = vmatprep.subr.mxu0 %v331
    %349 = vmatpush1.msra.mxu0 %v330
    %350 = vmatprep.subr.mxu0 %v329
    %351 = vmatpush1.msra.mxu0 %v328
    %352 = vmatprep.subr.mxu0 %v327
    %353 = vmatpush1.msra.mxu0 %v326
    %354 = vmatprep.subr.mxu0 %v325
    %355 = vmatpush1.msra.mxu0 %v324
    %356 = vmatprep.subr.mxu0 %v323
    %357 = vmatpush1.msra.mxu0 %v322
    %358 = vmatprep.subr.mxu0 %v321
    %359 = vmatpush1.msra.mxu0 %v320
    %360 = vmatprep.subr.mxu0 %v319
    %361 = vmatpush1.msra.mxu0 %v318
    %362 = vmatprep.subr.mxu0 %v317
    %363 = vmatpush1.msra.mxu0 %v316
    %364 = vmatprep.subr.mxu0 0.0
    %365 = vmatpush2.msra.mxu0 0.0
    %366 = vmatprep.subr.mxu0 0.0
    %367 = vmatpush2.msra.mxu0 0.0
    %368 = vmatprep.subr.mxu0 0.0
    %369 = vmatpush2.msra.mxu0 0.0
    %370 = vmatprep.subr.mxu0 0.0
    %371 = vmatpush2.msra.mxu0 0.0
    %372 = vmatprep.subr.mxu0 0.0
    %373 = vmatpush2.msra.mxu0 0.0
    %374 = vmatprep.subr.mxu0 0.0
    %375 = vmatpush2.msra.mxu0 0.0
    %376 = vmatprep.subr.mxu0 0.0
    %377 = vmatpush2.msra.mxu0 0.0
    %378 = vmatprep.subr.mxu0 0.0
    %379 = vmatpush2.msra.mxu0 0.0
    %380 = vmatprep.subr.mxu0 0.0
    %381 = vmatpush2.msra.mxu0 0.0
    %382 = vmatprep.subr.mxu0 0.0
    %383 = vmatpush2.msra.mxu0 0.0
    %384 = vmatprep.subr.mxu0 0.0
    %385 = vmatpush2.msra.mxu0 0.0
    %386 = vmatprep.subr.mxu0 0.0
    %387 = vmatpush2.msra.mxu0 0.0
    %388 = vmatprep.subr.mxu0 0.0
    %389 = vmatpush2.msra.mxu0 0.0
    %390 = vmatprep.subr.mxu0 0.0
    %391 = vmatpush2.msra.mxu0 0.0
    %392 = vmatprep.subr.mxu0 0.0
    %393 = vmatpush2.msra.mxu0 0.0
    %394 = vmatprep.subr.mxu0 0.0
    %395 = vmatpush2.msra.mxu0 0.0
    %396 = vmatprep.mubr.f32.mxu0 0.0
    %397 = vmatmul.mubr.f32.gmra.mxu0 %v203
    %v398 = vpop.f32.mrf.mxu0
    %v399 = vadd.f32 0.0, %v398
    %v400 = vpop.f32.mrf.mxu0
    %v401 = vadd.f32 0.0, %v400
    %402 = vdwg.mxu0
    %404 = vrot.lane.b32.xlu0 %v299, 64
    %v405 = vpop.permute.xlu0 %404
    %v406 = vsel %vm201, %v405, 0
    %408 = vmatprep.subr.mxu0 0.0
    %409 = vmatpush1.msra.mxu0 0.0
    %410 = vmatprep.subr.mxu0 0.0
    %411 = vmatpush1.msra.mxu0 0.0
    %412 = vmatprep.subr.mxu0 0.0
    %413 = vmatpush1.msra.mxu0 0.0
    %414 = vmatprep.subr.mxu0 0.0
    %415 = vmatpush1.msra.mxu0 0.0
    %416 = vmatprep.subr.mxu0 0.0
    %417 = vmatpush1.msra.mxu0 0.0
    %418 = vmatprep.subr.mxu0 0.0
    %419 = vmatpush1.msra.mxu0 0.0
    %420 = vmatprep.subr.mxu0 0.0
    %421 = vmatpush1.msra.mxu0 0.0
    %422 = vmatprep.subr.mxu0 0.0
    %423 = vmatpush1.msra.mxu0 0.0
    %424 = vmatprep.subr.mxu0 %v315
    %425 = vmatpush1.msra.mxu0 %v314
    %426 = vmatprep.subr.mxu0 %v313
    %427 = vmatpush1.msra.mxu0 %v312
    %428 = vmatprep.subr.mxu0 %v311
    %429 = vmatpush1.msra.mxu0 %v310
    %430 = vmatprep.subr.mxu0 %v309
    %431 = vmatpush1.msra.mxu0 %v308
    %432 = vmatprep.subr.mxu0 %v307
    %433 = vmatpush1.msra.mxu0 %v306
    %434 = vmatprep.subr.mxu0 %v305
    %435 = vmatpush1.msra.mxu0 %v304
    %436 = vmatprep.subr.mxu0 %v303
    %437 = vmatpush1.msra.mxu0 %v302
    %438 = vmatprep.subr.mxu0 %v301
    %439 = vmatpush1.msra.mxu0 %v300
    %440 = vmatprep.subr.mxu0 0.0
    %441 = vmatpush2.msra.mxu0 0.0
    %442 = vmatprep.subr.mxu0 0.0
    %443 = vmatpush2.msra.mxu0 0.0
    %444 = vmatprep.subr.mxu0 0.0
    %445 = vmatpush2.msra.mxu0 0.0
    %446 = vmatprep.subr.mxu0 0.0
    %447 = vmatpush2.msra.mxu0 0.0
    %448 = vmatprep.subr.mxu0 0.0
    %449 = vmatpush2.msra.mxu0 0.0
    %450 = vmatprep.subr.mxu0 0.0
    %451 = vmatpush2.msra.mxu0 0.0
    %452 = vmatprep.subr.mxu0 0.0
    %453 = vmatpush2.msra.mxu0 0.0
    %454 = vmatprep.subr.mxu0 0.0
    %455 = vmatpush2.msra.mxu0 0.0
    %456 = vmatprep.subr.mxu0 0.0
    %457 = vmatpush2.msra.mxu0 0.0
    %458 = vmatprep.subr.mxu0 0.0
    %459 = vmatpush2.msra.mxu0 0.0
    %460 = vmatprep.subr.mxu0 0.0
    %461 = vmatpush2.msra.mxu0 0.0
    %462 = vmatprep.subr.mxu0 0.0
    %463 = vmatpush2.msra.mxu0 0.0
    %464 = vmatprep.subr.mxu0 0.0
    %465 = vmatpush2.msra.mxu0 0.0
    %466 = vmatprep.subr.mxu0 0.0
    %467 = vmatpush2.msra.mxu0 0.0
    %468 = vmatprep.subr.mxu0 0.0
    %469 = vmatpush2.msra.mxu0 0.0
    %470 = vmatprep.subr.mxu0 0.0
    %471 = vmatpush2.msra.mxu0 0.0
    %472 = vmatprep.mubr.f32.mxu0 0.0
    %473 = vmatmul.mubr.f32.gmra.mxu0 %v406
    %v474 = vpop.f32.mrf.mxu0
    %v475 = vadd.f32 %v399, %v474
    %v476 = vpop.f32.mrf.mxu0
    %v477 = vadd.f32 %v401, %v476
    %478 = vdwg.mxu0
    %v479 = vld [vmem:[%s6] sm:$0x3]
    %v481 = vlaneseq
    %v482 = vshrl.u32 %v481, 7
    %v483 = vsub.s32 0, %v482
    %v484 = vrot.slane %v479, %v483
    %v485 = vlaneseq
    %v486 = vshrl.u32 %v485, 7
    %v487 = vsub.s32 1, %v486
    %v488 = vrot.slane %v479, %v487
    %v491 = vadd.f32 %v475, %v484
    %v492 = vadd.f32 %v477, %v488
    %v493 = vxor.u32 %v491, 2147483648
    %v494 = vmul.f32 %v493, 1.442695
    %v495 = vpow.pop %v494
    %v496 = vadd.f32 %v495, 1.0
    %v497 = vrcp.pop %v496
    %v498 = vmul.f32 1.0, %v497
    %v499 = vtanh.pop %v492
    %v500 = vxor.u32 %v492, 2147483648
    %v501 = vmul.f32 %v500, 1.442695
    %v502 = vpow.pop %v501
    %v503 = vadd.f32 %v502, 1.0
    %v504 = vrcp.pop %v503
    %v505 = vmul.f32 1.0, %v504
    %v506 = vmul.f32 %v498, 0.0
    %v507 = vmul.f32 %v498, %v499
    %509 = vrot.lane.b32.xlu0 %v507, 64
    %v510 = vpop.permute.xlu0 %509
    %v512 = vadd.f32 %v506, %v510
    %v513 = vtanh.pop %v512
    %v514 = vmul.f32 %v505, %v513
    %515 = vmatprep.subr.mxu0 0.0
    %516 = vmatpush1.msra.mxu0 0.0
    %517 = vmatprep.subr.mxu0 0.0
    %518 = vmatpush1.msra.mxu0 0.0
    %519 = vmatprep.subr.mxu0 0.0
    %520 = vmatpush1.msra.mxu0 0.0
    %521 = vmatprep.subr.mxu0 0.0
    %522 = vmatpush1.msra.mxu0 0.0
    %523 = vmatprep.subr.mxu0 0.0
    %524 = vmatpush1.msra.mxu0 0.0
    %525 = vmatprep.subr.mxu0 0.0
    %526 = vmatpush1.msra.mxu0 0.0
    %527 = vmatprep.subr.mxu0 0.0
    %528 = vmatpush1.msra.mxu0 0.0
    %529 = vmatprep.subr.mxu0 0.0
    %530 = vmatpush1.msra.mxu0 0.0
    %531 = vmatprep.subr.mxu0 %v200
    %532 = vmatpush1.msra.mxu0 %v199
    %533 = vmatprep.subr.mxu0 %v198
    %534 = vmatpush1.msra.mxu0 %v197
    %535 = vmatprep.subr.mxu0 %v196
    %536 = vmatpush1.msra.mxu0 %v195
    %537 = vmatprep.subr.mxu0 %v194
    %538 = vmatpush1.msra.mxu0 %v193
    %539 = vmatprep.subr.mxu0 %v192
    %540 = vmatpush1.msra.mxu0 %v191
    %541 = vmatprep.subr.mxu0 %v190
    %542 = vmatpush1.msra.mxu0 %v189
    %543 = vmatprep.subr.mxu0 %v188
    %544 = vmatpush1.msra.mxu0 %v187
    %545 = vmatprep.subr.mxu0 %v186
    %546 = vmatpush1.msra.mxu0 %v185
    %547 = vmatprep.subr.mxu0 0.0
    %548 = vmatpush2.msra.mxu0 0.0
    %549 = vmatprep.subr.mxu0 0.0
    %550 = vmatpush2.msra.mxu0 0.0
    %551 = vmatprep.subr.mxu0 0.0
    %552 = vmatpush2.msra.mxu0 0.0
    %553 = vmatprep.subr.mxu0 0.0
    %554 = vmatpush2.msra.mxu0 0.0
    %555 = vmatprep.subr.mxu0 0.0
    %556 = vmatpush2.msra.mxu0 0.0
    %557 = vmatprep.subr.mxu0 0.0
    %558 = vmatpush2.msra.mxu0 0.0
    %559 = vmatprep.subr.mxu0 0.0
    %560 = vmatpush2.msra.mxu0 0.0
    %561 = vmatprep.subr.mxu0 0.0
    %562 = vmatpush2.msra.mxu0 0.0
    %563 = vmatprep.subr.mxu0 0.0
    %564 = vmatpush2.msra.mxu0 0.0
    %565 = vmatprep.subr.mxu0 0.0
    %566 = vmatpush2.msra.mxu0 0.0
    %567 = vmatprep.subr.mxu0 0.0
    %568 = vmatpush2.msra.mxu0 0.0
    %569 = vmatprep.subr.mxu0 0.0
    %570 = vmatpush2.msra.mxu0 0.0
    %571 = vmatprep.subr.mxu0 0.0
    %572 = vmatpush2.msra.mxu0 0.0
    %573 = vmatprep.subr.mxu0 0.0
    %574 = vmatpush2.msra.mxu0 0.0
    %575 = vmatprep.subr.mxu0 0.0
    %576 = vmatpush2.msra.mxu0 0.0
    %577 = vmatprep.subr.mxu0 0.0
    %578 = vmatpush2.msra.mxu0 0.0
    %579 = vmatprep.mubr.f32.mxu0 0.0
    %580 = vmatmul.mubr.f32.gmra.mxu0 %v406
    %v581 = vpop.f32.mrf.mxu0
    %v582 = vadd.f32 0.0, %v581
    %v583 = vpop.f32.mrf.mxu0
    %v584 = vadd.f32 0.0, %v583
    %585 = vdwg.mxu0
    %v586 = vadd.f32 %v117, %v582
    %v587 = vadd.f32 %v118, %v584
    %v588 = vxor.u32 %v586, 2147483648
    %v589 = vmul.f32 %v588, 1.442695
    %v590 = vpow.pop %v589
    %v591 = vadd.f32 %v590, 1.0
    %v592 = vrcp.pop %v591
    %v593 = vmul.f32 1.0, %v592
    %v594 = vtanh.pop %v587
    %v595 = vxor.u32 %v587, 2147483648
    %v596 = vmul.f32 %v595, 1.442695
    %v597 = vpow.pop %v596
    %v598 = vadd.f32 %v597, 1.0
    %v599 = vrcp.pop %v598
    %v600 = vmul.f32 1.0, %v599
    %v601 = vmul.f32 %v593, %v297
    %v602 = vmul.f32 %v593, %v594
    %604 = vrot.lane.b32.xlu0 %v602, 64
    %v605 = vpop.permute.xlu0 %604
    %v607 = vadd.f32 %v601, %v605
    %v608 = vtanh.pop %v607
    %v609 = vmul.f32 %v600, %v608
    %611 = vrot.lane.b32.xlu0 %v514, 64
    %v612 = vpop.permute.xlu0 %611
    %v613 = vsel %vm201, %v612, 0
    %615 = vmatprep.subr.mxu0 0.0
    %616 = vmatpush1.msra.mxu0 0.0
    %617 = vmatprep.subr.mxu0 0.0
    %618 = vmatpush1.msra.mxu0 0.0
    %619 = vmatprep.subr.mxu0 0.0
    %620 = vmatpush1.msra.mxu0 0.0
    %621 = vmatprep.subr.mxu0 0.0
    %622 = vmatpush1.msra.mxu0 0.0
    %623 = vmatprep.subr.mxu0 0.0
    %624 = vmatpush1.msra.mxu0 0.0
    %625 = vmatprep.subr.mxu0 0.0
    %626 = vmatpush1.msra.mxu0 0.0
    %627 = vmatprep.subr.mxu0 0.0
    %628 = vmatpush1.msra.mxu0 0.0
    %629 = vmatprep.subr.mxu0 0.0
    %630 = vmatpush1.msra.mxu0 0.0
    %631 = vmatprep.subr.mxu0 %v331
    %632 = vmatpush1.msra.mxu0 %v330
    %633 = vmatprep.subr.mxu0 %v329
    %634 = vmatpush1.msra.mxu0 %v328
    %635 = vmatprep.subr.mxu0 %v327
    %636 = vmatpush1.msra.mxu0 %v326
    %637 = vmatprep.subr.mxu0 %v325
    %638 = vmatpush1.msra.mxu0 %v324
    %639 = vmatprep.subr.mxu0 %v323
    %640 = vmatpush1.msra.mxu0 %v322
    %641 = vmatprep.subr.mxu0 %v321
    %642 = vmatpush1.msra.mxu0 %v320
    %643 = vmatprep.subr.mxu0 %v319
    %644 = vmatpush1.msra.mxu0 %v318
    %645 = vmatprep.subr.mxu0 %v317
    %646 = vmatpush1.msra.mxu0 %v316
    %647 = vmatprep.subr.mxu0 0.0
    %648 = vmatpush2.msra.mxu0 0.0
    %649 = vmatprep.subr.mxu0 0.0
    %650 = vmatpush2.msra.mxu0 0.0
    %651 = vmatprep.subr.mxu0 0.0
    %652 = vmatpush2.msra.mxu0 0.0
    %653 = vmatprep.subr.mxu0 0.0
    %654 = vmatpush2.msra.mxu0 0.0
    %655 = vmatprep.subr.mxu0 0.0
    %656 = vmatpush2.msra.mxu0 0.0
    %657 = vmatprep.subr.mxu0 0.0
    %658 = vmatpush2.msra.mxu0 0.0
    %659 = vmatprep.subr.mxu0 0.0
    %660 = vmatpush2.msra.mxu0 0.0
    %661 = vmatprep.subr.mxu0 0.0
    %662 = vmatpush2.msra.mxu0 0.0
    %663 = vmatprep.subr.mxu0 0.0
    %664 = vmatpush2.msra.mxu0 0.0
    %665 = vmatprep.subr.mxu0 0.0
    %666 = vmatpush2.msra.mxu0 0.0
    %667 = vmatprep.subr.mxu0 0.0
    %668 = vmatpush2.msra.mxu0 0.0
    %669 = vmatprep.subr.mxu0 0.0
    %670 = vmatpush2.msra.mxu0 0.0
    %671 = vmatprep.subr.mxu0 0.0
    %672 = vmatpush2.msra.mxu0 0.0
    %673 = vmatprep.subr.mxu0 0.0
    %674 = vmatpush2.msra.mxu0 0.0
    %675 = vmatprep.subr.mxu0 0.0
    %676 = vmatpush2.msra.mxu0 0.0
    %677 = vmatprep.subr.mxu0 0.0
    %678 = vmatpush2.msra.mxu0 0.0
    %679 = vmatprep.mubr.f32.mxu0 0.0
    %680 = vmatmul.mubr.f32.gmra.mxu0 %v613
    %v681 = vpop.f32.mrf.mxu0
    %v682 = vadd.f32 0.0, %v681
    %v683 = vpop.f32.mrf.mxu0
    %v684 = vadd.f32 0.0, %v683
    %685 = vdwg.mxu0
    %687 = vrot.lane.b32.xlu0 %v609, 64
    %v688 = vpop.permute.xlu0 %687
    %v689 = vsel %vm201, %v688, 0
    %691 = vmatprep.subr.mxu0 0.0
    %692 = vmatpush1.msra.mxu0 0.0
    %693 = vmatprep.subr.mxu0 0.0
    %694 = vmatpush1.msra.mxu0 0.0
    %695 = vmatprep.subr.mxu0 0.0
    %696 = vmatpush1.msra.mxu0 0.0
    %697 = vmatprep.subr.mxu0 0.0
    %698 = vmatpush1.msra.mxu0 0.0
    %699 = vmatprep.subr.mxu0 0.0
    %700 = vmatpush1.msra.mxu0 0.0
    %701 = vmatprep.subr.mxu0 0.0
    %702 = vmatpush1.msra.mxu0 0.0
    %703 = vmatprep.subr.mxu0 0.0
    %704 = vmatpush1.msra.mxu0 0.0
    %705 = vmatprep.subr.mxu0 0.0
    %706 = vmatpush1.msra.mxu0 0.0
    %707 = vmatprep.subr.mxu0 %v315
    %708 = vmatpush1.msra.mxu0 %v314
    %709 = vmatprep.subr.mxu0 %v313
    %710 = vmatpush1.msra.mxu0 %v312
    %711 = vmatprep.subr.mxu0 %v311
    %712 = vmatpush1.msra.mxu0 %v310
    %713 = vmatprep.subr.mxu0 %v309
    %714 = vmatpush1.msra.mxu0 %v308
    %715 = vmatprep.subr.mxu0 %v307
    %716 = vmatpush1.msra.mxu0 %v306
    %717 = vmatprep.subr.mxu0 %v305
    %718 = vmatpush1.msra.mxu0 %v304
    %719 = vmatprep.subr.mxu0 %v303
    %720 = vmatpush1.msra.mxu0 %v302
    %721 = vmatprep.subr.mxu0 %v301
    %722 = vmatpush1.msra.mxu0 %v300
    %723 = vmatprep.subr.mxu0 0.0
    %724 = vmatpush2.msra.mxu0 0.0
    %725 = vmatprep.subr.mxu0 0.0
    %726 = vmatpush2.msra.mxu0 0.0
    %727 = vmatprep.subr.mxu0 0.0
    %728 = vmatpush2.msra.mxu0 0.0
    %729 = vmatprep.subr.mxu0 0.0
    %730 = vmatpush2.msra.mxu0 0.0
    %731 = vmatprep.subr.mxu0 0.0
    %732 = vmatpush2.msra.mxu0 0.0
    %733 = vmatprep.subr.mxu0 0.0
    %734 = vmatpush2.msra.mxu0 0.0
    %735 = vmatprep.subr.mxu0 0.0
    %736 = vmatpush2.msra.mxu0 0.0
    %737 = vmatprep.subr.mxu0 0.0
    %738 = vmatpush2.msra.mxu0 0.0
    %739 = vmatprep.subr.mxu0 0.0
    %740 = vmatpush2.msra.mxu0 0.0
    %741 = vmatprep.subr.mxu0 0.0
    %742 = vmatpush2.msra.mxu0 0.0
    %743 = vmatprep.subr.mxu0 0.0
    %744 = vmatpush2.msra.mxu0 0.0
    %745 = vmatprep.subr.mxu0 0.0
    %746 = vmatpush2.msra.mxu0 0.0
    %747 = vmatprep.subr.mxu0 0.0
    %748 = vmatpush2.msra.mxu0 0.0
    %749 = vmatprep.subr.mxu0 0.0
    %750 = vmatpush2.msra.mxu0 0.0
    %751 = vmatprep.subr.mxu0 0.0
    %752 = vmatpush2.msra.mxu0 0.0
    %753 = vmatprep.subr.mxu0 0.0
    %754 = vmatpush2.msra.mxu0 0.0
    %755 = vmatprep.mubr.f32.mxu0 0.0
    %756 = vmatmul.mubr.f32.gmra.mxu0 %v689
    %v757 = vpop.f32.mrf.mxu0
    %v758 = vadd.f32 %v682, %v757
    %v759 = vpop.f32.mrf.mxu0
    %v760 = vadd.f32 %v684, %v759
    %761 = vdwg.mxu0
    %v762 = vadd.f32 %v758, %v484
    %v763 = vadd.f32 %v760, %v488
    %v764 = vxor.u32 %v762, 2147483648
    %v765 = vmul.f32 %v764, 1.442695
    %v766 = vpow.pop %v765
    %v767 = vadd.f32 %v766, 1.0
    %v768 = vrcp.pop %v767
    %v769 = vmul.f32 1.0, %v768
    %v770 = vtanh.pop %v763
    %v771 = vxor.u32 %v763, 2147483648
    %v772 = vmul.f32 %v771, 1.442695
    %v773 = vpow.pop %v772
    %v774 = vadd.f32 %v773, 1.0
    %v775 = vrcp.pop %v774
    %v776 = vmul.f32 1.0, %v775
    %v777 = vmul.f32 %v769, %v512
    %v778 = vmul.f32 %v769, %v770
    %780 = vrot.lane.b32.xlu0 %v778, 64
    %v781 = vpop.permute.xlu0 %780
    %v783 = vadd.f32 %v777, %v781
    %v784 = vtanh.pop %v783
    %v785 = vmul.f32 %v776, %v784
    %786 = vmatprep.subr.mxu0 0.0
    %787 = vmatpush1.msra.mxu0 0.0
    %788 = vmatprep.subr.mxu0 0.0
    %789 = vmatpush1.msra.mxu0 0.0
    %790 = vmatprep.subr.mxu0 0.0
    %791 = vmatpush1.msra.mxu0 0.0
    %792 = vmatprep.subr.mxu0 0.0
    %793 = vmatpush1.msra.mxu0 0.0
    %794 = vmatprep.subr.mxu0 0.0
    %795 = vmatpush1.msra.mxu0 0.0
    %796 = vmatprep.subr.mxu0 0.0
    %797 = vmatpush1.msra.mxu0 0.0
    %798 = vmatprep.subr.mxu0 0.0
    %799 = vmatpush1.msra.mxu0 0.0
    %800 = vmatprep.subr.mxu0 0.0
    %801 = vmatpush1.msra.mxu0 0.0
    %802 = vmatprep.subr.mxu0 %v200
    %803 = vmatpush1.msra.mxu0 %v199
    %804 = vmatprep.subr.mxu0 %v198
    %805 = vmatpush1.msra.mxu0 %v197
    %806 = vmatprep.subr.mxu0 %v196
    %807 = vmatpush1.msra.mxu0 %v195
    %808 = vmatprep.subr.mxu0 %v194
    %809 = vmatpush1.msra.mxu0 %v193
    %810 = vmatprep.subr.mxu0 %v192
    %811 = vmatpush1.msra.mxu0 %v191
    %812 = vmatprep.subr.mxu0 %v190
    %813 = vmatpush1.msra.mxu0 %v189
    %814 = vmatprep.subr.mxu0 %v188
    %815 = vmatpush1.msra.mxu0 %v187
    %816 = vmatprep.subr.mxu0 %v186
    %817 = vmatpush1.msra.mxu0 %v185
    %818 = vmatprep.subr.mxu0 0.0
    %819 = vmatpush2.msra.mxu0 0.0
    %820 = vmatprep.subr.mxu0 0.0
    %821 = vmatpush2.msra.mxu0 0.0
    %822 = vmatprep.subr.mxu0 0.0
    %823 = vmatpush2.msra.mxu0 0.0
    %824 = vmatprep.subr.mxu0 0.0
    %825 = vmatpush2.msra.mxu0 0.0
    %826 = vmatprep.subr.mxu0 0.0
    %827 = vmatpush2.msra.mxu0 0.0
    %828 = vmatprep.subr.mxu0 0.0
    %829 = vmatpush2.msra.mxu0 0.0
    %830 = vmatprep.subr.mxu0 0.0
    %831 = vmatpush2.msra.mxu0 0.0
    %832 = vmatprep.subr.mxu0 0.0
    %833 = vmatpush2.msra.mxu0 0.0
    %834 = vmatprep.subr.mxu0 0.0
    %835 = vmatpush2.msra.mxu0 0.0
    %836 = vmatprep.subr.mxu0 0.0
    %837 = vmatpush2.msra.mxu0 0.0
    %838 = vmatprep.subr.mxu0 0.0
    %839 = vmatpush2.msra.mxu0 0.0
    %840 = vmatprep.subr.mxu0 0.0
    %841 = vmatpush2.msra.mxu0 0.0
    %842 = vmatprep.subr.mxu0 0.0
    %843 = vmatpush2.msra.mxu0 0.0
    %844 = vmatprep.subr.mxu0 0.0
    %845 = vmatpush2.msra.mxu0 0.0
    %846 = vmatprep.subr.mxu0 0.0
    %847 = vmatpush2.msra.mxu0 0.0
    %848 = vmatprep.subr.mxu0 0.0
    %849 = vmatpush2.msra.mxu0 0.0
    %850 = vmatprep.mubr.f32.mxu0 0.0
    %851 = vmatmul.mubr.f32.gmra.mxu0 %v689
    %v852 = vpop.f32.mrf.mxu0
    %v853 = vadd.f32 0.0, %v852
    %v854 = vpop.f32.mrf.mxu0
    %v855 = vadd.f32 0.0, %v854
    %856 = vdwg.mxu0
    %v857 = vadd.f32 %v128, %v853
    %v858 = vadd.f32 %v129, %v855
    %v859 = vxor.u32 %v857, 2147483648
    %v860 = vmul.f32 %v859, 1.442695
    %v861 = vpow.pop %v860
    %v862 = vadd.f32 %v861, 1.0
    %v863 = vrcp.pop %v862
    %v864 = vmul.f32 1.0, %v863
    %v865 = vtanh.pop %v858
    %v866 = vxor.u32 %v858, 2147483648
    %v867 = vmul.f32 %v866, 1.442695
    %v868 = vpow.pop %v867
    %v869 = vadd.f32 %v868, 1.0
    %v870 = vrcp.pop %v869
    %v871 = vmul.f32 1.0, %v870
    %v872 = vmul.f32 %v864, %v607
    %v873 = vmul.f32 %v864, %v865
    %875 = vrot.lane.b32.xlu0 %v873, 64
    %v876 = vpop.permute.xlu0 %875
    %v878 = vadd.f32 %v872, %v876
    %v879 = vtanh.pop %v878
    %v880 = vmul.f32 %v871, %v879
    %882 = vrot.lane.b32.xlu0 %v785, 64
    %v883 = vpop.permute.xlu0 %882
    %v884 = vsel %vm201, %v883, 0
    %886 = vmatprep.subr.mxu0 0.0
    %887 = vmatpush1.msra.mxu0 0.0
    %888 = vmatprep.subr.mxu0 0.0
    %889 = vmatpush1.msra.mxu0 0.0
    %890 = vmatprep.subr.mxu0 0.0
    %891 = vmatpush1.msra.mxu0 0.0
    %892 = vmatprep.subr.mxu0 0.0
    %893 = vmatpush1.msra.mxu0 0.0
    %894 = vmatprep.subr.mxu0 0.0
    %895 = vmatpush1.msra.mxu0 0.0
    %896 = vmatprep.subr.mxu0 0.0
    %897 = vmatpush1.msra.mxu0 0.0
    %898 = vmatprep.subr.mxu0 0.0
    %899 = vmatpush1.msra.mxu0 0.0
    %900 = vmatprep.subr.mxu0 0.0
    %901 = vmatpush1.msra.mxu0 0.0
    %902 = vmatprep.subr.mxu0 %v331
    %903 = vmatpush1.msra.mxu0 %v330
    %904 = vmatprep.subr.mxu0 %v329
    %905 = vmatpush1.msra.mxu0 %v328
    %906 = vmatprep.subr.mxu0 %v327
    %907 = vmatpush1.msra.mxu0 %v326
    %908 = vmatprep.subr.mxu0 %v325
    %909 = vmatpush1.msra.mxu0 %v324
    %910 = vmatprep.subr.mxu0 %v323
    %911 = vmatpush1.msra.mxu0 %v322
    %912 = vmatprep.subr.mxu0 %v321
    %913 = vmatpush1.msra.mxu0 %v320
    %914 = vmatprep.subr.mxu0 %v319
    %915 = vmatpush1.msra.mxu0 %v318
    %916 = vmatprep.subr.mxu0 %v317
    %917 = vmatpush1.msra.mxu0 %v316
    %918 = vmatprep.subr.mxu0 0.0
    %919 = vmatpush2.msra.mxu0 0.0
    %920 = vmatprep.subr.mxu0 0.0
    %921 = vmatpush2.msra.mxu0 0.0
    %922 = vmatprep.subr.mxu0 0.0
    %923 = vmatpush2.msra.mxu0 0.0
    %924 = vmatprep.subr.mxu0 0.0
    %925 = vmatpush2.msra.mxu0 0.0
    %926 = vmatprep.subr.mxu0 0.0
    %927 = vmatpush2.msra.mxu0 0.0
    %928 = vmatprep.subr.mxu0 0.0
    %929 = vmatpush2.msra.mxu0 0.0
    %930 = vmatprep.subr.mxu0 0.0
    %931 = vmatpush2.msra.mxu0 0.0
    %932 = vmatprep.subr.mxu0 0.0
    %933 = vmatpush2.msra.mxu0 0.0
    %934 = vmatprep.subr.mxu0 0.0
    %935 = vmatpush2.msra.mxu0 0.0
    %936 = vmatprep.subr.mxu0 0.0
    %937 = vmatpush2.msra.mxu0 0.0
    %938 = vmatprep.subr.mxu0 0.0
    %939 = vmatpush2.msra.mxu0 0.0
    %940 = vmatprep.subr.mxu0 0.0
    %941 = vmatpush2.msra.mxu0 0.0
    %942 = vmatprep.subr.mxu0 0.0
    %943 = vmatpush2.msra.mxu0 0.0
    %944 = vmatprep.subr.mxu0 0.0
    %945 = vmatpush2.msra.mxu0 0.0
    %946 = vmatprep.subr.mxu0 0.0
    %947 = vmatpush2.msra.mxu0 0.0
    %948 = vmatprep.subr.mxu0 0.0
    %949 = vmatpush2.msra.mxu0 0.0
    %950 = vmatprep.mubr.f32.mxu0 0.0
    %951 = vmatmul.mubr.f32.gmra.mxu0 %v884
    %v952 = vpop.f32.mrf.mxu0
    %v953 = vadd.f32 0.0, %v952
    %v954 = vpop.f32.mrf.mxu0
    %v955 = vadd.f32 0.0, %v954
    %956 = vdwg.mxu0
    %958 = vrot.lane.b32.xlu0 %v880, 64
    %v959 = vpop.permute.xlu0 %958
    %v960 = vsel %vm201, %v959, 0
    %962 = vmatprep.subr.mxu0 0.0
    %963 = vmatpush1.msra.mxu0 0.0
    %964 = vmatprep.subr.mxu0 0.0
    %965 = vmatpush1.msra.mxu0 0.0
    %966 = vmatprep.subr.mxu0 0.0
    %967 = vmatpush1.msra.mxu0 0.0
    %968 = vmatprep.subr.mxu0 0.0
    %969 = vmatpush1.msra.mxu0 0.0
    %970 = vmatprep.subr.mxu0 0.0
    %971 = vmatpush1.msra.mxu0 0.0
    %972 = vmatprep.subr.mxu0 0.0
    %973 = vmatpush1.msra.mxu0 0.0
    %974 = vmatprep.subr.mxu0 0.0
    %975 = vmatpush1.msra.mxu0 0.0
    %976 = vmatprep.subr.mxu0 0.0
    %977 = vmatpush1.msra.mxu0 0.0
    %978 = vmatprep.subr.mxu0 %v315
    %979 = vmatpush1.msra.mxu0 %v314
    %980 = vmatprep.subr.mxu0 %v313
    %981 = vmatpush1.msra.mxu0 %v312
    %982 = vmatprep.subr.mxu0 %v311
    %983 = vmatpush1.msra.mxu0 %v310
    %984 = vmatprep.subr.mxu0 %v309
    %985 = vmatpush1.msra.mxu0 %v308
    %986 = vmatprep.subr.mxu0 %v307
    %987 = vmatpush1.msra.mxu0 %v306
    %988 = vmatprep.subr.mxu0 %v305
    %989 = vmatpush1.msra.mxu0 %v304
    %990 = vmatprep.subr.mxu0 %v303
    %991 = vmatpush1.msra.mxu0 %v302
    %992 = vmatprep.subr.mxu0 %v301
    %993 = vmatpush1.msra.mxu0 %v300
    %994 = vmatprep.subr.mxu0 0.0
    %995 = vmatpush2.msra.mxu0 0.0
    %996 = vmatprep.subr.mxu0 0.0
    %997 = vmatpush2.msra.mxu0 0.0
    %998 = vmatprep.subr.mxu0 0.0
    %999 = vmatpush2.msra.mxu0 0.0
    %1000 = vmatprep.subr.mxu0 0.0
    %1001 = vmatpush2.msra.mxu0 0.0
    %1002 = vmatprep.subr.mxu0 0.0
    %1003 = vmatpush2.msra.mxu0 0.0
    %1004 = vmatprep.subr.mxu0 0.0
    %1005 = vmatpush2.msra.mxu0 0.0
    %1006 = vmatprep.subr.mxu0 0.0
    %1007 = vmatpush2.msra.mxu0 0.0
    %1008 = vmatprep.subr.mxu0 0.0
    %1009 = vmatpush2.msra.mxu0 0.0
    %1010 = vmatprep.subr.mxu0 0.0
    %1011 = vmatpush2.msra.mxu0 0.0
    %1012 = vmatprep.subr.mxu0 0.0
    %1013 = vmatpush2.msra.mxu0 0.0
    %1014 = vmatprep.subr.mxu0 0.0
    %1015 = vmatpush2.msra.mxu0 0.0
    %1016 = vmatprep.subr.mxu0 0.0
    %1017 = vmatpush2.msra.mxu0 0.0
    %1018 = vmatprep.subr.mxu0 0.0
    %1019 = vmatpush2.msra.mxu0 0.0
    %1020 = vmatprep.subr.mxu0 0.0
    %1021 = vmatpush2.msra.mxu0 0.0
    %1022 = vmatprep.subr.mxu0 0.0
    %1023 = vmatpush2.msra.mxu0 0.0
    %1024 = vmatprep.subr.mxu0 0.0
    %1025 = vmatpush2.msra.mxu0 0.0
    %1026 = vmatprep.mubr.f32.mxu0 0.0
    %1027 = vmatmul.mubr.f32.gmra.mxu0 %v960
    %v1028 = vpop.f32.mrf.mxu0
    %v1029 = vadd.f32 %v953, %v1028
    %v1030 = vpop.f32.mrf.mxu0
    %v1031 = vadd.f32 %v955, %v1030
    %1032 = vdwg.mxu0
    %v1033 = vadd.f32 %v1029, %v484
    %v1034 = vadd.f32 %v1031, %v488
    %v1035 = vxor.u32 %v1033, 2147483648
    %v1036 = vmul.f32 %v1035, 1.442695
    %v1037 = vpow.pop %v1036
    %v1038 = vadd.f32 %v1037, 1.0
    %v1039 = vrcp.pop %v1038
    %v1040 = vmul.f32 1.0, %v1039
    %v1041 = vtanh.pop %v1034
    %v1042 = vxor.u32 %v1034, 2147483648
    %v1043 = vmul.f32 %v1042, 1.442695
    %v1044 = vpow.pop %v1043
    %v1045 = vadd.f32 %v1044, 1.0
    %v1046 = vrcp.pop %v1045
    %v1047 = vmul.f32 1.0, %v1046
    %v1048 = vmul.f32 %v1040, %v783
    %v1049 = vmul.f32 %v1040, %v1041
    %1051 = vrot.lane.b32.xlu0 %v1049, 64
    %v1052 = vpop.permute.xlu0 %1051
    %v1054 = vadd.f32 %v1048, %v1052
    %v1055 = vtanh.pop %v1054
    %v1056 = vmul.f32 %v1047, %v1055
    %1057 = vmatprep.subr.mxu0 0.0
    %1058 = vmatpush1.msra.mxu0 0.0
    %1059 = vmatprep.subr.mxu0 0.0
    %1060 = vmatpush1.msra.mxu0 0.0
    %1061 = vmatprep.subr.mxu0 0.0
    %1062 = vmatpush1.msra.mxu0 0.0
    %1063 = vmatprep.subr.mxu0 0.0
    %1064 = vmatpush1.msra.mxu0 0.0
    %1065 = vmatprep.subr.mxu0 0.0
    %1066 = vmatpush1.msra.mxu0 0.0
    %1067 = vmatprep.subr.mxu0 0.0
    %1068 = vmatpush1.msra.mxu0 0.0
    %1069 = vmatprep.subr.mxu0 0.0
    %1070 = vmatpush1.msra.mxu0 0.0
    %1071 = vmatprep.subr.mxu0 0.0
    %1072 = vmatpush1.msra.mxu0 0.0
    %1073 = vmatprep.subr.mxu0 %v200
    %1074 = vmatpush1.msra.mxu0 %v199
    %1075 = vmatprep.subr.mxu0 %v198
    %1076 = vmatpush1.msra.mxu0 %v197
    %1077 = vmatprep.subr.mxu0 %v196
    %1078 = vmatpush1.msra.mxu0 %v195
    %1079 = vmatprep.subr.mxu0 %v194
    %1080 = vmatpush1.msra.mxu0 %v193
    %1081 = vmatprep.subr.mxu0 %v192
    %1082 = vmatpush1.msra.mxu0 %v191
    %1083 = vmatprep.subr.mxu0 %v190
    %1084 = vmatpush1.msra.mxu0 %v189
    %1085 = vmatprep.subr.mxu0 %v188
    %1086 = vmatpush1.msra.mxu0 %v187
    %1087 = vmatprep.subr.mxu0 %v186
    %1088 = vmatpush1.msra.mxu0 %v185
    %1089 = vmatprep.subr.mxu0 0.0
    %1090 = vmatpush2.msra.mxu0 0.0
    %1091 = vmatprep.subr.mxu0 0.0
    %1092 = vmatpush2.msra.mxu0 0.0
    %1093 = vmatprep.subr.mxu0 0.0
    %1094 = vmatpush2.msra.mxu0 0.0
    %1095 = vmatprep.subr.mxu0 0.0
    %1096 = vmatpush2.msra.mxu0 0.0
    %1097 = vmatprep.subr.mxu0 0.0
    %1098 = vmatpush2.msra.mxu0 0.0
    %1099 = vmatprep.subr.mxu0 0.0
    %1100 = vmatpush2.msra.mxu0 0.0
    %1101 = vmatprep.subr.mxu0 0.0
    %1102 = vmatpush2.msra.mxu0 0.0
    %1103 = vmatprep.subr.mxu0 0.0
    %1104 = vmatpush2.msra.mxu0 0.0
    %1105 = vmatprep.subr.mxu0 0.0
    %1106 = vmatpush2.msra.mxu0 0.0
    %1107 = vmatprep.subr.mxu0 0.0
    %1108 = vmatpush2.msra.mxu0 0.0
    %1109 = vmatprep.subr.mxu0 0.0
    %1110 = vmatpush2.msra.mxu0 0.0
    %1111 = vmatprep.subr.mxu0 0.0
    %1112 = vmatpush2.msra.mxu0 0.0
    %1113 = vmatprep.subr.mxu0 0.0
    %1114 = vmatpush2.msra.mxu0 0.0
    %1115 = vmatprep.subr.mxu0 0.0
    %1116 = vmatpush2.msra.mxu0 0.0
    %1117 = vmatprep.subr.mxu0 0.0
    %1118 = vmatpush2.msra.mxu0 0.0
    %1119 = vmatprep.subr.mxu0 0.0
    %1120 = vmatpush2.msra.mxu0 0.0
    %1121 = vmatprep.mubr.f32.mxu0 0.0
    %1122 = vmatmul.mubr.f32.gmra.mxu0 %v960
    %v1123 = vpop.f32.mrf.mxu0
    %v1124 = vadd.f32 0.0, %v1123
    %v1125 = vpop.f32.mrf.mxu0
    %v1126 = vadd.f32 0.0, %v1125
    %1127 = vdwg.mxu0
    %v1128 = vadd.f32 %v139, %v1124
    %v1129 = vadd.f32 %v140, %v1126
    %v1130 = vxor.u32 %v1128, 2147483648
    %v1131 = vmul.f32 %v1130, 1.442695
    %v1132 = vpow.pop %v1131
    %v1133 = vadd.f32 %v1132, 1.0
    %v1134 = vrcp.pop %v1133
    %v1135 = vmul.f32 1.0, %v1134
    %v1136 = vtanh.pop %v1129
    %v1137 = vxor.u32 %v1129, 2147483648
    %v1138 = vmul.f32 %v1137, 1.442695
    %v1139 = vpow.pop %v1138
    %v1140 = vadd.f32 %v1139, 1.0
    %v1141 = vrcp.pop %v1140
    %v1142 = vmul.f32 1.0, %v1141
    %v1143 = vmul.f32 %v1135, %v878
    %v1144 = vmul.f32 %v1135, %v1136
    %1146 = vrot.lane.b32.xlu0 %v1144, 64
    %v1147 = vpop.permute.xlu0 %1146
    %v1149 = vadd.f32 %v1143, %v1147
    %v1150 = vtanh.pop %v1149
    %v1151 = vmul.f32 %v1142, %v1150
    %1153 = vrot.lane.b32.xlu0 %v1056, 64
    %v1154 = vpop.permute.xlu0 %1153
    %v1155 = vsel %vm201, %v1154, 0
    %1157 = vmatprep.subr.mxu0 0.0
    %1158 = vmatpush1.msra.mxu0 0.0
    %1159 = vmatprep.subr.mxu0 0.0
    %1160 = vmatpush1.msra.mxu0 0.0
    %1161 = vmatprep.subr.mxu0 0.0
    %1162 = vmatpush1.msra.mxu0 0.0
    %1163 = vmatprep.subr.mxu0 0.0
    %1164 = vmatpush1.msra.mxu0 0.0
    %1165 = vmatprep.subr.mxu0 0.0
    %1166 = vmatpush1.msra.mxu0 0.0
    %1167 = vmatprep.subr.mxu0 0.0
    %1168 = vmatpush1.msra.mxu0 0.0
    %1169 = vmatprep.subr.mxu0 0.0
    %1170 = vmatpush1.msra.mxu0 0.0
    %1171 = vmatprep.subr.mxu0 0.0
    %1172 = vmatpush1.msra.mxu0 0.0
    %1173 = vmatprep.subr.mxu0 %v331
    %1174 = vmatpush1.msra.mxu0 %v330
    %1175 = vmatprep.subr.mxu0 %v329
    %1176 = vmatpush1.msra.mxu0 %v328
    %1177 = vmatprep.subr.mxu0 %v327
    %1178 = vmatpush1.msra.mxu0 %v326
    %1179 = vmatprep.subr.mxu0 %v325
    %1180 = vmatpush1.msra.mxu0 %v324
    %1181 = vmatprep.subr.mxu0 %v323
    %1182 = vmatpush1.msra.mxu0 %v322
    %1183 = vmatprep.subr.mxu0 %v321
    %1184 = vmatpush1.msra.mxu0 %v320
    %1185 = vmatprep.subr.mxu0 %v319
    %1186 = vmatpush1.msra.mxu0 %v318
    %1187 = vmatprep.subr.mxu0 %v317
    %1188 = vmatpush1.msra.mxu0 %v316
    %1189 = vmatprep.subr.mxu0 0.0
    %1190 = vmatpush2.msra.mxu0 0.0
    %1191 = vmatprep.subr.mxu0 0.0
    %1192 = vmatpush2.msra.mxu0 0.0
    %1193 = vmatprep.subr.mxu0 0.0
    %1194 = vmatpush2.msra.mxu0 0.0
    %1195 = vmatprep.subr.mxu0 0.0
    %1196 = vmatpush2.msra.mxu0 0.0
    %1197 = vmatprep.subr.mxu0 0.0
    %1198 = vmatpush2.msra.mxu0 0.0
    %1199 = vmatprep.subr.mxu0 0.0
    %1200 = vmatpush2.msra.mxu0 0.0
    %1201 = vmatprep.subr.mxu0 0.0
    %1202 = vmatpush2.msra.mxu0 0.0
    %1203 = vmatprep.subr.mxu0 0.0
    %1204 = vmatpush2.msra.mxu0 0.0
    %1205 = vmatprep.subr.mxu0 0.0
    %1206 = vmatpush2.msra.mxu0 0.0
    %1207 = vmatprep.subr.mxu0 0.0
    %1208 = vmatpush2.msra.mxu0 0.0
    %1209 = vmatprep.subr.mxu0 0.0
    %1210 = vmatpush2.msra.mxu0 0.0
    %1211 = vmatprep.subr.mxu0 0.0
    %1212 = vmatpush2.msra.mxu0 0.0
    %1213 = vmatprep.subr.mxu0 0.0
    %1214 = vmatpush2.msra.mxu0 0.0
    %1215 = vmatprep.subr.mxu0 0.0
    %1216 = vmatpush2.msra.mxu0 0.0
    %1217 = vmatprep.subr.mxu0 0.0
    %1218 = vmatpush2.msra.mxu0 0.0
    %1219 = vmatprep.subr.mxu0 0.0
    %1220 = vmatpush2.msra.mxu0 0.0
    %1221 = vmatprep.mubr.f32.mxu0 0.0
    %1222 = vmatmul.mubr.f32.gmra.mxu0 %v1155
    %v1223 = vpop.f32.mrf.mxu0
    %v1224 = vadd.f32 0.0, %v1223
    %v1225 = vpop.f32.mrf.mxu0
    %v1226 = vadd.f32 0.0, %v1225
    %1227 = vdwg.mxu0
    %1229 = vrot.lane.b32.xlu0 %v1151, 64
    %v1230 = vpop.permute.xlu0 %1229
    %v1231 = vsel %vm201, %v1230, 0
    %1233 = vmatprep.subr.mxu0 0.0
    %1234 = vmatpush1.msra.mxu0 0.0
    %1235 = vmatprep.subr.mxu0 0.0
    %1236 = vmatpush1.msra.mxu0 0.0
    %1237 = vmatprep.subr.mxu0 0.0
    %1238 = vmatpush1.msra.mxu0 0.0
    %1239 = vmatprep.subr.mxu0 0.0
    %1240 = vmatpush1.msra.mxu0 0.0
    %1241 = vmatprep.subr.mxu0 0.0
    %1242 = vmatpush1.msra.mxu0 0.0
    %1243 = vmatprep.subr.mxu0 0.0
    %1244 = vmatpush1.msra.mxu0 0.0
    %1245 = vmatprep.subr.mxu0 0.0
    %1246 = vmatpush1.msra.mxu0 0.0
    %1247 = vmatprep.subr.mxu0 0.0
    %1248 = vmatpush1.msra.mxu0 0.0
    %1249 = vmatprep.subr.mxu0 %v315
    %1250 = vmatpush1.msra.mxu0 %v314
    %1251 = vmatprep.subr.mxu0 %v313
    %1252 = vmatpush1.msra.mxu0 %v312
    %1253 = vmatprep.subr.mxu0 %v311
    %1254 = vmatpush1.msra.mxu0 %v310
    %1255 = vmatprep.subr.mxu0 %v309
    %1256 = vmatpush1.msra.mxu0 %v308
    %1257 = vmatprep.subr.mxu0 %v307
    %1258 = vmatpush1.msra.mxu0 %v306
    %1259 = vmatprep.subr.mxu0 %v305
    %1260 = vmatpush1.msra.mxu0 %v304
    %1261 = vmatprep.subr.mxu0 %v303
    %1262 = vmatpush1.msra.mxu0 %v302
    %1263 = vmatprep.subr.mxu0 %v301
    %1264 = vmatpush1.msra.mxu0 %v300
    %1265 = vmatprep.subr.mxu0 0.0
    %1266 = vmatpush2.msra.mxu0 0.0
    %1267 = vmatprep.subr.mxu0 0.0
    %1268 = vmatpush2.msra.mxu0 0.0
    %1269 = vmatprep.subr.mxu0 0.0
    %1270 = vmatpush2.msra.mxu0 0.0
    %1271 = vmatprep.subr.mxu0 0.0
    %1272 = vmatpush2.msra.mxu0 0.0
    %1273 = vmatprep.subr.mxu0 0.0
    %1274 = vmatpush2.msra.mxu0 0.0
    %1275 = vmatprep.subr.mxu0 0.0
    %1276 = vmatpush2.msra.mxu0 0.0
    %1277 = vmatprep.subr.mxu0 0.0
    %1278 = vmatpush2.msra.mxu0 0.0
    %1279 = vmatprep.subr.mxu0 0.0
    %1280 = vmatpush2.msra.mxu0 0.0
    %1281 = vmatprep.subr.mxu0 0.0
    %1282 = vmatpush2.msra.mxu0 0.0
    %1283 = vmatprep.subr.mxu0 0.0
    %1284 = vmatpush2.msra.mxu0 0.0
    %1285 = vmatprep.subr.mxu0 0.0
    %1286 = vmatpush2.msra.mxu0 0.0
    %1287 = vmatprep.subr.mxu0 0.0
    %1288 = vmatpush2.msra.mxu0 0.0
    %1289 = vmatprep.subr.mxu0 0.0
    %1290 = vmatpush2.msra.mxu0 0.0
    %1291 = vmatprep.subr.mxu0 0.0
    %1292 = vmatpush2.msra.mxu0 0.0
    %1293 = vmatprep.subr.mxu0 0.0
    %1294 = vmatpush2.msra.mxu0 0.0
    %1295 = vmatprep.subr.mxu0 0.0
    %1296 = vmatpush2.msra.mxu0 0.0
    %1297 = vmatprep.mubr.f32.mxu0 0.0
    %1298 = vmatmul.mubr.f32.gmra.mxu0 %v1231
    %v1299 = vpop.f32.mrf.mxu0
    %v1300 = vadd.f32 %v1224, %v1299
    %v1301 = vpop.f32.mrf.mxu0
    %v1302 = vadd.f32 %v1226, %v1301
    %1303 = vdwg.mxu0
    %v1304 = vadd.f32 %v1300, %v484
    %v1305 = vadd.f32 %v1302, %v488
    %v1306 = vxor.u32 %v1304, 2147483648
    %v1307 = vmul.f32 %v1306, 1.442695
    %v1308 = vpow.pop %v1307
    %v1309 = vadd.f32 %v1308, 1.0
    %v1310 = vrcp.pop %v1309
    %v1311 = vmul.f32 1.0, %v1310
    %v1312 = vtanh.pop %v1305
    %v1313 = vxor.u32 %v1305, 2147483648
    %v1314 = vmul.f32 %v1313, 1.442695
    %v1315 = vpow.pop %v1314
    %v1316 = vadd.f32 %v1315, 1.0
    %v1317 = vrcp.pop %v1316
    %v1318 = vmul.f32 1.0, %v1317
    %v1319 = vmul.f32 %v1311, %v1054
    %v1320 = vmul.f32 %v1311, %v1312
    %1322 = vrot.lane.b32.xlu0 %v1320, 64
    %v1323 = vpop.permute.xlu0 %1322
    %v1325 = vadd.f32 %v1319, %v1323
    %v1326 = vtanh.pop %v1325
    %v1327 = vmul.f32 %v1318, %v1326
    %1328 = vmatprep.subr.mxu0 0.0
    %1329 = vmatpush1.msra.mxu0 0.0
    %1330 = vmatprep.subr.mxu0 0.0
    %1331 = vmatpush1.msra.mxu0 0.0
    %1332 = vmatprep.subr.mxu0 0.0
    %1333 = vmatpush1.msra.mxu0 0.0
    %1334 = vmatprep.subr.mxu0 0.0
    %1335 = vmatpush1.msra.mxu0 0.0
    %1336 = vmatprep.subr.mxu0 0.0
    %1337 = vmatpush1.msra.mxu0 0.0
    %1338 = vmatprep.subr.mxu0 0.0
    %1339 = vmatpush1.msra.mxu0 0.0
    %1340 = vmatprep.subr.mxu0 0.0
    %1341 = vmatpush1.msra.mxu0 0.0
    %1342 = vmatprep.subr.mxu0 0.0
    %1343 = vmatpush1.msra.mxu0 0.0
    %1344 = vmatprep.subr.mxu0 %v200
    %1345 = vmatpush1.msra.mxu0 %v199
    %1346 = vmatprep.subr.mxu0 %v198
    %1347 = vmatpush1.msra.mxu0 %v197
    %1348 = vmatprep.subr.mxu0 %v196
    %1349 = vmatpush1.msra.mxu0 %v195
    %1350 = vmatprep.subr.mxu0 %v194
    %1351 = vmatpush1.msra.mxu0 %v193
    %1352 = vmatprep.subr.mxu0 %v192
    %1353 = vmatpush1.msra.mxu0 %v191
    %1354 = vmatprep.subr.mxu0 %v190
    %1355 = vmatpush1.msra.mxu0 %v189
    %1356 = vmatprep.subr.mxu0 %v188
    %1357 = vmatpush1.msra.mxu0 %v187
    %1358 = vmatprep.subr.mxu0 %v186
    %1359 = vmatpush1.msra.mxu0 %v185
    %1360 = vmatprep.subr.mxu0 0.0
    %1361 = vmatpush2.msra.mxu0 0.0
    %1362 = vmatprep.subr.mxu0 0.0
    %1363 = vmatpush2.msra.mxu0 0.0
    %1364 = vmatprep.subr.mxu0 0.0
    %1365 = vmatpush2.msra.mxu0 0.0
    %1366 = vmatprep.subr.mxu0 0.0
    %1367 = vmatpush2.msra.mxu0 0.0
    %1368 = vmatprep.subr.mxu0 0.0
    %1369 = vmatpush2.msra.mxu0 0.0
    %1370 = vmatprep.subr.mxu0 0.0
    %1371 = vmatpush2.msra.mxu0 0.0
    %1372 = vmatprep.subr.mxu0 0.0
    %1373 = vmatpush2.msra.mxu0 0.0
    %1374 = vmatprep.subr.mxu0 0.0
    %1375 = vmatpush2.msra.mxu0 0.0
    %1376 = vmatprep.subr.mxu0 0.0
    %1377 = vmatpush2.msra.mxu0 0.0
    %1378 = vmatprep.subr.mxu0 0.0
    %1379 = vmatpush2.msra.mxu0 0.0
    %1380 = vmatprep.subr.mxu0 0.0
    %1381 = vmatpush2.msra.mxu0 0.0
    %1382 = vmatprep.subr.mxu0 0.0
    %1383 = vmatpush2.msra.mxu0 0.0
    %1384 = vmatprep.subr.mxu0 0.0
    %1385 = vmatpush2.msra.mxu0 0.0
    %1386 = vmatprep.subr.mxu0 0.0
    %1387 = vmatpush2.msra.mxu0 0.0
    %1388 = vmatprep.subr.mxu0 0.0
    %1389 = vmatpush2.msra.mxu0 0.0
    %1390 = vmatprep.subr.mxu0 0.0
    %1391 = vmatpush2.msra.mxu0 0.0
    %1392 = vmatprep.mubr.f32.mxu0 0.0
    %1393 = vmatmul.mubr.f32.gmra.mxu0 %v1231
    %v1394 = vpop.f32.mrf.mxu0
    %v1395 = vadd.f32 0.0, %v1394
    %v1396 = vpop.f32.mrf.mxu0
    %v1397 = vadd.f32 0.0, %v1396
    %1398 = vdwg.mxu0
    %v1399 = vadd.f32 %v150, %v1395
    %v1400 = vadd.f32 %v151, %v1397
    %v1401 = vxor.u32 %v1399, 2147483648
    %v1402 = vmul.f32 %v1401, 1.442695
    %v1403 = vpow.pop %v1402
    %v1404 = vadd.f32 %v1403, 1.0
    %v1405 = vrcp.pop %v1404
    %v1406 = vmul.f32 1.0, %v1405
    %v1407 = vtanh.pop %v1400
    %v1408 = vxor.u32 %v1400, 2147483648
    %v1409 = vmul.f32 %v1408, 1.442695
    %v1410 = vpow.pop %v1409
    %v1411 = vadd.f32 %v1410, 1.0
    %v1412 = vrcp.pop %v1411
    %v1413 = vmul.f32 1.0, %v1412
    %v1414 = vmul.f32 %v1406, %v1149
    %v1415 = vmul.f32 %v1406, %v1407
    %1417 = vrot.lane.b32.xlu0 %v1415, 64
    %v1418 = vpop.permute.xlu0 %1417
    %v1420 = vadd.f32 %v1414, %v1418
    %v1421 = vtanh.pop %v1420
    %v1422 = vmul.f32 %v1413, %v1421
    %1424 = vrot.lane.b32.xlu0 %v1327, 64
    %v1425 = vpop.permute.xlu0 %1424
    %v1426 = vsel %vm201, %v1425, 0
    %1428 = vmatprep.subr.mxu0 0.0
    %1429 = vmatpush1.msra.mxu0 0.0
    %1430 = vmatprep.subr.mxu0 0.0
    %1431 = vmatpush1.msra.mxu0 0.0
    %1432 = vmatprep.subr.mxu0 0.0
    %1433 = vmatpush1.msra.mxu0 0.0
    %1434 = vmatprep.subr.mxu0 0.0
    %1435 = vmatpush1.msra.mxu0 0.0
    %1436 = vmatprep.subr.mxu0 0.0
    %1437 = vmatpush1.msra.mxu0 0.0
    %1438 = vmatprep.subr.mxu0 0.0
    %1439 = vmatpush1.msra.mxu0 0.0
    %1440 = vmatprep.subr.mxu0 0.0
    %1441 = vmatpush1.msra.mxu0 0.0
    %1442 = vmatprep.subr.mxu0 0.0
    %1443 = vmatpush1.msra.mxu0 0.0
    %1444 = vmatprep.subr.mxu0 %v331
    %1445 = vmatpush1.msra.mxu0 %v330
    %1446 = vmatprep.subr.mxu0 %v329
    %1447 = vmatpush1.msra.mxu0 %v328
    %1448 = vmatprep.subr.mxu0 %v327
    %1449 = vmatpush1.msra.mxu0 %v326
    %1450 = vmatprep.subr.mxu0 %v325
    %1451 = vmatpush1.msra.mxu0 %v324
    %1452 = vmatprep.subr.mxu0 %v323
    %1453 = vmatpush1.msra.mxu0 %v322
    %1454 = vmatprep.subr.mxu0 %v321
    %1455 = vmatpush1.msra.mxu0 %v320
    %1456 = vmatprep.subr.mxu0 %v319
    %1457 = vmatpush1.msra.mxu0 %v318
    %1458 = vmatprep.subr.mxu0 %v317
    %1459 = vmatpush1.msra.mxu0 %v316
    %1460 = vmatprep.subr.mxu0 0.0
    %1461 = vmatpush2.msra.mxu0 0.0
    %1462 = vmatprep.subr.mxu0 0.0
    %1463 = vmatpush2.msra.mxu0 0.0
    %1464 = vmatprep.subr.mxu0 0.0
    %1465 = vmatpush2.msra.mxu0 0.0
    %1466 = vmatprep.subr.mxu0 0.0
    %1467 = vmatpush2.msra.mxu0 0.0
    %1468 = vmatprep.subr.mxu0 0.0
    %1469 = vmatpush2.msra.mxu0 0.0
    %1470 = vmatprep.subr.mxu0 0.0
    %1471 = vmatpush2.msra.mxu0 0.0
    %1472 = vmatprep.subr.mxu0 0.0
    %1473 = vmatpush2.msra.mxu0 0.0
    %1474 = vmatprep.subr.mxu0 0.0
    %1475 = vmatpush2.msra.mxu0 0.0
    %1476 = vmatprep.subr.mxu0 0.0
    %1477 = vmatpush2.msra.mxu0 0.0
    %1478 = vmatprep.subr.mxu0 0.0
    %1479 = vmatpush2.msra.mxu0 0.0
    %1480 = vmatprep.subr.mxu0 0.0
    %1481 = vmatpush2.msra.mxu0 0.0
    %1482 = vmatprep.subr.mxu0 0.0
    %1483 = vmatpush2.msra.mxu0 0.0
    %1484 = vmatprep.subr.mxu0 0.0
    %1485 = vmatpush2.msra.mxu0 0.0
    %1486 = vmatprep.subr.mxu0 0.0
    %1487 = vmatpush2.msra.mxu0 0.0
    %1488 = vmatprep.subr.mxu0 0.0
    %1489 = vmatpush2.msra.mxu0 0.0
    %1490 = vmatprep.subr.mxu0 0.0
    %1491 = vmatpush2.msra.mxu0 0.0
    %1492 = vmatprep.mubr.f32.mxu0 0.0
    %1493 = vmatmul.mubr.f32.gmra.mxu0 %v1426
    %v1494 = vpop.f32.mrf.mxu0
    %v1495 = vadd.f32 0.0, %v1494
    %v1496 = vpop.f32.mrf.mxu0
    %v1497 = vadd.f32 0.0, %v1496
    %1498 = vdwg.mxu0
    %1500 = vrot.lane.b32.xlu0 %v1422, 64
    %v1501 = vpop.permute.xlu0 %1500
    %v1502 = vsel %vm201, %v1501, 0
    %1504 = vmatprep.subr.mxu0 0.0
    %1505 = vmatpush1.msra.mxu0 0.0
    %1506 = vmatprep.subr.mxu0 0.0
    %1507 = vmatpush1.msra.mxu0 0.0
    %1508 = vmatprep.subr.mxu0 0.0
    %1509 = vmatpush1.msra.mxu0 0.0
    %1510 = vmatprep.subr.mxu0 0.0
    %1511 = vmatpush1.msra.mxu0 0.0
    %1512 = vmatprep.subr.mxu0 0.0
    %1513 = vmatpush1.msra.mxu0 0.0
    %1514 = vmatprep.subr.mxu0 0.0
    %1515 = vmatpush1.msra.mxu0 0.0
    %1516 = vmatprep.subr.mxu0 0.0
    %1517 = vmatpush1.msra.mxu0 0.0
    %1518 = vmatprep.subr.mxu0 0.0
    %1519 = vmatpush1.msra.mxu0 0.0
    %1520 = vmatprep.subr.mxu0 %v315
    %1521 = vmatpush1.msra.mxu0 %v314
    %1522 = vmatprep.subr.mxu0 %v313
    %1523 = vmatpush1.msra.mxu0 %v312
    %1524 = vmatprep.subr.mxu0 %v311
    %1525 = vmatpush1.msra.mxu0 %v310
    %1526 = vmatprep.subr.mxu0 %v309
    %1527 = vmatpush1.msra.mxu0 %v308
    %1528 = vmatprep.subr.mxu0 %v307
    %1529 = vmatpush1.msra.mxu0 %v306
    %1530 = vmatprep.subr.mxu0 %v305
    %1531 = vmatpush1.msra.mxu0 %v304
    %1532 = vmatprep.subr.mxu0 %v303
    %1533 = vmatpush1.msra.mxu0 %v302
    %1534 = vmatprep.subr.mxu0 %v301
    %1535 = vmatpush1.msra.mxu0 %v300
    %1536 = vmatprep.subr.mxu0 0.0
    %1537 = vmatpush2.msra.mxu0 0.0
    %1538 = vmatprep.subr.mxu0 0.0
    %1539 = vmatpush2.msra.mxu0 0.0
    %1540 = vmatprep.subr.mxu0 0.0
    %1541 = vmatpush2.msra.mxu0 0.0
    %1542 = vmatprep.subr.mxu0 0.0
    %1543 = vmatpush2.msra.mxu0 0.0
    %1544 = vmatprep.subr.mxu0 0.0
    %1545 = vmatpush2.msra.mxu0 0.0
    %1546 = vmatprep.subr.mxu0 0.0
    %1547 = vmatpush2.msra.mxu0 0.0
    %1548 = vmatprep.subr.mxu0 0.0
    %1549 = vmatpush2.msra.mxu0 0.0
    %1550 = vmatprep.subr.mxu0 0.0
    %1551 = vmatpush2.msra.mxu0 0.0
    %1552 = vmatprep.subr.mxu0 0.0
    %1553 = vmatpush2.msra.mxu0 0.0
    %1554 = vmatprep.subr.mxu0 0.0
    %1555 = vmatpush2.msra.mxu0 0.0
    %1556 = vmatprep.subr.mxu0 0.0
    %1557 = vmatpush2.msra.mxu0 0.0
    %1558 = vmatprep.subr.mxu0 0.0
    %1559 = vmatpush2.msra.mxu0 0.0
    %1560 = vmatprep.subr.mxu0 0.0
    %1561 = vmatpush2.msra.mxu0 0.0
    %1562 = vmatprep.subr.mxu0 0.0
    %1563 = vmatpush2.msra.mxu0 0.0
    %1564 = vmatprep.subr.mxu0 0.0
    %1565 = vmatpush2.msra.mxu0 0.0
    %1566 = vmatprep.subr.mxu0 0.0
    %1567 = vmatpush2.msra.mxu0 0.0
    %1568 = vmatprep.mubr.f32.mxu0 0.0
    %1569 = vmatmul.mubr.f32.gmra.mxu0 %v1502
    %v1570 = vpop.f32.mrf.mxu0
    %v1571 = vadd.f32 %v1495, %v1570
    %v1572 = vpop.f32.mrf.mxu0
    %v1573 = vadd.f32 %v1497, %v1572
    %1574 = vdwg.mxu0
    %v1575 = vadd.f32 %v1571, %v484
    %v1576 = vadd.f32 %v1573, %v488
    %v1577 = vxor.u32 %v1575, 2147483648
    %v1578 = vmul.f32 %v1577, 1.442695
    %v1579 = vpow.pop %v1578
    %v1580 = vadd.f32 %v1579, 1.0
    %v1581 = vrcp.pop %v1580
    %v1582 = vmul.f32 1.0, %v1581
    %v1583 = vtanh.pop %v1576
    %v1584 = vxor.u32 %v1576, 2147483648
    %v1585 = vmul.f32 %v1584, 1.442695
    %v1586 = vpow.pop %v1585
    %v1587 = vadd.f32 %v1586, 1.0
    %v1588 = vrcp.pop %v1587
    %v1589 = vmul.f32 1.0, %v1588
    %v1590 = vmul.f32 %v1582, %v1325
    %v1591 = vmul.f32 %v1582, %v1583
    %1593 = vrot.lane.b32.xlu0 %v1591, 64
    %v1594 = vpop.permute.xlu0 %1593
    %v1596 = vadd.f32 %v1590, %v1594
    %v1597 = vtanh.pop %v1596
    %v1598 = vmul.f32 %v1589, %v1597
    %1599 = vmatprep.subr.mxu0 0.0
    %1600 = vmatpush1.msra.mxu0 0.0
    %1601 = vmatprep.subr.mxu0 0.0
    %1602 = vmatpush1.msra.mxu0 0.0
    %1603 = vmatprep.subr.mxu0 0.0
    %1604 = vmatpush1.msra.mxu0 0.0
    %1605 = vmatprep.subr.mxu0 0.0
    %1606 = vmatpush1.msra.mxu0 0.0
    %1607 = vmatprep.subr.mxu0 0.0
    %1608 = vmatpush1.msra.mxu0 0.0
    %1609 = vmatprep.subr.mxu0 0.0
    %1610 = vmatpush1.msra.mxu0 0.0
    %1611 = vmatprep.subr.mxu0 0.0
    %1612 = vmatpush1.msra.mxu0 0.0
    %1613 = vmatprep.subr.mxu0 0.0
    %1614 = vmatpush1.msra.mxu0 0.0
    %1615 = vmatprep.subr.mxu0 %v200
    %1616 = vmatpush1.msra.mxu0 %v199
    %1617 = vmatprep.subr.mxu0 %v198
    %1618 = vmatpush1.msra.mxu0 %v197
    %1619 = vmatprep.subr.mxu0 %v196
    %1620 = vmatpush1.msra.mxu0 %v195
    %1621 = vmatprep.subr.mxu0 %v194
    %1622 = vmatpush1.msra.mxu0 %v193
    %1623 = vmatprep.subr.mxu0 %v192
    %1624 = vmatpush1.msra.mxu0 %v191
    %1625 = vmatprep.subr.mxu0 %v190
    %1626 = vmatpush1.msra.mxu0 %v189
    %1627 = vmatprep.subr.mxu0 %v188
    %1628 = vmatpush1.msra.mxu0 %v187
    %1629 = vmatprep.subr.mxu0 %v186
    %1630 = vmatpush1.msra.mxu0 %v185
    %1631 = vmatprep.subr.mxu0 0.0
    %1632 = vmatpush2.msra.mxu0 0.0
    %1633 = vmatprep.subr.mxu0 0.0
    %1634 = vmatpush2.msra.mxu0 0.0
    %1635 = vmatprep.subr.mxu0 0.0
    %1636 = vmatpush2.msra.mxu0 0.0
    %1637 = vmatprep.subr.mxu0 0.0
    %1638 = vmatpush2.msra.mxu0 0.0
    %1639 = vmatprep.subr.mxu0 0.0
    %1640 = vmatpush2.msra.mxu0 0.0
    %1641 = vmatprep.subr.mxu0 0.0
    %1642 = vmatpush2.msra.mxu0 0.0
    %1643 = vmatprep.subr.mxu0 0.0
    %1644 = vmatpush2.msra.mxu0 0.0
    %1645 = vmatprep.subr.mxu0 0.0
    %1646 = vmatpush2.msra.mxu0 0.0
    %1647 = vmatprep.subr.mxu0 0.0
    %1648 = vmatpush2.msra.mxu0 0.0
    %1649 = vmatprep.subr.mxu0 0.0
    %1650 = vmatpush2.msra.mxu0 0.0
    %1651 = vmatprep.subr.mxu0 0.0
    %1652 = vmatpush2.msra.mxu0 0.0
    %1653 = vmatprep.subr.mxu0 0.0
    %1654 = vmatpush2.msra.mxu0 0.0
    %1655 = vmatprep.subr.mxu0 0.0
    %1656 = vmatpush2.msra.mxu0 0.0
    %1657 = vmatprep.subr.mxu0 0.0
    %1658 = vmatpush2.msra.mxu0 0.0
    %1659 = vmatprep.subr.mxu0 0.0
    %1660 = vmatpush2.msra.mxu0 0.0
    %1661 = vmatprep.subr.mxu0 0.0
    %1662 = vmatpush2.msra.mxu0 0.0
    %1663 = vmatprep.mubr.f32.mxu0 0.0
    %1664 = vmatmul.mubr.f32.gmra.mxu0 %v1502
    %v1665 = vpop.f32.mrf.mxu0
    %v1666 = vadd.f32 0.0, %v1665
    %v1667 = vpop.f32.mrf.mxu0
    %v1668 = vadd.f32 0.0, %v1667
    %1669 = vdwg.mxu0
    %v1670 = vadd.f32 %v161, %v1666
    %v1671 = vadd.f32 %v162, %v1668
    %v1672 = vxor.u32 %v1670, 2147483648
    %v1673 = vmul.f32 %v1672, 1.442695
    %v1674 = vpow.pop %v1673
    %v1675 = vadd.f32 %v1674, 1.0
    %v1676 = vrcp.pop %v1675
    %v1677 = vmul.f32 1.0, %v1676
    %v1678 = vtanh.pop %v1671
    %v1679 = vxor.u32 %v1671, 2147483648
    %v1680 = vmul.f32 %v1679, 1.442695
    %v1681 = vpow.pop %v1680
    %v1682 = vadd.f32 %v1681, 1.0
    %v1683 = vrcp.pop %v1682
    %v1684 = vmul.f32 1.0, %v1683
    %v1685 = vmul.f32 %v1677, %v1420
    %v1686 = vmul.f32 %v1677, %v1678
    %1688 = vrot.lane.b32.xlu0 %v1686, 64
    %v1689 = vpop.permute.xlu0 %1688
    %v1691 = vadd.f32 %v1685, %v1689
    %v1692 = vtanh.pop %v1691
    %v1693 = vmul.f32 %v1684, %v1692
    %1695 = vrot.lane.b32.xlu0 %v1598, 64
    %v1696 = vpop.permute.xlu0 %1695
    %v1697 = vsel %vm201, %v1696, 0
    %1699 = vmatprep.subr.mxu0 0.0
    %1700 = vmatpush1.msra.mxu0 0.0
    %1701 = vmatprep.subr.mxu0 0.0
    %1702 = vmatpush1.msra.mxu0 0.0
    %1703 = vmatprep.subr.mxu0 0.0
    %1704 = vmatpush1.msra.mxu0 0.0
    %1705 = vmatprep.subr.mxu0 0.0
    %1706 = vmatpush1.msra.mxu0 0.0
    %1707 = vmatprep.subr.mxu0 0.0
    %1708 = vmatpush1.msra.mxu0 0.0
    %1709 = vmatprep.subr.mxu0 0.0
    %1710 = vmatpush1.msra.mxu0 0.0
    %1711 = vmatprep.subr.mxu0 0.0
    %1712 = vmatpush1.msra.mxu0 0.0
    %1713 = vmatprep.subr.mxu0 0.0
    %1714 = vmatpush1.msra.mxu0 0.0
    %1715 = vmatprep.subr.mxu0 %v331
    %1716 = vmatpush1.msra.mxu0 %v330
    %1717 = vmatprep.subr.mxu0 %v329
    %1718 = vmatpush1.msra.mxu0 %v328
    %1719 = vmatprep.subr.mxu0 %v327
    %1720 = vmatpush1.msra.mxu0 %v326
    %1721 = vmatprep.subr.mxu0 %v325
    %1722 = vmatpush1.msra.mxu0 %v324
    %1723 = vmatprep.subr.mxu0 %v323
    %1724 = vmatpush1.msra.mxu0 %v322
    %1725 = vmatprep.subr.mxu0 %v321
    %1726 = vmatpush1.msra.mxu0 %v320
    %1727 = vmatprep.subr.mxu0 %v319
    %1728 = vmatpush1.msra.mxu0 %v318
    %1729 = vmatprep.subr.mxu0 %v317
    %1730 = vmatpush1.msra.mxu0 %v316
    %1731 = vmatprep.subr.mxu0 0.0
    %1732 = vmatpush2.msra.mxu0 0.0
    %1733 = vmatprep.subr.mxu0 0.0
    %1734 = vmatpush2.msra.mxu0 0.0
    %1735 = vmatprep.subr.mxu0 0.0
    %1736 = vmatpush2.msra.mxu0 0.0
    %1737 = vmatprep.subr.mxu0 0.0
    %1738 = vmatpush2.msra.mxu0 0.0
    %1739 = vmatprep.subr.mxu0 0.0
    %1740 = vmatpush2.msra.mxu0 0.0
    %1741 = vmatprep.subr.mxu0 0.0
    %1742 = vmatpush2.msra.mxu0 0.0
    %1743 = vmatprep.subr.mxu0 0.0
    %1744 = vmatpush2.msra.mxu0 0.0
    %1745 = vmatprep.subr.mxu0 0.0
    %1746 = vmatpush2.msra.mxu0 0.0
    %1747 = vmatprep.subr.mxu0 0.0
    %1748 = vmatpush2.msra.mxu0 0.0
    %1749 = vmatprep.subr.mxu0 0.0
    %1750 = vmatpush2.msra.mxu0 0.0
    %1751 = vmatprep.subr.mxu0 0.0
    %1752 = vmatpush2.msra.mxu0 0.0
    %1753 = vmatprep.subr.mxu0 0.0
    %1754 = vmatpush2.msra.mxu0 0.0
    %1755 = vmatprep.subr.mxu0 0.0
    %1756 = vmatpush2.msra.mxu0 0.0
    %1757 = vmatprep.subr.mxu0 0.0
    %1758 = vmatpush2.msra.mxu0 0.0
    %1759 = vmatprep.subr.mxu0 0.0
    %1760 = vmatpush2.msra.mxu0 0.0
    %1761 = vmatprep.subr.mxu0 0.0
    %1762 = vmatpush2.msra.mxu0 0.0
    %1763 = vmatprep.mubr.f32.mxu0 0.0
    %1764 = vmatmul.mubr.f32.gmra.mxu0 %v1697
    %v1765 = vpop.f32.mrf.mxu0
    %v1766 = vadd.f32 0.0, %v1765
    %v1767 = vpop.f32.mrf.mxu0
    %v1768 = vadd.f32 0.0, %v1767
    %1769 = vdwg.mxu0
    %1771 = vrot.lane.b32.xlu0 %v1693, 64
    %v1772 = vpop.permute.xlu0 %1771
    %v1773 = vsel %vm201, %v1772, 0
    %1775 = vmatprep.subr.mxu0 0.0
    %1776 = vmatpush1.msra.mxu0 0.0
    %1777 = vmatprep.subr.mxu0 0.0
    %1778 = vmatpush1.msra.mxu0 0.0
    %1779 = vmatprep.subr.mxu0 0.0
    %1780 = vmatpush1.msra.mxu0 0.0
    %1781 = vmatprep.subr.mxu0 0.0
    %1782 = vmatpush1.msra.mxu0 0.0
    %1783 = vmatprep.subr.mxu0 0.0
    %1784 = vmatpush1.msra.mxu0 0.0
    %1785 = vmatprep.subr.mxu0 0.0
    %1786 = vmatpush1.msra.mxu0 0.0
    %1787 = vmatprep.subr.mxu0 0.0
    %1788 = vmatpush1.msra.mxu0 0.0
    %1789 = vmatprep.subr.mxu0 0.0
    %1790 = vmatpush1.msra.mxu0 0.0
    %1791 = vmatprep.subr.mxu0 %v315
    %1792 = vmatpush1.msra.mxu0 %v314
    %1793 = vmatprep.subr.mxu0 %v313
    %1794 = vmatpush1.msra.mxu0 %v312
    %1795 = vmatprep.subr.mxu0 %v311
    %1796 = vmatpush1.msra.mxu0 %v310
    %1797 = vmatprep.subr.mxu0 %v309
    %1798 = vmatpush1.msra.mxu0 %v308
    %1799 = vmatprep.subr.mxu0 %v307
    %1800 = vmatpush1.msra.mxu0 %v306
    %1801 = vmatprep.subr.mxu0 %v305
    %1802 = vmatpush1.msra.mxu0 %v304
    %1803 = vmatprep.subr.mxu0 %v303
    %1804 = vmatpush1.msra.mxu0 %v302
    %1805 = vmatprep.subr.mxu0 %v301
    %1806 = vmatpush1.msra.mxu0 %v300
    %1807 = vmatprep.subr.mxu0 0.0
    %1808 = vmatpush2.msra.mxu0 0.0
    %1809 = vmatprep.subr.mxu0 0.0
    %1810 = vmatpush2.msra.mxu0 0.0
    %1811 = vmatprep.subr.mxu0 0.0
    %1812 = vmatpush2.msra.mxu0 0.0
    %1813 = vmatprep.subr.mxu0 0.0
    %1814 = vmatpush2.msra.mxu0 0.0
    %1815 = vmatprep.subr.mxu0 0.0
    %1816 = vmatpush2.msra.mxu0 0.0
    %1817 = vmatprep.subr.mxu0 0.0
    %1818 = vmatpush2.msra.mxu0 0.0
    %1819 = vmatprep.subr.mxu0 0.0
    %1820 = vmatpush2.msra.mxu0 0.0
    %1821 = vmatprep.subr.mxu0 0.0
    %1822 = vmatpush2.msra.mxu0 0.0
    %1823 = vmatprep.subr.mxu0 0.0
    %1824 = vmatpush2.msra.mxu0 0.0
    %1825 = vmatprep.subr.mxu0 0.0
    %1826 = vmatpush2.msra.mxu0 0.0
    %1827 = vmatprep.subr.mxu0 0.0
    %1828 = vmatpush2.msra.mxu0 0.0
    %1829 = vmatprep.subr.mxu0 0.0
    %1830 = vmatpush2.msra.mxu0 0.0
    %1831 = vmatprep.subr.mxu0 0.0
    %1832 = vmatpush2.msra.mxu0 0.0
    %1833 = vmatprep.subr.mxu0 0.0
    %1834 = vmatpush2.msra.mxu0 0.0
    %1835 = vmatprep.subr.mxu0 0.0
    %1836 = vmatpush2.msra.mxu0 0.0
    %1837 = vmatprep.subr.mxu0 0.0
    %1838 = vmatpush2.msra.mxu0 0.0
    %1839 = vmatprep.mubr.f32.mxu0 0.0
    %1840 = vmatmul.mubr.f32.gmra.mxu0 %v1773
    %v1841 = vpop.f32.mrf.mxu0
    %v1842 = vadd.f32 %v1766, %v1841
    %v1843 = vpop.f32.mrf.mxu0
    %v1844 = vadd.f32 %v1768, %v1843
    %1845 = vdwg.mxu0
    %v1846 = vadd.f32 %v1842, %v484
    %v1847 = vadd.f32 %v1844, %v488
    %v1848 = vxor.u32 %v1846, 2147483648
    %v1849 = vmul.f32 %v1848, 1.442695
    %v1850 = vpow.pop %v1849
    %v1851 = vadd.f32 %v1850, 1.0
    %v1852 = vrcp.pop %v1851
    %v1853 = vmul.f32 1.0, %v1852
    %v1854 = vtanh.pop %v1847
    %v1855 = vxor.u32 %v1847, 2147483648
    %v1856 = vmul.f32 %v1855, 1.442695
    %v1857 = vpow.pop %v1856
    %v1858 = vadd.f32 %v1857, 1.0
    %v1859 = vrcp.pop %v1858
    %v1860 = vmul.f32 1.0, %v1859
    %v1861 = vmul.f32 %v1853, %v1596
    %v1862 = vmul.f32 %v1853, %v1854
    %1864 = vrot.lane.b32.xlu0 %v1862, 64
    %v1865 = vpop.permute.xlu0 %1864
    %v1867 = vadd.f32 %v1861, %v1865
    %v1868 = vtanh.pop %v1867
    %v1869 = vmul.f32 %v1860, %v1868
    %1870 = vmatprep.subr.mxu0 0.0
    %1871 = vmatpush1.msra.mxu0 0.0
    %1872 = vmatprep.subr.mxu0 0.0
    %1873 = vmatpush1.msra.mxu0 0.0
    %1874 = vmatprep.subr.mxu0 0.0
    %1875 = vmatpush1.msra.mxu0 0.0
    %1876 = vmatprep.subr.mxu0 0.0
    %1877 = vmatpush1.msra.mxu0 0.0
    %1878 = vmatprep.subr.mxu0 0.0
    %1879 = vmatpush1.msra.mxu0 0.0
    %1880 = vmatprep.subr.mxu0 0.0
    %1881 = vmatpush1.msra.mxu0 0.0
    %1882 = vmatprep.subr.mxu0 0.0
    %1883 = vmatpush1.msra.mxu0 0.0
    %1884 = vmatprep.subr.mxu0 0.0
    %1885 = vmatpush1.msra.mxu0 0.0
    %1886 = vmatprep.subr.mxu0 %v200
    %1887 = vmatpush1.msra.mxu0 %v199
    %1888 = vmatprep.subr.mxu0 %v198
    %1889 = vmatpush1.msra.mxu0 %v197
    %1890 = vmatprep.subr.mxu0 %v196
    %1891 = vmatpush1.msra.mxu0 %v195
    %1892 = vmatprep.subr.mxu0 %v194
    %1893 = vmatpush1.msra.mxu0 %v193
    %1894 = vmatprep.subr.mxu0 %v192
    %1895 = vmatpush1.msra.mxu0 %v191
    %1896 = vmatprep.subr.mxu0 %v190
    %1897 = vmatpush1.msra.mxu0 %v189
    %1898 = vmatprep.subr.mxu0 %v188
    %1899 = vmatpush1.msra.mxu0 %v187
    %1900 = vmatprep.subr.mxu0 %v186
    %1901 = vmatpush1.msra.mxu0 %v185
    %1902 = vmatprep.subr.mxu0 0.0
    %1903 = vmatpush2.msra.mxu0 0.0
    %1904 = vmatprep.subr.mxu0 0.0
    %1905 = vmatpush2.msra.mxu0 0.0
    %1906 = vmatprep.subr.mxu0 0.0
    %1907 = vmatpush2.msra.mxu0 0.0
    %1908 = vmatprep.subr.mxu0 0.0
    %1909 = vmatpush2.msra.mxu0 0.0
    %1910 = vmatprep.subr.mxu0 0.0
    %1911 = vmatpush2.msra.mxu0 0.0
    %1912 = vmatprep.subr.mxu0 0.0
    %1913 = vmatpush2.msra.mxu0 0.0
    %1914 = vmatprep.subr.mxu0 0.0
    %1915 = vmatpush2.msra.mxu0 0.0
    %1916 = vmatprep.subr.mxu0 0.0
    %1917 = vmatpush2.msra.mxu0 0.0
    %1918 = vmatprep.subr.mxu0 0.0
    %1919 = vmatpush2.msra.mxu0 0.0
    %1920 = vmatprep.subr.mxu0 0.0
    %1921 = vmatpush2.msra.mxu0 0.0
    %1922 = vmatprep.subr.mxu0 0.0
    %1923 = vmatpush2.msra.mxu0 0.0
    %1924 = vmatprep.subr.mxu0 0.0
    %1925 = vmatpush2.msra.mxu0 0.0
    %1926 = vmatprep.subr.mxu0 0.0
    %1927 = vmatpush2.msra.mxu0 0.0
    %1928 = vmatprep.subr.mxu0 0.0
    %1929 = vmatpush2.msra.mxu0 0.0
    %1930 = vmatprep.subr.mxu0 0.0
    %1931 = vmatpush2.msra.mxu0 0.0
    %1932 = vmatprep.subr.mxu0 0.0
    %1933 = vmatpush2.msra.mxu0 0.0
    %1934 = vmatprep.mubr.f32.mxu0 0.0
    %1935 = vmatmul.mubr.f32.gmra.mxu0 %v1773
    %v1936 = vpop.f32.mrf.mxu0
    %v1937 = vadd.f32 0.0, %v1936
    %v1938 = vpop.f32.mrf.mxu0
    %v1939 = vadd.f32 0.0, %v1938
    %1940 = vdwg.mxu0
    %v1941 = vadd.f32 %v172, %v1937
    %v1942 = vadd.f32 %v173, %v1939
    %v1943 = vxor.u32 %v1941, 2147483648
    %v1944 = vmul.f32 %v1943, 1.442695
    %v1945 = vpow.pop %v1944
    %v1946 = vadd.f32 %v1945, 1.0
    %v1947 = vrcp.pop %v1946
    %v1948 = vmul.f32 1.0, %v1947
    %v1949 = vtanh.pop %v1942
    %v1950 = vxor.u32 %v1942, 2147483648
    %v1951 = vmul.f32 %v1950, 1.442695
    %v1952 = vpow.pop %v1951
    %v1953 = vadd.f32 %v1952, 1.0
    %v1954 = vrcp.pop %v1953
    %v1955 = vmul.f32 1.0, %v1954
    %v1956 = vmul.f32 %v1948, %v1691
    %v1957 = vmul.f32 %v1948, %v1949
    %1959 = vrot.lane.b32.xlu0 %v1957, 64
    %v1960 = vpop.permute.xlu0 %1959
    %v1962 = vadd.f32 %v1956, %v1960
    %v1963 = vtanh.pop %v1962
    %v1964 = vmul.f32 %v1955, %v1963
    %1966 = vrot.lane.b32.xlu0 %v1869, 64
    %v1967 = vpop.permute.xlu0 %1966
    %v1968 = vsel %vm201, %v1967, 0
    %1970 = vmatprep.subr.mxu0 0.0
    %1971 = vmatpush1.msra.mxu0 0.0
    %1972 = vmatprep.subr.mxu0 0.0
    %1973 = vmatpush1.msra.mxu0 0.0
    %1974 = vmatprep.subr.mxu0 0.0
    %1975 = vmatpush1.msra.mxu0 0.0
    %1976 = vmatprep.subr.mxu0 0.0
    %1977 = vmatpush1.msra.mxu0 0.0
    %1978 = vmatprep.subr.mxu0 0.0
    %1979 = vmatpush1.msra.mxu0 0.0
    %1980 = vmatprep.subr.mxu0 0.0
    %1981 = vmatpush1.msra.mxu0 0.0
    %1982 = vmatprep.subr.mxu0 0.0
    %1983 = vmatpush1.msra.mxu0 0.0
    %1984 = vmatprep.subr.mxu0 0.0
    %1985 = vmatpush1.msra.mxu0 0.0
    %1986 = vmatprep.subr.mxu0 %v331
    %1987 = vmatpush1.msra.mxu0 %v330
    %1988 = vmatprep.subr.mxu0 %v329
    %1989 = vmatpush1.msra.mxu0 %v328
    %1990 = vmatprep.subr.mxu0 %v327
    %1991 = vmatpush1.msra.mxu0 %v326
    %1992 = vmatprep.subr.mxu0 %v325
    %1993 = vmatpush1.msra.mxu0 %v324
    %1994 = vmatprep.subr.mxu0 %v323
    %1995 = vmatpush1.msra.mxu0 %v322
    %1996 = vmatprep.subr.mxu0 %v321
    %1997 = vmatpush1.msra.mxu0 %v320
    %1998 = vmatprep.subr.mxu0 %v319
    %1999 = vmatpush1.msra.mxu0 %v318
    %2000 = vmatprep.subr.mxu0 %v317
    %2001 = vmatpush1.msra.mxu0 %v316
    %2002 = vmatprep.subr.mxu0 0.0
    %2003 = vmatpush2.msra.mxu0 0.0
    %2004 = vmatprep.subr.mxu0 0.0
    %2005 = vmatpush2.msra.mxu0 0.0
    %2006 = vmatprep.subr.mxu0 0.0
    %2007 = vmatpush2.msra.mxu0 0.0
    %2008 = vmatprep.subr.mxu0 0.0
    %2009 = vmatpush2.msra.mxu0 0.0
    %2010 = vmatprep.subr.mxu0 0.0
    %2011 = vmatpush2.msra.mxu0 0.0
    %2012 = vmatprep.subr.mxu0 0.0
    %2013 = vmatpush2.msra.mxu0 0.0
    %2014 = vmatprep.subr.mxu0 0.0
    %2015 = vmatpush2.msra.mxu0 0.0
    %2016 = vmatprep.subr.mxu0 0.0
    %2017 = vmatpush2.msra.mxu0 0.0
    %2018 = vmatprep.subr.mxu0 0.0
    %2019 = vmatpush2.msra.mxu0 0.0
    %2020 = vmatprep.subr.mxu0 0.0
    %2021 = vmatpush2.msra.mxu0 0.0
    %2022 = vmatprep.subr.mxu0 0.0
    %2023 = vmatpush2.msra.mxu0 0.0
    %2024 = vmatprep.subr.mxu0 0.0
    %2025 = vmatpush2.msra.mxu0 0.0
    %2026 = vmatprep.subr.mxu0 0.0
    %2027 = vmatpush2.msra.mxu0 0.0
    %2028 = vmatprep.subr.mxu0 0.0
    %2029 = vmatpush2.msra.mxu0 0.0
    %2030 = vmatprep.subr.mxu0 0.0
    %2031 = vmatpush2.msra.mxu0 0.0
    %2032 = vmatprep.subr.mxu0 0.0
    %2033 = vmatpush2.msra.mxu0 0.0
    %2034 = vmatprep.mubr.f32.mxu0 0.0
    %2035 = vmatmul.mubr.f32.gmra.mxu0 %v1968
    %v2036 = vpop.f32.mrf.mxu0
    %v2037 = vadd.f32 0.0, %v2036
    %v2038 = vpop.f32.mrf.mxu0
    %v2039 = vadd.f32 0.0, %v2038
    %2040 = vdwg.mxu0
    %2042 = vrot.lane.b32.xlu0 %v1964, 64
    %v2043 = vpop.permute.xlu0 %2042
    %v2044 = vsel %vm201, %v2043, 0
    %2046 = vmatprep.subr.mxu0 0.0
    %2047 = vmatpush1.msra.mxu0 0.0
    %2048 = vmatprep.subr.mxu0 0.0
    %2049 = vmatpush1.msra.mxu0 0.0
    %2050 = vmatprep.subr.mxu0 0.0
    %2051 = vmatpush1.msra.mxu0 0.0
    %2052 = vmatprep.subr.mxu0 0.0
    %2053 = vmatpush1.msra.mxu0 0.0
    %2054 = vmatprep.subr.mxu0 0.0
    %2055 = vmatpush1.msra.mxu0 0.0
    %2056 = vmatprep.subr.mxu0 0.0
    %2057 = vmatpush1.msra.mxu0 0.0
    %2058 = vmatprep.subr.mxu0 0.0
    %2059 = vmatpush1.msra.mxu0 0.0
    %2060 = vmatprep.subr.mxu0 0.0
    %2061 = vmatpush1.msra.mxu0 0.0
    %2062 = vmatprep.subr.mxu0 %v315
    %2063 = vmatpush1.msra.mxu0 %v314
    %2064 = vmatprep.subr.mxu0 %v313
    %2065 = vmatpush1.msra.mxu0 %v312
    %2066 = vmatprep.subr.mxu0 %v311
    %2067 = vmatpush1.msra.mxu0 %v310
    %2068 = vmatprep.subr.mxu0 %v309
    %2069 = vmatpush1.msra.mxu0 %v308
    %2070 = vmatprep.subr.mxu0 %v307
    %2071 = vmatpush1.msra.mxu0 %v306
    %2072 = vmatprep.subr.mxu0 %v305
    %2073 = vmatpush1.msra.mxu0 %v304
    %2074 = vmatprep.subr.mxu0 %v303
    %2075 = vmatpush1.msra.mxu0 %v302
    %2076 = vmatprep.subr.mxu0 %v301
    %2077 = vmatpush1.msra.mxu0 %v300
    %2078 = vmatprep.subr.mxu0 0.0
    %2079 = vmatpush2.msra.mxu0 0.0
    %2080 = vmatprep.subr.mxu0 0.0
    %2081 = vmatpush2.msra.mxu0 0.0
    %2082 = vmatprep.subr.mxu0 0.0
    %2083 = vmatpush2.msra.mxu0 0.0
    %2084 = vmatprep.subr.mxu0 0.0
    %2085 = vmatpush2.msra.mxu0 0.0
    %2086 = vmatprep.subr.mxu0 0.0
    %2087 = vmatpush2.msra.mxu0 0.0
    %2088 = vmatprep.subr.mxu0 0.0
    %2089 = vmatpush2.msra.mxu0 0.0
    %2090 = vmatprep.subr.mxu0 0.0
    %2091 = vmatpush2.msra.mxu0 0.0
    %2092 = vmatprep.subr.mxu0 0.0
    %2093 = vmatpush2.msra.mxu0 0.0
    %2094 = vmatprep.subr.mxu0 0.0
    %2095 = vmatpush2.msra.mxu0 0.0
    %2096 = vmatprep.subr.mxu0 0.0
    %2097 = vmatpush2.msra.mxu0 0.0
    %2098 = vmatprep.subr.mxu0 0.0
    %2099 = vmatpush2.msra.mxu0 0.0
    %2100 = vmatprep.subr.mxu0 0.0
    %2101 = vmatpush2.msra.mxu0 0.0
    %2102 = vmatprep.subr.mxu0 0.0
    %2103 = vmatpush2.msra.mxu0 0.0
    %2104 = vmatprep.subr.mxu0 0.0
    %2105 = vmatpush2.msra.mxu0 0.0
    %2106 = vmatprep.subr.mxu0 0.0
    %2107 = vmatpush2.msra.mxu0 0.0
    %2108 = vmatprep.subr.mxu0 0.0
    %2109 = vmatpush2.msra.mxu0 0.0
    %2110 = vmatprep.mubr.f32.mxu0 0.0
    %2111 = vmatmul.mubr.f32.gmra.mxu0 %v2044
    %v2112 = vpop.f32.mrf.mxu0
    %v2113 = vadd.f32 %v2037, %v2112
    %v2114 = vpop.f32.mrf.mxu0
    %v2115 = vadd.f32 %v2039, %v2114
    %2116 = vdwg.mxu0
    %v2117 = vadd.f32 %v2113, %v484
    %v2118 = vadd.f32 %v2115, %v488
    %v2119 = vxor.u32 %v2117, 2147483648
    %v2120 = vmul.f32 %v2119, 1.442695
    %v2121 = vpow.pop %v2120
    %v2122 = vadd.f32 %v2121, 1.0
    %v2123 = vrcp.pop %v2122
    %v2124 = vmul.f32 1.0, %v2123
    %v2125 = vtanh.pop %v2118
    %v2126 = vxor.u32 %v2118, 2147483648
    %v2127 = vmul.f32 %v2126, 1.442695
    %v2128 = vpow.pop %v2127
    %v2129 = vadd.f32 %v2128, 1.0
    %v2130 = vrcp.pop %v2129
    %v2131 = vmul.f32 1.0, %v2130
    %v2132 = vmul.f32 %v2124, %v1867
    %v2133 = vmul.f32 %v2124, %v2125
    %2135 = vrot.lane.b32.xlu0 %v2133, 64
    %v2136 = vpop.permute.xlu0 %2135
    %v2138 = vadd.f32 %v2132, %v2136
    %v2139 = vtanh.pop %v2138
    %v2140 = vmul.f32 %v2131, %v2139
    %2141 = vmatprep.subr.mxu0 0.0
    %2142 = vmatpush1.msra.mxu0 0.0
    %2143 = vmatprep.subr.mxu0 0.0
    %2144 = vmatpush1.msra.mxu0 0.0
    %2145 = vmatprep.subr.mxu0 0.0
    %2146 = vmatpush1.msra.mxu0 0.0
    %2147 = vmatprep.subr.mxu0 0.0
    %2148 = vmatpush1.msra.mxu0 0.0
    %2149 = vmatprep.subr.mxu0 0.0
    %2150 = vmatpush1.msra.mxu0 0.0
    %2151 = vmatprep.subr.mxu0 0.0
    %2152 = vmatpush1.msra.mxu0 0.0
    %2153 = vmatprep.subr.mxu0 0.0
    %2154 = vmatpush1.msra.mxu0 0.0
    %2155 = vmatprep.subr.mxu0 0.0
    %2156 = vmatpush1.msra.mxu0 0.0
    %2157 = vmatprep.subr.mxu0 %v200
    %2158 = vmatpush1.msra.mxu0 %v199
    %2159 = vmatprep.subr.mxu0 %v198
    %2160 = vmatpush1.msra.mxu0 %v197
    %2161 = vmatprep.subr.mxu0 %v196
    %2162 = vmatpush1.msra.mxu0 %v195
    %2163 = vmatprep.subr.mxu0 %v194
    %2164 = vmatpush1.msra.mxu0 %v193
    %2165 = vmatprep.subr.mxu0 %v192
    %2166 = vmatpush1.msra.mxu0 %v191
    %2167 = vmatprep.subr.mxu0 %v190
    %2168 = vmatpush1.msra.mxu0 %v189
    %2169 = vmatprep.subr.mxu0 %v188
    %2170 = vmatpush1.msra.mxu0 %v187
    %2171 = vmatprep.subr.mxu0 %v186
    %2172 = vmatpush1.msra.mxu0 %v185
    %2173 = vmatprep.subr.mxu0 0.0
    %2174 = vmatpush2.msra.mxu0 0.0
    %2175 = vmatprep.subr.mxu0 0.0
    %2176 = vmatpush2.msra.mxu0 0.0
    %2177 = vmatprep.subr.mxu0 0.0
    %2178 = vmatpush2.msra.mxu0 0.0
    %2179 = vmatprep.subr.mxu0 0.0
    %2180 = vmatpush2.msra.mxu0 0.0
    %2181 = vmatprep.subr.mxu0 0.0
    %2182 = vmatpush2.msra.mxu0 0.0
    %2183 = vmatprep.subr.mxu0 0.0
    %2184 = vmatpush2.msra.mxu0 0.0
    %2185 = vmatprep.subr.mxu0 0.0
    %2186 = vmatpush2.msra.mxu0 0.0
    %2187 = vmatprep.subr.mxu0 0.0
    %2188 = vmatpush2.msra.mxu0 0.0
    %2189 = vmatprep.subr.mxu0 0.0
    %2190 = vmatpush2.msra.mxu0 0.0
    %2191 = vmatprep.subr.mxu0 0.0
    %2192 = vmatpush2.msra.mxu0 0.0
    %2193 = vmatprep.subr.mxu0 0.0
    %2194 = vmatpush2.msra.mxu0 0.0
    %2195 = vmatprep.subr.mxu0 0.0
    %2196 = vmatpush2.msra.mxu0 0.0
    %2197 = vmatprep.subr.mxu0 0.0
    %2198 = vmatpush2.msra.mxu0 0.0
    %2199 = vmatprep.subr.mxu0 0.0
    %2200 = vmatpush2.msra.mxu0 0.0
    %2201 = vmatprep.subr.mxu0 0.0
    %2202 = vmatpush2.msra.mxu0 0.0
    %2203 = vmatprep.subr.mxu0 0.0
    %2204 = vmatpush2.msra.mxu0 0.0
    %2205 = vmatprep.mubr.f32.mxu0 0.0
    %2206 = vmatmul.mubr.f32.gmra.mxu0 %v2044
    %v2207 = vpop.f32.mrf.mxu0
    %v2208 = vadd.f32 0.0, %v2207
    %v2209 = vpop.f32.mrf.mxu0
    %v2210 = vadd.f32 0.0, %v2209
    %2211 = vdwg.mxu0
    %v2212 = vadd.f32 %v183, %v2208
    %v2213 = vadd.f32 %v184, %v2210
    %v2214 = vxor.u32 %v2212, 2147483648
    %v2215 = vmul.f32 %v2214, 1.442695
    %v2216 = vpow.pop %v2215
    %v2217 = vadd.f32 %v2216, 1.0
    %v2218 = vrcp.pop %v2217
    %v2219 = vmul.f32 1.0, %v2218
    %v2220 = vtanh.pop %v2213
    %v2221 = vxor.u32 %v2213, 2147483648
    %v2222 = vmul.f32 %v2221, 1.442695
    %v2223 = vpow.pop %v2222
    %v2224 = vadd.f32 %v2223, 1.0
    %v2225 = vrcp.pop %v2224
    %v2226 = vmul.f32 1.0, %v2225
    %v2227 = vmul.f32 %v2219, %v1962
    %v2228 = vmul.f32 %v2219, %v2220
    %2230 = vrot.lane.b32.xlu0 %v2228, 64
    %v2231 = vpop.permute.xlu0 %2230
    %v2233 = vadd.f32 %v2227, %v2231
    %v2234 = vtanh.pop %v2233
    %v2235 = vmul.f32 %v2226, %v2234
    %2237 = vrot.lane.b32.xlu0 %v2140, 64
    %v2238 = vpop.permute.xlu0 %2237
    %v2239 = vsel %vm201, %v2238, 0
    %2241 = vmatprep.subr.mxu0 0.0
    %2242 = vmatpush1.msra.mxu0 0.0
    %2243 = vmatprep.subr.mxu0 0.0
    %2244 = vmatpush1.msra.mxu0 0.0
    %2245 = vmatprep.subr.mxu0 0.0
    %2246 = vmatpush1.msra.mxu0 0.0
    %2247 = vmatprep.subr.mxu0 0.0
    %2248 = vmatpush1.msra.mxu0 0.0
    %2249 = vmatprep.subr.mxu0 0.0
    %2250 = vmatpush1.msra.mxu0 0.0
    %2251 = vmatprep.subr.mxu0 0.0
    %2252 = vmatpush1.msra.mxu0 0.0
    %2253 = vmatprep.subr.mxu0 0.0
    %2254 = vmatpush1.msra.mxu0 0.0
    %2255 = vmatprep.subr.mxu0 0.0
    %2256 = vmatpush1.msra.mxu0 0.0
    %2257 = vmatprep.subr.mxu0 %v331
    %2258 = vmatpush1.msra.mxu0 %v330
    %2259 = vmatprep.subr.mxu0 %v329
    %2260 = vmatpush1.msra.mxu0 %v328
    %2261 = vmatprep.subr.mxu0 %v327
    %2262 = vmatpush1.msra.mxu0 %v326
    %2263 = vmatprep.subr.mxu0 %v325
    %2264 = vmatpush1.msra.mxu0 %v324
    %2265 = vmatprep.subr.mxu0 %v323
    %2266 = vmatpush1.msra.mxu0 %v322
    %2267 = vmatprep.subr.mxu0 %v321
    %2268 = vmatpush1.msra.mxu0 %v320
    %2269 = vmatprep.subr.mxu0 %v319
    %2270 = vmatpush1.msra.mxu0 %v318
    %2271 = vmatprep.subr.mxu0 %v317
    %2272 = vmatpush1.msra.mxu0 %v316
    %2273 = vmatprep.subr.mxu0 0.0
    %2274 = vmatpush2.msra.mxu0 0.0
    %2275 = vmatprep.subr.mxu0 0.0
    %2276 = vmatpush2.msra.mxu0 0.0
    %2277 = vmatprep.subr.mxu0 0.0
    %2278 = vmatpush2.msra.mxu0 0.0
    %2279 = vmatprep.subr.mxu0 0.0
    %2280 = vmatpush2.msra.mxu0 0.0
    %2281 = vmatprep.subr.mxu0 0.0
    %2282 = vmatpush2.msra.mxu0 0.0
    %2283 = vmatprep.subr.mxu0 0.0
    %2284 = vmatpush2.msra.mxu0 0.0
    %2285 = vmatprep.subr.mxu0 0.0
    %2286 = vmatpush2.msra.mxu0 0.0
    %2287 = vmatprep.subr.mxu0 0.0
    %2288 = vmatpush2.msra.mxu0 0.0
    %2289 = vmatprep.subr.mxu0 0.0
    %2290 = vmatpush2.msra.mxu0 0.0
    %2291 = vmatprep.subr.mxu0 0.0
    %2292 = vmatpush2.msra.mxu0 0.0
    %2293 = vmatprep.subr.mxu0 0.0
    %2294 = vmatpush2.msra.mxu0 0.0
    %2295 = vmatprep.subr.mxu0 0.0
    %2296 = vmatpush2.msra.mxu0 0.0
    %2297 = vmatprep.subr.mxu0 0.0
    %2298 = vmatpush2.msra.mxu0 0.0
    %2299 = vmatprep.subr.mxu0 0.0
    %2300 = vmatpush2.msra.mxu0 0.0
    %2301 = vmatprep.subr.mxu0 0.0
    %2302 = vmatpush2.msra.mxu0 0.0
    %2303 = vmatprep.subr.mxu0 0.0
    %2304 = vmatpush2.msra.mxu0 0.0
    %2305 = vmatprep.mubr.f32.mxu0 0.0
    %2306 = vmatmul.mubr.f32.gmra.mxu0 %v2239
    %v2307 = vpop.f32.mrf.mxu0
    %v2308 = vadd.f32 0.0, %v2307
    %v2309 = vpop.f32.mrf.mxu0
    %v2310 = vadd.f32 0.0, %v2309
    %2311 = vdwg.mxu0
    %2313 = vrot.lane.b32.xlu0 %v2235, 64
    %v2314 = vpop.permute.xlu0 %2313
    %v2315 = vsel %vm201, %v2314, 0
    %2317 = vmatprep.subr.mxu0 0.0
    %2318 = vmatpush1.msra.mxu0 0.0
    %2319 = vmatprep.subr.mxu0 0.0
    %2320 = vmatpush1.msra.mxu0 0.0
    %2321 = vmatprep.subr.mxu0 0.0
    %2322 = vmatpush1.msra.mxu0 0.0
    %2323 = vmatprep.subr.mxu0 0.0
    %2324 = vmatpush1.msra.mxu0 0.0
    %2325 = vmatprep.subr.mxu0 0.0
    %2326 = vmatpush1.msra.mxu0 0.0
    %2327 = vmatprep.subr.mxu0 0.0
    %2328 = vmatpush1.msra.mxu0 0.0
    %2329 = vmatprep.subr.mxu0 0.0
    %2330 = vmatpush1.msra.mxu0 0.0
    %2331 = vmatprep.subr.mxu0 0.0
    %2332 = vmatpush1.msra.mxu0 0.0
    %2333 = vmatprep.subr.mxu0 %v315
    %2334 = vmatpush1.msra.mxu0 %v314
    %2335 = vmatprep.subr.mxu0 %v313
    %2336 = vmatpush1.msra.mxu0 %v312
    %2337 = vmatprep.subr.mxu0 %v311
    %2338 = vmatpush1.msra.mxu0 %v310
    %2339 = vmatprep.subr.mxu0 %v309
    %2340 = vmatpush1.msra.mxu0 %v308
    %2341 = vmatprep.subr.mxu0 %v307
    %2342 = vmatpush1.msra.mxu0 %v306
    %2343 = vmatprep.subr.mxu0 %v305
    %2344 = vmatpush1.msra.mxu0 %v304
    %2345 = vmatprep.subr.mxu0 %v303
    %2346 = vmatpush1.msra.mxu0 %v302
    %2347 = vmatprep.subr.mxu0 %v301
    %2348 = vmatpush1.msra.mxu0 %v300
    %2349 = vmatprep.subr.mxu0 0.0
    %2350 = vmatpush2.msra.mxu0 0.0
    %2351 = vmatprep.subr.mxu0 0.0
    %2352 = vmatpush2.msra.mxu0 0.0
    %2353 = vmatprep.subr.mxu0 0.0
    %2354 = vmatpush2.msra.mxu0 0.0
    %2355 = vmatprep.subr.mxu0 0.0
    %2356 = vmatpush2.msra.mxu0 0.0
    %2357 = vmatprep.subr.mxu0 0.0
    %2358 = vmatpush2.msra.mxu0 0.0
    %2359 = vmatprep.subr.mxu0 0.0
    %2360 = vmatpush2.msra.mxu0 0.0
    %2361 = vmatprep.subr.mxu0 0.0
    %2362 = vmatpush2.msra.mxu0 0.0
    %2363 = vmatprep.subr.mxu0 0.0
    %2364 = vmatpush2.msra.mxu0 0.0
    %2365 = vmatprep.subr.mxu0 0.0
    %2366 = vmatpush2.msra.mxu0 0.0
    %2367 = vmatprep.subr.mxu0 0.0
    %2368 = vmatpush2.msra.mxu0 0.0
    %2369 = vmatprep.subr.mxu0 0.0
    %2370 = vmatpush2.msra.mxu0 0.0
    %2371 = vmatprep.subr.mxu0 0.0
    %2372 = vmatpush2.msra.mxu0 0.0
    %2373 = vmatprep.subr.mxu0 0.0
    %2374 = vmatpush2.msra.mxu0 0.0
    %2375 = vmatprep.subr.mxu0 0.0
    %2376 = vmatpush2.msra.mxu0 0.0
    %2377 = vmatprep.subr.mxu0 0.0
    %2378 = vmatpush2.msra.mxu0 0.0
    %2379 = vmatprep.subr.mxu0 0.0
    %2380 = vmatpush2.msra.mxu0 0.0
    %2381 = vmatprep.mubr.f32.mxu0 0.0
    %2382 = vmatmul.mubr.f32.gmra.mxu0 %v2315
    %v2383 = vpop.f32.mrf.mxu0
    %v2384 = vadd.f32 %v2308, %v2383
    %v2385 = vpop.f32.mrf.mxu0
    %v2386 = vadd.f32 %v2310, %v2385
    %2387 = vdwg.mxu0
    %v2388 = vadd.f32 %v2384, %v484
    %v2389 = vadd.f32 %v2386, %v488
    %v2390 = vxor.u32 %v2388, 2147483648
    %v2391 = vmul.f32 %v2390, 1.442695
    %v2392 = vpow.pop %v2391
    %v2393 = vadd.f32 %v2392, 1.0
    %v2394 = vrcp.pop %v2393
    %v2395 = vmul.f32 1.0, %v2394
    %v2396 = vtanh.pop %v2389
    %v2397 = vxor.u32 %v2389, 2147483648
    %v2398 = vmul.f32 %v2397, 1.442695
    %v2399 = vpow.pop %v2398
    %v2400 = vadd.f32 %v2399, 1.0
    %v2401 = vrcp.pop %v2400
    %v2402 = vmul.f32 1.0, %v2401
    %v2403 = vmul.f32 %v2395, %v2138
    %v2404 = vmul.f32 %v2395, %v2396
    %2406 = vrot.lane.b32.xlu0 %v2404, 64
    %v2407 = vpop.permute.xlu0 %2406
    %v2409 = vadd.f32 %v2403, %v2407
    %v2410 = vtanh.pop %v2409
    %v2411 = vmul.f32 %v2402, %v2410
    %v2412 = vld [vmem:[%s7] sm:$0x1]
    %v2414 = vlaneseq
    %v2415 = vshrl.u32 %v2414, 7
    %v2416 = vsub.s32 0, %v2415
    %v2417 = vrot.slane %v2412, %v2416
    %2418 = vrot.lane.b32.xlu0 %v2417, 64
    %v2419 = vpop.permute.xlu0 %2418
    %v2421 = vmul.f32 %v2411, %v2419
    %2423 = vrot.lane.b32.xlu0 %v2421, 64
    %v2424 = vpop.permute.xlu0 %2423
    %vm2426 = vcmask 517120
    %v2427 = vsel %vm2426, %v2424, 0.0
    %2428 = vadd.xlane.f32.xlu0 %v2427
    %v2429 = vpop.xlane.xlu0 %2428
    %s2430 = sld [smem:[#allocation2]]
    %v2431 = vstv %s2430
    %v2432 = vadd.f32 %v2429, %v2431
    %vm2433 = vcmask 1024
    %2434 = vst.msk [vmem:[%s9] sm:$0x3] %vm2433, %v2432
    // Predicated region
    $region50: #{tpu_custom_call.1} parent=1 // pred_check
      _
    $region51: #{tpu_custom_call.1} parent=1 // pred_check_branch
      %2436 = sbr.rel (0) target = $region53
    $region52: #{tpu_custom_call.1} parent=1 // pred_region
      _
    $region53: #{tpu_custom_call.1} parent=1 // pred_fallthru
      _
    // Predicated region
    $region54: #{tpu_custom_call.1} parent=1 // pred_check
      _
    $region55: #{tpu_custom_call.1} parent=1 // pred_check_branch
      %2438 = sbr.rel (0) target = $region57
    $region56: #{tpu_custom_call.1} parent=1 // pred_region
      _
    $region57: #{tpu_custom_call.1} parent=1 // pred_fallthru
      _
    %2439 = vsyncpa [#allocation4], 1
    %2440 = vsyncpa [#allocation6], 1

</llo_original>
